<compile_context>
chip_gen: v7x
topology: tpu7x:2x2x1
jax: 0.10.0
libtpu: 0.0.40
codegen_flags: <defaults>
</compile_context>

<pallas_src>
import functools

import jax
import jax.numpy as jnp
from jax.experimental import pallas as pl
from jax.experimental.pallas import tpu as pltpu


LANE = 128


def _round_up(x, m):
    return (x + m - 1) // m * m


# ----------------------------------------------------------------------------
# Fused Bottleneck kernel: one grid step = one (batch, row-tile) output tile.
# ----------------------------------------------------------------------------
def _bottleneck_kernel(xm_ref, xt_ref, xb_ref, w1_ref, s1_ref, b1_ref,
                       w2_ref, s2_ref, b2_ref, o_ref, *, TH, W, add):
    t = pl.program_id(1)
    num_t = pl.num_programs(1)

    C1P = xm_ref.shape[-1]
    CP = w1_ref.shape[-1]
    C2P = w2_ref.shape[-1]
    M2 = (TH + 2) * W            # rows of the (tile + halo) slab, flattened
    MT = TH * W                  # rows of the output tile, flattened

    # ---- assemble the (TH+2, W, C1P) input slab (1 halo row each side) ----
    xm = xm_ref[0]                                           # (TH, W, C1P) bf16
    x_slab = jnp.concatenate([xt_ref[0], xm, xb_ref[0]], axis=0)

    # ---- cv1: 1x1 conv (one MXU matmul) + folded BN + SiLU over the slab ---
    x2d = x_slab.reshape(M2, C1P)
    y1 = jnp.dot(x2d, w1_ref[...], preferred_element_type=jnp.float32)
    y1 = y1 * s1_ref[...] + b1_ref[...]                      # folded BN (eval)
    sig1 = pl.reciprocal(1.0 + jnp.exp(-y1), approx=True)    # EUP sigmoid
    h2 = y1 * sig1                                           # (M2, CP) f32

    # ---- zero the halo rows of h at the image top/bottom (conv zero-pad
    #      lives in h-space, NOT x-space) ----------------------------------
    rowi = jax.lax.broadcasted_iota(jnp.int32, (M2, CP), 0)
    edge_ok = jnp.logical_and(
        jnp.logical_or(t > 0, rowi >= W),                 # slab row 0
        jnp.logical_or(t < num_t - 1, rowi < (TH + 1) * W))  # slab row TH+1
    h2 = jnp.where(edge_ok, h2, 0.0)

    # ---- cv2: 3x3 conv as 9 tap matmuls (roll + edge mask along W) --------
    # Column index of every flattened row (j = r mod W), built via a 3D iota.
    coli = jax.lax.broadcasted_iota(
        jnp.int32, (TH + 2, W, CP), 1).reshape(M2, CP)
    # kw=0 tap reads column j-1; kw=2 tap reads column j+1 (zero at W edges).
    h_m = jnp.where(coli >= 1, pltpu.roll(h2, shift=1, axis=0), 0.0)
    h_p = jnp.where(coli <= W - 2, pltpu.roll(h2, shift=M2 - 1, axis=0), 0.0)
    taps_w = (h_m.astype(jnp.bfloat16),
              h2.astype(jnp.bfloat16),
              h_p.astype(jnp.bfloat16))

    acc = None
    for kh in range(3):
        for kw in range(3):
            tap = taps_w[kw][kh * W:kh * W + MT]             # (MT, CP) bf16
            part = jnp.dot(tap, w2_ref[kh * 3 + kw],
                           preferred_element_type=jnp.float32)
            acc = part if acc is None else acc + part

    y2 = acc * s2_ref[...] + b2_ref[...]                     # folded BN (eval)
    sig2 = pl.reciprocal(1.0 + jnp.exp(-y2), approx=True)
    y2 = y2 * sig2                                           # SiLU

    if add:
        # residual = the main input tile itself (c1 == c2, same lane padding)
        y2 = y2 + xm.reshape(MT, C1P).astype(jnp.float32)

    o_ref[...] = y2.reshape(1, TH, W, C2P).astype(o_ref.dtype)


# ----------------------------------------------------------------------------
# Tile-size selection: largest TH dividing H that fits a VMEM budget.
# ----------------------------------------------------------------------------
def _vmem_estimate(TH, W, C1P, CP, C2P):
    bf, f32 = 2, 4
    slab = (TH + 2) * W
    tile = TH * W
    pipelined = (2 * tile * C1P * bf            # main input (double-buffered)
                 + 2 * 2 * W * C1P * bf         # two 1-row halos
                 + 2 * tile * C2P * bf          # bf16 output
                 + 2 * (C1P * CP + 9 * CP * C2P) * bf
                 + 2 * 2 * (CP + C2P) * f32)
    scratch = (slab * C1P * bf                  # assembled x slab
               + slab * CP * (f32 + bf)         # h (f32 + bf16 center tap)
               + 2 * slab * CP * (f32 + bf)     # two rolled taps
               + 2 * slab * CP * f32            # iota / mask temporaries
               + 2 * tile * C2P * f32)          # acc + epilogue temps
    return int(1.25 * (pipelined + scratch))


def _pick_tile_h(H, W, C1P, CP, C2P, budget):
    cap = H if H <= 64 else 64
    candidates = sorted([d for d in range(1, H + 1)
                         if H % d == 0 and d <= cap], reverse=True)
    for th in candidates:
        if _vmem_estimate(th, W, C1P, CP, C2P) <= budget:
            return th
    return candidates[-1]


# ----------------------------------------------------------------------------
# Wrapper: NCHW f32 in/out, bf16 + lane-padded NHWC inside the kernel.
# ----------------------------------------------------------------------------
def bottleneck_forward(x_nchw, params, *, shortcut=True):
    B, c1, H, W = x_nchw.shape
    c2 = params["c2"]
    add = bool(shortcut and c1 == c2)

    C1P, CP = params["w1"].shape
    C2P = params["w2"].shape[-1]
    if add:
        assert C1P == C2P, "shortcut requires identical channel padding"

    # TODO(synk): these NCHW<->NHWC transposes / pad / cast / slice copies
    # disappear once the surrounding model stays NHWC + bf16 + lane-padded.
    x = jnp.transpose(x_nchw, (0, 2, 3, 1)).astype(jnp.bfloat16)
    x = jnp.pad(x, ((0, 0), (0, 0), (0, 0), (0, C1P - c1)))

    try:
        vmem_cap = int(pltpu.get_tpu_info().vmem_capacity_bytes)
    except Exception:
        vmem_cap = 64 << 20                      # v7x-safe fallback
    TH = _pick_tile_h(H, W, C1P, CP, C2P, budget=int(0.45 * vmem_cap))
    num_t = H // TH

    kern = functools.partial(_bottleneck_kernel, TH=TH, W=W, add=add)

    out = pl.pallas_call(
        kern,
        out_shape=jax.ShapeDtypeStruct((B, H, W, C2P), jnp.bfloat16),
        grid=(B, num_t),
        in_specs=[
            # main tile (also serves as the residual)
            pl.BlockSpec((1, TH, W, C1P), lambda b, t: (b, t, 0, 0)),
            # top halo row: image row t*TH - 1 (clamped; h-row masked at t=0)
            pl.BlockSpec((1, 1, W, C1P),
                         lambda b, t: (b, jnp.maximum(t * TH - 1, 0), 0, 0)),
            # bottom halo row: image row (t+1)*TH (clamped; masked at last t)
            pl.BlockSpec((1, 1, W, C1P),
                         lambda b, t: (b, jnp.minimum((t + 1) * TH, H - 1), 0, 0)),
            # weights / folded-BN params (constant index -> fetched once)
            pl.BlockSpec((C1P, CP), lambda b, t: (0, 0)),
            pl.BlockSpec((1, CP), lambda b, t: (0, 0)),
            pl.BlockSpec((1, CP), lambda b, t: (0, 0)),
            pl.BlockSpec((9, CP, C2P), lambda b, t: (0, 0, 0)),
            pl.BlockSpec((1, C2P), lambda b, t: (0, 0)),
            pl.BlockSpec((1, C2P), lambda b, t: (0, 0)),
        ],
        out_specs=pl.BlockSpec((1, TH, W, C2P), lambda b, t: (b, t, 0, 0)),
        compiler_params=pltpu.CompilerParams(
            dimension_semantics=("parallel", "parallel"),
            vmem_limit_bytes=int(0.75 * vmem_cap)),
    )(x, x, x,
      params["w1"], params["scale1"], params["bias1"],
      params["w2"], params["scale2"], params["bias2"])

    # Drop the channel padding, back to f32 NCHW (module interface).
    y = out[..., :c2].astype(jnp.float32)
    return jnp.transpose(y, (0, 3, 1, 2))


# ----------------------------------------------------------------------------
# Deterministic parameters (BN running stats folded into scale/bias), stored
# both lane-padded/bf16 (kernel) and raw f32 (reference).
# ----------------------------------------------------------------------------
def make_params(key, c1, c2, e=0.5):
    c_ = int(c2 * e)
    ks = jax.random.split(key, 10)
    eps = 1e-5

    w1 = 0.1 * jax.random.normal(ks[0], (c1, c_), jnp.float32)
    g1 = 1.0 + 0.1 * jax.random.normal(ks[1], (c_,), jnp.float32)
    b1 = 0.1 * jax.random.normal(ks[2], (c_,), jnp.float32)
    m1 = 0.1 * jax.random.normal(ks[3], (c_,), jnp.float32)
    v1 = jax.random.uniform(ks[4], (c_,), jnp.float32, 0.5, 1.5)
    scale1 = g1 / jnp.sqrt(v1 + eps)
    bias1 = b1 - m1 * scale1

    w2_oihw = 0.1 * jax.random.normal(ks[5], (c2, c_, 3, 3), jnp.float32)
    w2_hwio = jnp.transpose(w2_oihw, (2, 3, 1, 0))          # (3,3,c_,c2)
    g2 = 1.0 + 0.1 * jax.random.normal(ks[6], (c2,), jnp.float32)
    b2 = 0.1 * jax.random.normal(ks[7], (c2,), jnp.float32)
    m2 = 0.1 * jax.random.normal(ks[8], (c2,), jnp.float32)
    v2 = jax.random.uniform(ks[9], (c2,), jnp.float32, 0.5, 1.5)
    scale2 = g2 / jnp.sqrt(v2 + eps)
    bias2 = b2 - m2 * scale2

    # Lane-padded / bf16 kernel params.
    C1P, CP, C2P = _round_up(c1, LANE), _round_up(c_, LANE), _round_up(c2, LANE)

    w1_p = jnp.zeros((C1P, CP), jnp.float32).at[:c1, :c_].set(w1)
    w1_p = w1_p.astype(jnp.bfloat16)
    s1_p = jnp.zeros((1, CP), jnp.float32).at[0, :c_].set(scale1)
    b1_p = jnp.zeros((1, CP), jnp.float32).at[0, :c_].set(bias1)

    w2_p = jnp.zeros((3, 3, CP, C2P), jnp.float32).at[:, :, :c_, :c2].set(w2_hwio)
    w2_p = w2_p.reshape(9, CP, C2P).astype(jnp.bfloat16)     # tap = kh*3 + kw
    s2_p = jnp.zeros((1, C2P), jnp.float32).at[0, :c2].set(scale2)
    b2_p = jnp.zeros((1, C2P), jnp.float32).at[0, :c2].set(bias2)

    return {
        "c2": c2,
        "w1": w1_p, "scale1": s1_p, "bias1": b1_p,
        "w2": w2_p, "scale2": s2_p, "bias2": b2_p,
        "ref": {"w1": w1, "scale1": scale1, "bias1": bias1,
                "w2_hwio": w2_hwio, "scale2": scale2, "bias2": bias2},
    }


# Pure-JAX f32 reference (for the correctness check).
def bottleneck_ref(x_nchw, params, *, shortcut=True):
    c1 = x_nchw.shape[1]
    r = params["ref"]
    c_ = r["w1"].shape[1]
    c2 = r["w2_hwio"].shape[-1]
    add = shortcut and (c1 == c2)
    x = jnp.transpose(x_nchw, (0, 2, 3, 1))
    y = jax.lax.conv_general_dilated(
        x, r["w1"].reshape(1, 1, c1, c_), (1, 1), "SAME",
        dimension_numbers=("NHWC", "HWIO", "NHWC"))
    y = y * r["scale1"] + r["bias1"]
    y = y * jax.nn.sigmoid(y)
    z = jax.lax.conv_general_dilated(
        y, r["w2_hwio"], (1, 1), "SAME",
        dimension_numbers=("NHWC", "HWIO", "NHWC"))
    z = z * r["scale2"] + r["bias2"]
    z = z * jax.nn.sigmoid(z)
    out = x + z if add else z
    return jnp.transpose(out, (0, 3, 1, 2))


if __name__ == "__main__":
    key = jax.random.PRNGKey(0)
    kx, kp = jax.random.split(key)

    B, C, H, W = 2, 4, 16, 16          # c1 = c2 = 4, e = 0.5 -> c_ = 2
    x = jax.random.normal(kx, (B, C, H, W), jnp.float32)
    params = make_params(kp, C, C, e=0.5)

    out = jax.block_until_ready(bottleneck_forward(x, params, shortcut=True))
    ref = jax.block_until_ready(bottleneck_ref(x, params, shortcut=True))

    assert out.shape == (B, C, H, W)
    err = float(jnp.max(jnp.abs(out - ref)))
    assert err < 5e-2, f"mismatch vs reference: max abs err = {err}"

    print("KERNEL_OK")
</pallas_src>

<mosaic_0001>
module attributes {stable_mosaic.version = 11 : i64} {
  func.func @_bottleneck_kernel(%arg0: i32, %arg1: i32, %arg2: memref<1x16x16x128xbf16, #tpu.memory_space<vmem>>, %arg3: memref<1x1x16x128xbf16, #tpu.memory_space<vmem>>, %arg4: memref<1x1x16x128xbf16, #tpu.memory_space<vmem>>, %arg5: memref<128x128xbf16, #tpu.memory_space<vmem>>, %arg6: memref<1x128xf32, #tpu.memory_space<vmem>>, %arg7: memref<1x128xf32, #tpu.memory_space<vmem>>, %arg8: memref<9x128x128xbf16, #tpu.memory_space<vmem>>, %arg9: memref<1x128xf32, #tpu.memory_space<vmem>>, %arg10: memref<1x128xf32, #tpu.memory_space<vmem>>, %arg11: memref<1x16x16x128xbf16, #tpu.memory_space<vmem>>) attributes {dimension_semantics = [#tpu.dimension_semantics<parallel>, #tpu.dimension_semantics<parallel>], iteration_bounds = array<i64: 2, 1>, scalar_prefetch = 0 : i64, scratch_operands = 0 : i64, tpu.core_type = #tpu.core_type<tc>, window_params = [{transform_indices = @transform_0, window_bounds = array<i64: 1, 16, 16, 128>}, {transform_indices = @transform_1, window_bounds = array<i64: 1, 1, 16, 128>}, {transform_indices = @transform_2, window_bounds = array<i64: 1, 1, 16, 128>}, {pipeline_mode = #tpu.pipeline_mode<synchronous>, transform_indices = @transform_3, window_bounds = array<i64: 128, 128>}, {pipeline_mode = #tpu.pipeline_mode<synchronous>, transform_indices = @transform_4, window_bounds = array<i64: 1, 128>}, {pipeline_mode = #tpu.pipeline_mode<synchronous>, transform_indices = @transform_5, window_bounds = array<i64: 1, 128>}, {pipeline_mode = #tpu.pipeline_mode<synchronous>, transform_indices = @transform_6, window_bounds = array<i64: 9, 128, 128>}, {pipeline_mode = #tpu.pipeline_mode<synchronous>, transform_indices = @transform_7, window_bounds = array<i64: 1, 128>}, {pipeline_mode = #tpu.pipeline_mode<synchronous>, transform_indices = @transform_8, window_bounds = array<i64: 1, 128>}, {transform_indices = @transform_9, window_bounds = array<i64: 1, 16, 16, 128>}]} {
    %c0 = arith.constant 0 : index
    %c0_0 = arith.constant 0 : index
    %c0_1 = arith.constant 0 : index
    %c0_2 = arith.constant 0 : index
    %0 = vector.load %arg2[%c0, %c0_0, %c0_1, %c0_2] : memref<1x16x16x128xbf16, #tpu.memory_space<vmem>>, vector<1x16x16x128xbf16>
    %1 = vector.shape_cast %0 : vector<1x16x16x128xbf16> to vector<16x16x128xbf16>
    %c0_3 = arith.constant 0 : index
    %c0_4 = arith.constant 0 : index
    %c0_5 = arith.constant 0 : index
    %c0_6 = arith.constant 0 : index
    %2 = vector.load %arg3[%c0_3, %c0_4, %c0_5, %c0_6] : memref<1x1x16x128xbf16, #tpu.memory_space<vmem>>, vector<1x1x16x128xbf16>
    %3 = vector.shape_cast %2 : vector<1x1x16x128xbf16> to vector<1x16x128xbf16>
    %c0_7 = arith.constant 0 : index
    %c0_8 = arith.constant 0 : index
    %c0_9 = arith.constant 0 : index
    %c0_10 = arith.constant 0 : index
    %4 = vector.load %arg4[%c0_7, %c0_8, %c0_9, %c0_10] : memref<1x1x16x128xbf16, #tpu.memory_space<vmem>>, vector<1x1x16x128xbf16>
    %5 = vector.shape_cast %4 : vector<1x1x16x128xbf16> to vector<1x16x128xbf16>
    %6 = tpu.concatenate %3, %1, %5 in 0 : vector<1x16x128xbf16>, vector<16x16x128xbf16>, vector<1x16x128xbf16> -> vector<18x16x128xbf16>
    %7 = vector.shape_cast %6 : vector<18x16x128xbf16> to vector<288x128xbf16>
    %c0_11 = arith.constant 0 : index
    %c0_12 = arith.constant 0 : index
    %8 = vector.load %arg5[%c0_11, %c0_12] : memref<128x128xbf16, #tpu.memory_space<vmem>>, vector<128x128xbf16>
    %cst = arith.constant dense<0.000000e+00> : vector<288x128xf32>
    %9 = tpu.matmul %7, %8, %cst {dimension_numbers = #tpu.dot_dimension_numbers<[1], [0], [0], [1], [0, 0, 1, 1], [], []>} : vector<288x128xbf16>, vector<128x128xbf16>, vector<288x128xf32> -> vector<288x128xf32>
    %c0_13 = arith.constant 0 : index
    %c0_14 = arith.constant 0 : index
    %10 = vector.load %arg6[%c0_13, %c0_14] : memref<1x128xf32, #tpu.memory_space<vmem>>, vector<1x128xf32>
    %11 = vector.broadcast %10 : vector<1x128xf32> to vector<288x128xf32>
    %12 = arith.mulf %9, %11 : vector<288x128xf32>
    %c0_15 = arith.constant 0 : index
    %c0_16 = arith.constant 0 : index
    %13 = vector.load %arg7[%c0_15, %c0_16] : memref<1x128xf32, #tpu.memory_space<vmem>>, vector<1x128xf32>
    %14 = vector.broadcast %13 : vector<1x128xf32> to vector<288x128xf32>
    %15 = arith.addf %12, %14 : vector<288x128xf32>
    %cst_17 = arith.constant 0.000000e+00 : f32
    %16 = vector.broadcast %cst_17 : f32 to vector<288x128xf32>
    %17 = arith.subf %16, %15 : vector<288x128xf32>
    %18 = math.exp %17 : vector<288x128xf32>
    %cst_18 = arith.constant 1.000000e+00 : f32
    %19 = vector.broadcast %cst_18 : f32 to vector<288x128xf32>
    %20 = arith.addf %19, %18 : vector<288x128xf32>
    %21 = tpu.reciprocal %20 {approx = true} : vector<288x128xf32> -> vector<288x128xf32>
    %22 = arith.mulf %15, %21 : vector<288x128xf32>
    %23 = tpu.iota {dimensions = array<i32: 0>} : vector<288x128xi32>
    %c0_i32 = arith.constant 0 : i32
    %24 = arith.cmpi sgt, %arg1, %c0_i32 : i32
    %c16_i32 = arith.constant 16 : i32
    %25 = vector.broadcast %c16_i32 : i32 to vector<288x128xi32>
    %26 = arith.cmpi sge, %23, %25 : vector<288x128xi32>
    %27 = vector.broadcast %24 : i1 to vector<288x128xi1>
    %28 = arith.ori %27, %26 : vector<288x128xi1>
    %c0_i32_19 = arith.constant 0 : i32
    %29 = arith.cmpi slt, %arg1, %c0_i32_19 : i32
    %c272_i32 = arith.constant 272 : i32
    %30 = vector.broadcast %c272_i32 : i32 to vector<288x128xi32>
    %31 = arith.cmpi slt, %23, %30 : vector<288x128xi32>
    %32 = vector.broadcast %29 : i1 to vector<288x128xi1>
    %33 = arith.ori %32, %31 : vector<288x128xi1>
    %34 = arith.andi %28, %33 : vector<288x128xi1>
    %cst_20 = arith.constant 0.000000e+00 : f32
    %35 = vector.broadcast %cst_20 : f32 to vector<288x128xf32>
    %36 = arith.select %34, %22, %35 : vector<288x128xi1>, vector<288x128xf32>
    %37 = tpu.iota {dimensions = array<i32: 1>} : vector<18x16x128xi32>
    %38 = vector.shape_cast %37 : vector<18x16x128xi32> to vector<288x128xi32>
    %c1_i32 = arith.constant 1 : i32
    %39 = vector.broadcast %c1_i32 : i32 to vector<288x128xi32>
    %40 = arith.cmpi sge, %38, %39 : vector<288x128xi32>
    %c1_i32_21 = arith.constant 1 : i32
    %41 = tpu.dynamic_rotate %36 by %c1_i32_21 dim 0 : vector<288x128xf32>, i32 -> vector<288x128xf32>
    %cst_22 = arith.constant 0.000000e+00 : f32
    %42 = vector.broadcast %cst_22 : f32 to vector<288x128xf32>
    %43 = arith.select %40, %41, %42 : vector<288x128xi1>, vector<288x128xf32>
    %c14_i32 = arith.constant 14 : i32
    %44 = vector.broadcast %c14_i32 : i32 to vector<288x128xi32>
    %45 = arith.cmpi sle, %38, %44 : vector<288x128xi32>
    %c287_i32 = arith.constant 287 : i32
    %46 = tpu.dynamic_rotate %36 by %c287_i32 dim 0 : vector<288x128xf32>, i32 -> vector<288x128xf32>
    %cst_23 = arith.constant 0.000000e+00 : f32
    %47 = vector.broadcast %cst_23 : f32 to vector<288x128xf32>
    %48 = arith.select %45, %46, %47 : vector<288x128xi1>, vector<288x128xf32>
    %49 = arith.truncf %43 : vector<288x128xf32> to vector<288x128xbf16>
    %50 = arith.truncf %36 : vector<288x128xf32> to vector<288x128xbf16>
    %51 = arith.truncf %48 : vector<288x128xf32> to vector<288x128xbf16>
    %52 = vector.extract_strided_slice %49 {offsets = [0, 0], sizes = [256, 128], strides = [1, 1]} : vector<288x128xbf16> to vector<256x128xbf16>
    %c0_24 = arith.constant 0 : index
    %c0_25 = arith.constant 0 : index
    %c0_26 = arith.constant 0 : index
    %53 = vector.load %arg8[%c0_24, %c0_25, %c0_26] : memref<9x128x128xbf16, #tpu.memory_space<vmem>>, vector<1x128x128xbf16>
    %54 = vector.shape_cast %53 : vector<1x128x128xbf16> to vector<128x128xbf16>
    %cst_27 = arith.constant dense<0.000000e+00> : vector<256x128xf32>
    %55 = tpu.matmul %52, %54, %cst_27 {dimension_numbers = #tpu.dot_dimension_numbers<[1], [0], [0], [1], [0, 0, 1, 1], [], []>} : vector<256x128xbf16>, vector<128x128xbf16>, vector<256x128xf32> -> vector<256x128xf32>
    %56 = vector.extract_strided_slice %50 {offsets = [0, 0], sizes = [256, 128], strides = [1, 1]} : vector<288x128xbf16> to vector<256x128xbf16>
    %c1 = arith.constant 1 : index
    %c0_28 = arith.constant 0 : index
    %c0_29 = arith.constant 0 : index
    %57 = vector.load %arg8[%c1, %c0_28, %c0_29] : memref<9x128x128xbf16, #tpu.memory_space<vmem>>, vector<1x128x128xbf16>
    %58 = vector.shape_cast %57 : vector<1x128x128xbf16> to vector<128x128xbf16>
    %cst_30 = arith.constant dense<0.000000e+00> : vector<256x128xf32>
    %59 = tpu.matmul %56, %58, %cst_30 {dimension_numbers = #tpu.dot_dimension_numbers<[1], [0], [0], [1], [0, 0, 1, 1], [], []>} : vector<256x128xbf16>, vector<128x128xbf16>, vector<256x128xf32> -> vector<256x128xf32>
    %60 = arith.addf %55, %59 : vector<256x128xf32>
    %61 = vector.extract_strided_slice %51 {offsets = [0, 0], sizes = [256, 128], strides = [1, 1]} : vector<288x128xbf16> to vector<256x128xbf16>
    %c2 = arith.constant 2 : index
    %c0_31 = arith.constant 0 : index
    %c0_32 = arith.constant 0 : index
    %62 = vector.load %arg8[%c2, %c0_31, %c0_32] : memref<9x128x128xbf16, #tpu.memory_space<vmem>>, vector<1x128x128xbf16>
    %63 = vector.shape_cast %62 : vector<1x128x128xbf16> to vector<128x128xbf16>
    %cst_33 = arith.constant dense<0.000000e+00> : vector<256x128xf32>
    %64 = tpu.matmul %61, %63, %cst_33 {dimension_numbers = #tpu.dot_dimension_numbers<[1], [0], [0], [1], [0, 0, 1, 1], [], []>} : vector<256x128xbf16>, vector<128x128xbf16>, vector<256x128xf32> -> vector<256x128xf32>
    %65 = arith.addf %60, %64 : vector<256x128xf32>
    %66 = vector.extract_strided_slice %49 {offsets = [16, 0], sizes = [256, 128], strides = [1, 1]} : vector<288x128xbf16> to vector<256x128xbf16>
    %c3 = arith.constant 3 : index
    %c0_34 = arith.constant 0 : index
    %c0_35 = arith.constant 0 : index
    %67 = vector.load %arg8[%c3, %c0_34, %c0_35] : memref<9x128x128xbf16, #tpu.memory_space<vmem>>, vector<1x128x128xbf16>
    %68 = vector.shape_cast %67 : vector<1x128x128xbf16> to vector<128x128xbf16>
    %cst_36 = arith.constant dense<0.000000e+00> : vector<256x128xf32>
    %69 = tpu.matmul %66, %68, %cst_36 {dimension_numbers = #tpu.dot_dimension_numbers<[1], [0], [0], [1], [0, 0, 1, 1], [], []>} : vector<256x128xbf16>, vector<128x128xbf16>, vector<256x128xf32> -> vector<256x128xf32>
    %70 = arith.addf %65, %69 : vector<256x128xf32>
    %71 = vector.extract_strided_slice %50 {offsets = [16, 0], sizes = [256, 128], strides = [1, 1]} : vector<288x128xbf16> to vector<256x128xbf16>
    %c4 = arith.constant 4 : index
    %c0_37 = arith.constant 0 : index
    %c0_38 = arith.constant 0 : index
    %72 = vector.load %arg8[%c4, %c0_37, %c0_38] : memref<9x128x128xbf16, #tpu.memory_space<vmem>>, vector<1x128x128xbf16>
    %73 = vector.shape_cast %72 : vector<1x128x128xbf16> to vector<128x128xbf16>
    %cst_39 = arith.constant dense<0.000000e+00> : vector<256x128xf32>
    %74 = tpu.matmul %71, %73, %cst_39 {dimension_numbers = #tpu.dot_dimension_numbers<[1], [0], [0], [1], [0, 0, 1, 1], [], []>} : vector<256x128xbf16>, vector<128x128xbf16>, vector<256x128xf32> -> vector<256x128xf32>
    %75 = arith.addf %70, %74 : vector<256x128xf32>
    %76 = vector.extract_strided_slice %51 {offsets = [16, 0], sizes = [256, 128], strides = [1, 1]} : vector<288x128xbf16> to vector<256x128xbf16>
    %c5 = arith.constant 5 : index
    %c0_40 = arith.constant 0 : index
    %c0_41 = arith.constant 0 : index
    %77 = vector.load %arg8[%c5, %c0_40, %c0_41] : memref<9x128x128xbf16, #tpu.memory_space<vmem>>, vector<1x128x128xbf16>
    %78 = vector.shape_cast %77 : vector<1x128x128xbf16> to vector<128x128xbf16>
    %cst_42 = arith.constant dense<0.000000e+00> : vector<256x128xf32>
    %79 = tpu.matmul %76, %78, %cst_42 {dimension_numbers = #tpu.dot_dimension_numbers<[1], [0], [0], [1], [0, 0, 1, 1], [], []>} : vector<256x128xbf16>, vector<128x128xbf16>, vector<256x128xf32> -> vector<256x128xf32>
    %80 = arith.addf %75, %79 : vector<256x128xf32>
    %81 = vector.extract_strided_slice %49 {offsets = [32, 0], sizes = [256, 128], strides = [1, 1]} : vector<288x128xbf16> to vector<256x128xbf16>
    %c6 = arith.constant 6 : index
    %c0_43 = arith.constant 0 : index
    %c0_44 = arith.constant 0 : index
    %82 = vector.load %arg8[%c6, %c0_43, %c0_44] : memref<9x128x128xbf16, #tpu.memory_space<vmem>>, vector<1x128x128xbf16>
    %83 = vector.shape_cast %82 : vector<1x128x128xbf16> to vector<128x128xbf16>
    %cst_45 = arith.constant dense<0.000000e+00> : vector<256x128xf32>
    %84 = tpu.matmul %81, %83, %cst_45 {dimension_numbers = #tpu.dot_dimension_numbers<[1], [0], [0], [1], [0, 0, 1, 1], [], []>} : vector<256x128xbf16>, vector<128x128xbf16>, vector<256x128xf32> -> vector<256x128xf32>
    %85 = arith.addf %80, %84 : vector<256x128xf32>
    %86 = vector.extract_strided_slice %50 {offsets = [32, 0], sizes = [256, 128], strides = [1, 1]} : vector<288x128xbf16> to vector<256x128xbf16>
    %c7 = arith.constant 7 : index
    %c0_46 = arith.constant 0 : index
    %c0_47 = arith.constant 0 : index
    %87 = vector.load %arg8[%c7, %c0_46, %c0_47] : memref<9x128x128xbf16, #tpu.memory_space<vmem>>, vector<1x128x128xbf16>
    %88 = vector.shape_cast %87 : vector<1x128x128xbf16> to vector<128x128xbf16>
    %cst_48 = arith.constant dense<0.000000e+00> : vector<256x128xf32>
    %89 = tpu.matmul %86, %88, %cst_48 {dimension_numbers = #tpu.dot_dimension_numbers<[1], [0], [0], [1], [0, 0, 1, 1], [], []>} : vector<256x128xbf16>, vector<128x128xbf16>, vector<256x128xf32> -> vector<256x128xf32>
    %90 = arith.addf %85, %89 : vector<256x128xf32>
    %91 = vector.extract_strided_slice %51 {offsets = [32, 0], sizes = [256, 128], strides = [1, 1]} : vector<288x128xbf16> to vector<256x128xbf16>
    %c8 = arith.constant 8 : index
    %c0_49 = arith.constant 0 : index
    %c0_50 = arith.constant 0 : index
    %92 = vector.load %arg8[%c8, %c0_49, %c0_50] : memref<9x128x128xbf16, #tpu.memory_space<vmem>>, vector<1x128x128xbf16>
    %93 = vector.shape_cast %92 : vector<1x128x128xbf16> to vector<128x128xbf16>
    %cst_51 = arith.constant dense<0.000000e+00> : vector<256x128xf32>
    %94 = tpu.matmul %91, %93, %cst_51 {dimension_numbers = #tpu.dot_dimension_numbers<[1], [0], [0], [1], [0, 0, 1, 1], [], []>} : vector<256x128xbf16>, vector<128x128xbf16>, vector<256x128xf32> -> vector<256x128xf32>
    %95 = arith.addf %90, %94 : vector<256x128xf32>
    %c0_52 = arith.constant 0 : index
    %c0_53 = arith.constant 0 : index
    %96 = vector.load %arg9[%c0_52, %c0_53] : memref<1x128xf32, #tpu.memory_space<vmem>>, vector<1x128xf32>
    %97 = vector.broadcast %96 : vector<1x128xf32> to vector<256x128xf32>
    %98 = arith.mulf %95, %97 : vector<256x128xf32>
    %c0_54 = arith.constant 0 : index
    %c0_55 = arith.constant 0 : index
    %99 = vector.load %arg10[%c0_54, %c0_55] : memref<1x128xf32, #tpu.memory_space<vmem>>, vector<1x128xf32>
    %100 = vector.broadcast %99 : vector<1x128xf32> to vector<256x128xf32>
    %101 = arith.addf %98, %100 : vector<256x128xf32>
    %cst_56 = arith.constant 0.000000e+00 : f32
    %102 = vector.broadcast %cst_56 : f32 to vector<256x128xf32>
    %103 = arith.subf %102, %101 : vector<256x128xf32>
    %104 = math.exp %103 : vector<256x128xf32>
    %cst_57 = arith.constant 1.000000e+00 : f32
    %105 = vector.broadcast %cst_57 : f32 to vector<256x128xf32>
    %106 = arith.addf %105, %104 : vector<256x128xf32>
    %107 = tpu.reciprocal %106 {approx = true} : vector<256x128xf32> -> vector<256x128xf32>
    %108 = arith.mulf %101, %107 : vector<256x128xf32>
    %109 = vector.shape_cast %1 : vector<16x16x128xbf16> to vector<256x128xbf16>
    %110 = arith.extf %109 : vector<256x128xbf16> to vector<256x128xf32>
    %111 = arith.addf %108, %110 : vector<256x128xf32>
    %112 = vector.shape_cast %111 : vector<256x128xf32> to vector<1x16x16x128xf32>
    %113 = arith.truncf %112 : vector<1x16x16x128xf32> to vector<1x16x16x128xbf16>
    %c0_58 = arith.constant 0 : index
    %c0_59 = arith.constant 0 : index
    %c0_60 = arith.constant 0 : index
    %c0_61 = arith.constant 0 : index
    %114 = vector.load %arg11[%c0_58, %c0_59, %c0_60, %c0_61] : memref<1x16x16x128xbf16, #tpu.memory_space<vmem>>, vector<1x16x16x128xbf16>
    tpu.vector_store %arg11[%c0_58, %c0_59, %c0_60, %c0_61], %113 {strides = array<i32>} : memref<1x16x16x128xbf16, #tpu.memory_space<vmem>>, vector<1x16x16x128xbf16>,
    return
  }
  func.func @transform_0(%arg0: i32, %arg1: i32) -> (i32, i32, i32, i32) {
    %c0_i32 = arith.constant 0 : i32
    %c0_i32_0 = arith.constant 0 : i32
    %c0_i32_1 = arith.constant 0 : i32
    return %arg0, %arg1, %c0_i32, %c0_i32_0 : i32, i32, i32, i32
  }
  func.func @transform_1(%arg0: i32, %arg1: i32) -> (i32, i32, i32, i32) {
    %c16_i32 = arith.constant 16 : i32
    %0 = arith.muli %arg1, %c16_i32 : i32
    %c1_i32 = arith.constant 1 : i32
    %1 = arith.subi %0, %c1_i32 : i32
    %c0_i32 = arith.constant 0 : i32
    %2 = arith.maxsi %1, %c0_i32 : i32
    %c0_i32_0 = arith.constant 0 : i32
    %c0_i32_1 = arith.constant 0 : i32
    %c0_i32_2 = arith.constant 0 : i32
    return %arg0, %2, %c0_i32_0, %c0_i32_1 : i32, i32, i32, i32
  }
  func.func @transform_2(%arg0: i32, %arg1: i32) -> (i32, i32, i32, i32) {
    %c1_i32 = arith.constant 1 : i32
    %0 = arith.addi %arg1, %c1_i32 : i32
    %c16_i32 = arith.constant 16 : i32
    %1 = arith.muli %0, %c16_i32 : i32
    %c15_i32 = arith.constant 15 : i32
    %2 = arith.minsi %1, %c15_i32 : i32
    %c0_i32 = arith.constant 0 : i32
    %c0_i32_0 = arith.constant 0 : i32
    %c0_i32_1 = arith.constant 0 : i32
    return %arg0, %2, %c0_i32, %c0_i32_0 : i32, i32, i32, i32
  }
  func.func @transform_3(%arg0: i32, %arg1: i32) -> (i32, i32) {
    %c0_i32 = arith.constant 0 : i32
    %c0_i32_0 = arith.constant 0 : i32
    %c0_i32_1 = arith.constant 0 : i32
    return %c0_i32, %c0_i32_0 : i32, i32
  }
  func.func @transform_4(%arg0: i32, %arg1: i32) -> (i32, i32) {
    %c0_i32 = arith.constant 0 : i32
    %c0_i32_0 = arith.constant 0 : i32
    %c0_i32_1 = arith.constant 0 : i32
    return %c0_i32, %c0_i32_0 : i32, i32
  }
  func.func @transform_5(%arg0: i32, %arg1: i32) -> (i32, i32) {
    %c0_i32 = arith.constant 0 : i32
    %c0_i32_0 = arith.constant 0 : i32
    %c0_i32_1 = arith.constant 0 : i32
    return %c0_i32, %c0_i32_0 : i32, i32
  }
  func.func @transform_6(%arg0: i32, %arg1: i32) -> (i32, i32, i32) {
    %c0_i32 = arith.constant 0 : i32
    %c0_i32_0 = arith.constant 0 : i32
    %c0_i32_1 = arith.constant 0 : i32
    %c0_i32_2 = arith.constant 0 : i32
    return %c0_i32, %c0_i32_0, %c0_i32_1 : i32, i32, i32
  }
  func.func @transform_7(%arg0: i32, %arg1: i32) -> (i32, i32) {
    %c0_i32 = arith.constant 0 : i32
    %c0_i32_0 = arith.constant 0 : i32
    %c0_i32_1 = arith.constant 0 : i32
    return %c0_i32, %c0_i32_0 : i32, i32
  }
  func.func @transform_8(%arg0: i32, %arg1: i32) -> (i32, i32) {
    %c0_i32 = arith.constant 0 : i32
    %c0_i32_0 = arith.constant 0 : i32
    %c0_i32_1 = arith.constant 0 : i32
    return %c0_i32, %c0_i32_0 : i32, i32
  }
  func.func @transform_9(%arg0: i32, %arg1: i32) -> (i32, i32, i32, i32) {
    %c0_i32 = arith.constant 0 : i32
    %c0_i32_0 = arith.constant 0 : i32
    %c0_i32_1 = arith.constant 0 : i32
    return %arg0, %arg1, %c0_i32, %c0_i32_0 : i32, i32, i32, i32
  }
}

</mosaic_0001>

<llo_original>
// kernel: tpu_custom_call.1
$region0: #{tpu_custom_call.1}
  #allocation0 [shape = 'u32[]', space=smem, size = 0x4, offset = 0x4, fixed_abs, tag = 'smem constant byte address 0x4 - core index']
  #allocation1 [shape = 'u32[144,128]{1,0:T(1,128)}', space=vmem, size = 0x12000, scoped, tag = 'internal scratch']
  %s0 = inlined_call_operand.hbm [shape: bf16[2,16,16,128], index: 0, kind: input, shape index: {}]
  %s1 = inlined_call_operand.hbm [shape: bf16[2,16,16,128], index: 1, kind: input, shape index: {}]
  %s2 = inlined_call_operand.hbm [shape: bf16[2,16,16,128], index: 2, kind: input, shape index: {}]
  %s3 = inlined_call_operand.hbm [shape: bf16[128,128], index: 3, kind: input, shape index: {}]
  %s4 = inlined_call_operand.vmem [shape: f32[1,128], index: 4, kind: input, shape index: {}]
  %s5 = inlined_call_operand.vmem [shape: f32[1,128], index: 5, kind: input, shape index: {}]
  %s6 = inlined_call_operand.hbm [shape: bf16[9,128,128], index: 6, kind: input, shape index: {}]
  %s7 = inlined_call_operand.vmem [shape: f32[1,128], index: 7, kind: input, shape index: {}]
  %s8 = inlined_call_operand.vmem [shape: f32[1,128], index: 8, kind: input, shape index: {}]
  %s9 = inlined_call_operand.hbm [shape: bf16[2,16,16,128], index: 9, kind: output, shape index: {}]
  %s10 = sld [smem:[#allocation0]]
  $region89: #{tpu_custom_call.1} parent=0
    _
  %s12 = ssub.s32 1, %s10
  %s13 = scalar_select 0, %s12, %s10
  $region1: #{tpu_custom_call.1} parent=0
    #allocation2 [shape = 'u8[131072]{0}', space=vmem, size = 0x20000, scoped, tag = 'input window, operand 0']
    #allocation3 [shape = 's32[2]{0}', space=sflag, size = 0x8, scoped, tag = 'scoped memory for tpu_custom_call.1']
    #allocation4 [shape = 's32[2]{0}', space=sflag, size = 0x8, scoped, tag = 'scoped memory for tpu_custom_call.1']
    #allocation5 [shape = 'u8[8192]{0}', space=vmem, size = 0x2000, scoped, tag = 'input window, operand 1']
    #allocation6 [shape = 's32[2]{0}', space=sflag, size = 0x8, scoped, tag = 'scoped memory for tpu_custom_call.1']
    #allocation7 [shape = 'u8[8192]{0}', space=vmem, size = 0x2000, scoped, tag = 'input window, operand 2']
    #allocation8 [shape = 'u8[32768]{0}', space=vmem, size = 0x8000, scoped, tag = 'input window, operand 3, single buffered']
    #allocation9 [shape = 's32[1]{0}', space=sflag, size = 0x4, scoped, tag = 'scoped memory for tpu_custom_call.1']
    #allocation10 [shape = 'u8[294912]{0}', space=vmem, size = 0x48000, scoped, tag = 'input window, operand 6, single buffered']
    #allocation11 [shape = 'u8[131072]{0}', space=vmem, size = 0x20000, scoped, tag = 'output window, operand 0']
    %14 = vsyncpa [#allocation3], 0
    %s15 = scalar_lea.sflag [#allocation3], 1
    %16 = vsyncpa %s15, 0
    %17 = vsyncpa [#allocation6], 0
    %s18 = scalar_lea.sflag [#allocation6], 1
    %19 = vsyncpa %s18, 0
    %20 = vsyncpa [#allocation9], 0
    %21 = vsyncpa [#allocation4], 0
    %s22 = scalar_lea.sflag [#allocation4], 1
    %23 = vsyncpa %s22, 0
    loop: start=0, step=1, limit=4
    $region2: #{tpu_custom_call.1} parent=1 // loop_pre_header
      _
    $region3: #{tpu_custom_call.1} parent=1 // loop_header
      %s25 = sphi 0, %s29
      %p26 = scmp.ge.s32.totalorder %s25, 4
      %s32 = sphi 0, %s44
      %s33 = sphi 0, %s40
      %s34 = sphi 0, %s32
      %s35 = sphi 0, %s33
      %s36 = sphi 0, %s34
      %s37 = sphi 0, %s35
      %s49 = sphi 0, %s51
      %s52 = sphi 0, %s49
      %s53 = sphi 0, %s52
      %s69 = sphi 0, %s53
      %s85 = sphi 0, %s87
      %s88 = sphi 0, %s85
      %s89 = sphi 0, %s88
      %s105 = sphi 0, %s89
      %s121 = sphi 0, %s123
      %s124 = sphi 0, %s121
      %s125 = sphi 0, %s124
      %s141 = sphi 0, %s125
      %s145 = sphi 0, %s145
      %s147 = sphi 0, %s145
      %s148 = sphi 0, %s147
      %s162 = sphi 0, %s148
      %s166 = sphi 0, %s166
      %s168 = sphi 0, %s166
      %s169 = sphi 0, %s168
      %s183 = sphi 0, %s169
      %s187 = sphi 0, %s187
      %s189 = sphi 0, %s187
      %s190 = sphi 0, %s189
      %s204 = sphi 0, %s190
      %s208 = sphi 0, %s208
      %s210 = sphi 0, %s208
      %s211 = sphi 0, %s210
      %s225 = sphi 0, %s211
      %s229 = sphi 0, %s229
      %s231 = sphi 0, %s229
      %s232 = sphi 0, %s231
      %s246 = sphi 0, %s232
      %s250 = sphi 0, %s250
      %s252 = sphi 0, %s250
      %s253 = sphi 0, %s252
      %s267 = sphi 0, %s253
      %s275 = sphi 0, %s277
      %s278 = sphi 0, %s275
      %s279 = sphi 0, %s278
      %s295 = sphi 0, %s279
    $region4: #{tpu_custom_call.1} parent=1 // loop_header_branch
      %28 = sbr.rel (%p26) target = $region8
    $region5: #{tpu_custom_call.1} parent=1 // loop_body
      %s30 = ssub.s32 %s25, 1
      %s31 = ssub.s32 %s25, 2
      %s38 = sadd.s32 1, %s33
      %p39 = scmp.ge.s32.totalorder %s38, 1
      %s40 = scalar_select %p39, 0, %s38
      %s41 = sadd.s32 1, %s32
      %s42 = scalar_select %p39, %s41, %s32
      %p43 = scmp.ge.s32.totalorder %s42, 2
      %s44 = scalar_select %p43, 0, %s42
      %s45 = ssub.s32 %s32, %s44
      %s46 = ssub.s32 %s33, %s40
      %s47 = sor.u32 %s45, %s46
      %p48 = scmp.eq.s32.totalorder %s47, 0
      %s50 = sadd.s32 %s49, 1
      %s51 = scalar_select %p48, %s49, %s50
      %p54 = pneg %p48
      %p55 = scmp.eq.s32.totalorder %s25, 1
      %p56 = por %p54, %p55
      %p57 = scmp.ne.s32.totalorder %s49, %s52
      %p58 = scmp.eq.s32.totalorder %s25, 0
      %p59 = por %p57, %p58
      %p60 = scmp.ne.s32.totalorder %s49, %s52
      %p61 = scmp.eq.s32.totalorder %s30, 1
      %p62 = por %p60, %p61
      %p63 = scmp.ne.s32.totalorder %s52, %s53
      %p64 = scmp.eq.s32.totalorder %s30, 0
      %p65 = por %p63, %p64
      %p66 = scmp.ne.s32.totalorder %s52, %s53
      %p67 = scmp.eq.s32.totalorder %s31, 1
      %p68 = por %p66, %p67
      %p70 = scmp.ne.s32.totalorder %s53, %s69
      %p71 = scmp.eq.s32.totalorder %s31, 0
      %p72 = por %p70, %p71
      %s73 = smul.u32 %s33, 16
      %s74 = ssub.s32 %s73, 1
      %p75 = scmp.gt.s32.totalorder %s74, 0
      %s76 = scalar_select %p75, %s74, 0
      %s77 = smul.u32 %s40, 16
      %s78 = ssub.s32 %s77, 1
      %p79 = scmp.gt.s32.totalorder %s78, 0
      %s80 = scalar_select %p79, %s78, 0
      %s81 = ssub.s32 %s32, %s44
      %s82 = ssub.s32 %s76, %s80
      %s83 = sor.u32 %s81, %s82
      %p84 = scmp.eq.s32.totalorder %s83, 0
      %s86 = sadd.s32 %s85, 1
      %s87 = scalar_select %p84, %s85, %s86
      %p90 = pneg %p84
      %p91 = scmp.eq.s32.totalorder %s25, 1
      %p92 = por %p90, %p91
      %p93 = scmp.ne.s32.totalorder %s85, %s88
      %p94 = scmp.eq.s32.totalorder %s25, 0
      %p95 = por %p93, %p94
      %p96 = scmp.ne.s32.totalorder %s85, %s88
      %p97 = scmp.eq.s32.totalorder %s30, 1
      %p98 = por %p96, %p97
      %p99 = scmp.ne.s32.totalorder %s88, %s89
      %p100 = scmp.eq.s32.totalorder %s30, 0
      %p101 = por %p99, %p100
      %p102 = scmp.ne.s32.totalorder %s88, %s89
      %p103 = scmp.eq.s32.totalorder %s31, 1
      %p104 = por %p102, %p103
      %p106 = scmp.ne.s32.totalorder %s89, %s105
      %p107 = scmp.eq.s32.totalorder %s31, 0
      %p108 = por %p106, %p107
      %s109 = sadd.s32 %s33, 1
      %s110 = smul.u32 %s109, 16
      %p111 = scmp.lt.s32.totalorder %s110, 15
      %s112 = scalar_select %p111, %s110, 15
      %s113 = sadd.s32 %s40, 1
      %s114 = smul.u32 %s113, 16
      %p115 = scmp.lt.s32.totalorder %s114, 15
      %s116 = scalar_select %p115, %s114, 15
      %s117 = ssub.s32 %s32, %s44
      %s118 = ssub.s32 %s112, %s116
      %s119 = sor.u32 %s117, %s118
      %p120 = scmp.eq.s32.totalorder %s119, 0
      %s122 = sadd.s32 %s121, 1
      %s123 = scalar_select %p120, %s121, %s122
      %p126 = pneg %p120
      %p127 = scmp.eq.s32.totalorder %s25, 1
      %p128 = por %p126, %p127
      %p129 = scmp.ne.s32.totalorder %s121, %s124
      %p130 = scmp.eq.s32.totalorder %s25, 0
      %p131 = por %p129, %p130
      %p132 = scmp.ne.s32.totalorder %s121, %s124
      %p133 = scmp.eq.s32.totalorder %s30, 1
      %p134 = por %p132, %p133
      %p135 = scmp.ne.s32.totalorder %s124, %s125
      %p136 = scmp.eq.s32.totalorder %s30, 0
      %p137 = por %p135, %p136
      %p138 = scmp.ne.s32.totalorder %s124, %s125
      %p139 = scmp.eq.s32.totalorder %s31, 1
      %p140 = por %p138, %p139
      %p142 = scmp.ne.s32.totalorder %s125, %s141
      %p143 = scmp.eq.s32.totalorder %s31, 0
      %p144 = por %p142, %p143
      %s146 = sadd.s32 %s145, 1
      %p149 = scmp.eq.s32.totalorder %s25, 1
      %p150 = scmp.ne.s32.totalorder %s145, %s147
      %p151 = scmp.eq.s32.totalorder %s25, 0
      %p152 = por %p150, %p151
      %p153 = scmp.ne.s32.totalorder %s145, %s147
      %p154 = scmp.eq.s32.totalorder %s30, 1
      %p155 = por %p153, %p154
      %p156 = scmp.ne.s32.totalorder %s147, %s148
      %p157 = scmp.eq.s32.totalorder %s30, 0
      %p158 = por %p156, %p157
      %p159 = scmp.ne.s32.totalorder %s147, %s148
      %p160 = scmp.eq.s32.totalorder %s31, 1
      %p161 = por %p159, %p160
      %p163 = scmp.ne.s32.totalorder %s148, %s162
      %p164 = scmp.eq.s32.totalorder %s31, 0
      %p165 = por %p163, %p164
      %s167 = sadd.s32 %s166, 1
      %p170 = scmp.eq.s32.totalorder %s25, 1
      %p171 = scmp.ne.s32.totalorder %s166, %s168
      %p172 = scmp.eq.s32.totalorder %s25, 0
      %p173 = por %p171, %p172
      %p174 = scmp.ne.s32.totalorder %s166, %s168
      %p175 = scmp.eq.s32.totalorder %s30, 1
      %p176 = por %p174, %p175
      %p177 = scmp.ne.s32.totalorder %s168, %s169
      %p178 = scmp.eq.s32.totalorder %s30, 0
      %p179 = por %p177, %p178
      %p180 = scmp.ne.s32.totalorder %s168, %s169
      %p181 = scmp.eq.s32.totalorder %s31, 1
      %p182 = por %p180, %p181
      %p184 = scmp.ne.s32.totalorder %s169, %s183
      %p185 = scmp.eq.s32.totalorder %s31, 0
      %p186 = por %p184, %p185
      %s188 = sadd.s32 %s187, 1
      %p191 = scmp.eq.s32.totalorder %s25, 1
      %p192 = scmp.ne.s32.totalorder %s187, %s189
      %p193 = scmp.eq.s32.totalorder %s25, 0
      %p194 = por %p192, %p193
      %p195 = scmp.ne.s32.totalorder %s187, %s189
      %p196 = scmp.eq.s32.totalorder %s30, 1
      %p197 = por %p195, %p196
      %p198 = scmp.ne.s32.totalorder %s189, %s190
      %p199 = scmp.eq.s32.totalorder %s30, 0
      %p200 = por %p198, %p199
      %p201 = scmp.ne.s32.totalorder %s189, %s190
      %p202 = scmp.eq.s32.totalorder %s31, 1
      %p203 = por %p201, %p202
      %p205 = scmp.ne.s32.totalorder %s190, %s204
      %p206 = scmp.eq.s32.totalorder %s31, 0
      %p207 = por %p205, %p206
      %s209 = sadd.s32 %s208, 1
      %p212 = scmp.eq.s32.totalorder %s25, 1
      %p213 = scmp.ne.s32.totalorder %s208, %s210
      %p214 = scmp.eq.s32.totalorder %s25, 0
      %p215 = por %p213, %p214
      %p216 = scmp.ne.s32.totalorder %s208, %s210
      %p217 = scmp.eq.s32.totalorder %s30, 1
      %p218 = por %p216, %p217
      %p219 = scmp.ne.s32.totalorder %s210, %s211
      %p220 = scmp.eq.s32.totalorder %s30, 0
      %p221 = por %p219, %p220
      %p222 = scmp.ne.s32.totalorder %s210, %s211
      %p223 = scmp.eq.s32.totalorder %s31, 1
      %p224 = por %p222, %p223
      %p226 = scmp.ne.s32.totalorder %s211, %s225
      %p227 = scmp.eq.s32.totalorder %s31, 0
      %p228 = por %p226, %p227
      %s230 = sadd.s32 %s229, 1
      %p233 = scmp.eq.s32.totalorder %s25, 1
      %p234 = scmp.ne.s32.totalorder %s229, %s231
      %p235 = scmp.eq.s32.totalorder %s25, 0
      %p236 = por %p234, %p235
      %p237 = scmp.ne.s32.totalorder %s229, %s231
      %p238 = scmp.eq.s32.totalorder %s30, 1
      %p239 = por %p237, %p238
      %p240 = scmp.ne.s32.totalorder %s231, %s232
      %p241 = scmp.eq.s32.totalorder %s30, 0
      %p242 = por %p240, %p241
      %p243 = scmp.ne.s32.totalorder %s231, %s232
      %p244 = scmp.eq.s32.totalorder %s31, 1
      %p245 = por %p243, %p244
      %p247 = scmp.ne.s32.totalorder %s232, %s246
      %p248 = scmp.eq.s32.totalorder %s31, 0
      %p249 = por %p247, %p248
      %s251 = sadd.s32 %s250, 1
      %p254 = scmp.eq.s32.totalorder %s25, 1
      %p255 = scmp.ne.s32.totalorder %s250, %s252
      %p256 = scmp.eq.s32.totalorder %s25, 0
      %p257 = por %p255, %p256
      %p258 = scmp.ne.s32.totalorder %s250, %s252
      %p259 = scmp.eq.s32.totalorder %s30, 1
      %p260 = por %p258, %p259
      %p261 = scmp.ne.s32.totalorder %s252, %s253
      %p262 = scmp.eq.s32.totalorder %s30, 0
      %p263 = por %p261, %p262
      %p264 = scmp.ne.s32.totalorder %s252, %s253
      %p265 = scmp.eq.s32.totalorder %s31, 1
      %p266 = por %p264, %p265
      %p268 = scmp.ne.s32.totalorder %s253, %s267
      %p269 = scmp.eq.s32.totalorder %s31, 0
      %p270 = por %p268, %p269
      %s271 = ssub.s32 %s32, %s44
      %s272 = ssub.s32 %s33, %s40
      %s273 = sor.u32 %s271, %s272
      %p274 = scmp.eq.s32.totalorder %s273, 0
      %s276 = sadd.s32 %s275, 1
      %s277 = scalar_select %p274, %s275, %s276
      %p280 = pneg %p274
      %p281 = scmp.eq.s32.totalorder %s25, 1
      %p282 = por %p280, %p281
      %p283 = scmp.ne.s32.totalorder %s275, %s278
      %p284 = scmp.eq.s32.totalorder %s25, 0
      %p285 = por %p283, %p284
      %p286 = scmp.ne.s32.totalorder %s275, %s278
      %p287 = scmp.eq.s32.totalorder %s30, 1
      %p288 = por %p286, %p287
      %p289 = scmp.ne.s32.totalorder %s278, %s279
      %p290 = scmp.eq.s32.totalorder %s30, 0
      %p291 = por %p289, %p290
      %p292 = scmp.ne.s32.totalorder %s278, %s279
      %p293 = scmp.eq.s32.totalorder %s31, 1
      %p294 = por %p292, %p293
      %p296 = scmp.ne.s32.totalorder %s279, %s295
      %p297 = scmp.eq.s32.totalorder %s31, 0
      %p298 = por %p296, %p297
      %p299 = scmp.le.s32.totalorder 1, %s25
      %p300 = scmp.lt.s32.totalorder %s25, 3
      %p301 = pnand %p299, %p300
      %p302 = pneg %p301
      // Predicated region
      $region9: #{tpu_custom_call.1} parent=5 // pred_check
        _
      $region10: #{tpu_custom_call.1} parent=5 // pred_check_branch
        %304 = sbr.rel (%p301) target = $region12
      $region11: #{tpu_custom_call.1} parent=5 // pred_region
        %s305 = ssub.s32 %s25, 1
        // Predicated region
        $region13: #{tpu_custom_call.1} parent=11 // pred_check
          %p306 = pneg %p158
        $region14: #{tpu_custom_call.1} parent=11 // pred_check_branch
          %308 = sbr.rel (%p306) target = $region16
        $region15: #{tpu_custom_call.1} parent=11 // pred_region
          %s310 = ssub.s32 1024, 1024
          %311 = vsyncadd [#allocation9], %s310
          %s312 = sshll.u32 [#allocation8], 4
          %s313 = int_to_ptr.vmem [resolvable:$true] %s312
          %318 = dma.hbm_to_vmem [thread:$0]  %s3, 1024, %s313, [#allocation9], 64, 64, 4
        $region16: #{tpu_custom_call.1} parent=11 // pred_fallthru
          _
        // Predicated region
        $region17: #{tpu_custom_call.1} parent=11 // pred_check
          %p319 = pneg %p179
        $region18: #{tpu_custom_call.1} parent=11 // pred_check_branch
          %321 = sbr.rel (%p319) target = $region20
        $region19: #{tpu_custom_call.1} parent=11 // pred_region
          _
        $region20: #{tpu_custom_call.1} parent=11 // pred_fallthru
          _
        // Predicated region
        $region21: #{tpu_custom_call.1} parent=11 // pred_check
          %p322 = pneg %p200
        $region22: #{tpu_custom_call.1} parent=11 // pred_check_branch
          %324 = sbr.rel (%p322) target = $region24
        $region23: #{tpu_custom_call.1} parent=11 // pred_region
          _
        $region24: #{tpu_custom_call.1} parent=11 // pred_fallthru
          _
        // Predicated region
        $region25: #{tpu_custom_call.1} parent=11 // pred_check
          %p325 = pneg %p221
        $region26: #{tpu_custom_call.1} parent=11 // pred_check_branch
          %327 = sbr.rel (%p325) target = $region28
        $region27: #{tpu_custom_call.1} parent=11 // pred_region
          %s329 = ssub.s32 9216, 9216
          %330 = vsyncadd [#allocation9], %s329
          %s331 = sshll.u32 [#allocation10], 4
          %s332 = int_to_ptr.vmem [resolvable:$true] %s331
          %337 = dma.hbm_to_vmem [thread:$0]  %s6, 9216, %s332, [#allocation9], 64, 64, 4
        $region28: #{tpu_custom_call.1} parent=11 // pred_fallthru
          _
        // Predicated region
        $region29: #{tpu_custom_call.1} parent=11 // pred_check
          %p338 = pneg %p242
        $region30: #{tpu_custom_call.1} parent=11 // pred_check_branch
          %340 = sbr.rel (%p338) target = $region32
        $region31: #{tpu_custom_call.1} parent=11 // pred_region
          _
        $region32: #{tpu_custom_call.1} parent=11 // pred_fallthru
          _
        // Predicated region
        $region33: #{tpu_custom_call.1} parent=11 // pred_check
          %p341 = pneg %p263
        $region34: #{tpu_custom_call.1} parent=11 // pred_check_branch
          %343 = sbr.rel (%p341) target = $region36
        $region35: #{tpu_custom_call.1} parent=11 // pred_region
          _
        $region36: #{tpu_custom_call.1} parent=11 // pred_fallthru
          _
      $region12: #{tpu_custom_call.1} parent=5 // pred_fallthru
        _
      %p344 = scmp.lt.s32.totalorder %s25, 2
      // Predicated region
      $region37: #{tpu_custom_call.1} parent=5 // pred_check
        %p345 = pneg %p344
      $region38: #{tpu_custom_call.1} parent=5 // pred_check_branch
        %347 = sbr.rel (%p345) target = $region40
      $region39: #{tpu_custom_call.1} parent=5 // pred_region
        // Predicated region
        $region41: #{tpu_custom_call.1} parent=39 // pred_check
          %p348 = pneg %p59
        $region42: #{tpu_custom_call.1} parent=39 // pred_check_branch
          %350 = sbr.rel (%p348) target = $region44
        $region43: #{tpu_custom_call.1} parent=39 // pred_region
          %s351 = sand.u32 %s49, 1
          %s352 = scalar_lea.sflag [#allocation3], %s351
          %s353 = sand.u32 %s49, 1
          %s354 = smul.addr %s353, 128
          %s355 = scalar_lea.vmem [#allocation2], %s354
          %s356 = smul.u32 16, %s33
          %s358 = ssub.s32 2048, 2048
          %359 = vsyncadd %s352, %s358
          %s360 = smul.addr %s356, 2
          %s361 = smul.addr %s32, 32
          %s362 = sadd.s32 %s360, %s361
          %s363 = smul.addr %s362, 64
          %s364 = scalar_lea.hbm %s0, %s363
          %s365 = sshll.u32 %s355, 4
          %s366 = int_to_ptr.vmem [resolvable:$true] %s365
          %371 = dma.hbm_to_vmem [thread:$0]  %s364, 2048, %s366, %s352, 64, 64, 4
        $region44: #{tpu_custom_call.1} parent=39 // pred_fallthru
          _
        // Predicated region
        $region45: #{tpu_custom_call.1} parent=39 // pred_check
          %p372 = pneg %p95
        $region46: #{tpu_custom_call.1} parent=39 // pred_check_branch
          %374 = sbr.rel (%p372) target = $region48
        $region47: #{tpu_custom_call.1} parent=39 // pred_region
          %s375 = sand.u32 %s25, 1
          %s376 = scalar_lea.sflag [#allocation6], %s375
          %s377 = sand.u32 %s85, 1
          %s378 = smul.addr %s377, 8
          %s379 = scalar_lea.vmem [#allocation5], %s378
          %s380 = smul.u32 %s33, 16
          %s381 = ssub.s32 %s380, 1
          %p382 = scmp.gt.s32.totalorder %s381, 0
          %s383 = scalar_select %p382, %s381, 0
          %s385 = ssub.s32 128, 128
          %386 = vsyncadd %s376, %s385
          %s387 = smul.addr %s383, 2
          %s388 = smul.addr %s32, 32
          %s389 = sadd.s32 %s387, %s388
          %s390 = smul.addr %s389, 64
          %s391 = scalar_lea.hbm %s1, %s390
          %s392 = sshll.u32 %s379, 4
          %s393 = int_to_ptr.vmem [resolvable:$true] %s392
          %398 = dma.hbm_to_vmem [thread:$0]  %s391, 128, %s393, %s376, 64, 64, 4
        $region48: #{tpu_custom_call.1} parent=39 // pred_fallthru
          _
        // Predicated region
        $region49: #{tpu_custom_call.1} parent=39 // pred_check
          %p399 = pneg %p131
        $region50: #{tpu_custom_call.1} parent=39 // pred_check_branch
          %401 = sbr.rel (%p399) target = $region52
        $region51: #{tpu_custom_call.1} parent=39 // pred_region
          %s402 = sand.u32 %s25, 1
          %s403 = scalar_lea.sflag [#allocation6], %s402
          %s404 = sand.u32 %s121, 1
          %s405 = smul.addr %s404, 8
          %s406 = scalar_lea.vmem [#allocation7], %s405
          %s407 = sadd.s32 %s33, 1
          %s408 = smul.u32 %s407, 16
          %p409 = scmp.lt.s32.totalorder %s408, 15
          %s410 = scalar_select %p409, %s408, 15
          %s412 = ssub.s32 128, 128
          %413 = vsyncadd %s403, %s412
          %s414 = smul.addr %s410, 2
          %s415 = smul.addr %s32, 32
          %s416 = sadd.s32 %s414, %s415
          %s417 = smul.addr %s416, 64
          %s418 = scalar_lea.hbm %s2, %s417
          %s419 = sshll.u32 %s406, 4
          %s420 = int_to_ptr.vmem [resolvable:$true] %s419
          %425 = dma.hbm_to_vmem [thread:$0]  %s418, 128, %s420, %s403, 64, 64, 4
        $region52: #{tpu_custom_call.1} parent=39 // pred_fallthru
          _
      $region40: #{tpu_custom_call.1} parent=5 // pred_fallthru
        _
      %p426 = scmp.le.s32.totalorder 1, %s25
      %p427 = scmp.lt.s32.totalorder %s25, 3
      %p428 = pnand %p426, %p427
      %p429 = pneg %p428
      // Predicated region
      $region53: #{tpu_custom_call.1} parent=5 // pred_check
        _
      $region54: #{tpu_custom_call.1} parent=5 // pred_check_branch
        %431 = sbr.rel (%p428) target = $region56
      $region55: #{tpu_custom_call.1} parent=5 // pred_region
        %s432 = ssub.s32 %s25, 1
        %s433 = sand.u32 %s52, 1
        %s434 = scalar_lea.sflag [#allocation3], %s433
        %s435 = sand.u32 %s52, 1
        %s436 = smul.addr %s435, 128
        %s437 = scalar_lea.vmem [#allocation2], %s436
        // Predicated region
        $region57: #{tpu_custom_call.1} parent=55 // pred_check
          %p438 = pneg %p65
        $region58: #{tpu_custom_call.1} parent=55 // pred_check_branch
          %440 = sbr.rel (%p438) target = $region60
        $region59: #{tpu_custom_call.1} parent=55 // pred_region
          %441 = dma.done %s434, 2048
        $region60: #{tpu_custom_call.1} parent=55 // pred_fallthru
          _
        %s442 = sand.u32 %s30, 1
        %s443 = scalar_lea.sflag [#allocation6], %s442
        %s444 = sand.u32 %s88, 1
        %s445 = smul.addr %s444, 8
        %s446 = scalar_lea.vmem [#allocation5], %s445
        // Predicated region
        $region61: #{tpu_custom_call.1} parent=55 // pred_check
          %p447 = pneg %p101
        $region62: #{tpu_custom_call.1} parent=55 // pred_check_branch
          %449 = sbr.rel (%p447) target = $region64
        $region63: #{tpu_custom_call.1} parent=55 // pred_region
          %450 = dma.done %s443, 128
        $region64: #{tpu_custom_call.1} parent=55 // pred_fallthru
          _
        %s451 = sand.u32 %s30, 1
        %s452 = scalar_lea.sflag [#allocation6], %s451
        %s453 = sand.u32 %s124, 1
        %s454 = smul.addr %s453, 8
        %s455 = scalar_lea.vmem [#allocation7], %s454
        // Predicated region
        $region65: #{tpu_custom_call.1} parent=55 // pred_check
          %p456 = pneg %p137
        $region66: #{tpu_custom_call.1} parent=55 // pred_check_branch
          %458 = sbr.rel (%p456) target = $region68
        $region67: #{tpu_custom_call.1} parent=55 // pred_region
          %459 = dma.done %s452, 128
        $region68: #{tpu_custom_call.1} parent=55 // pred_fallthru
          _
        // Predicated region
        $region69: #{tpu_custom_call.1} parent=55 // pred_check
          %p460 = pneg %p158
        $region70: #{tpu_custom_call.1} parent=55 // pred_check_branch
          %462 = sbr.rel (%p460) target = $region72
        $region71: #{tpu_custom_call.1} parent=55 // pred_region
          %463 = dma.done [#allocation9], 1024
        $region72: #{tpu_custom_call.1} parent=55 // pred_fallthru
          _
        // Predicated region
        $region73: #{tpu_custom_call.1} parent=55 // pred_check
          %p464 = pneg %p221
        $region74: #{tpu_custom_call.1} parent=55 // pred_check_branch
          %466 = sbr.rel (%p464) target = $region76
        $region75: #{tpu_custom_call.1} parent=55 // pred_region
          %467 = dma.done [#allocation9], 9216
        $region76: #{tpu_custom_call.1} parent=55 // pred_fallthru
          _
        %s468 = sand.u32 %s52, 1
        %s469 = scalar_lea.sflag [#allocation3], %s468
        %s470 = sand.u32 %s52, 1
        %s471 = smul.addr %s470, 128
        %s472 = scalar_lea.vmem [#allocation2], %s471
        %p473 = pneg %p65
        %p474 = pneg %p62
        %s475 = sand.u32 %s30, 1
        %s476 = scalar_lea.sflag [#allocation6], %s475
        %s477 = sand.u32 %s88, 1
        %s478 = smul.addr %s477, 8
        %s479 = scalar_lea.vmem [#allocation5], %s478
        %p480 = pneg %p101
        %p481 = pneg %p98
        %s482 = sand.u32 %s30, 1
        %s483 = scalar_lea.sflag [#allocation6], %s482
        %s484 = sand.u32 %s124, 1
        %s485 = smul.addr %s484, 8
        %s486 = scalar_lea.vmem [#allocation7], %s485
        %p487 = pneg %p137
        %p488 = pneg %p134
        %p489 = pneg %p158
        %p490 = pneg %p155
        %p491 = pneg %p179
        %p492 = pneg %p176
        %p493 = pneg %p200
        %p494 = pneg %p197
        %p495 = pneg %p221
        %p496 = pneg %p218
        %p497 = pneg %p242
        %p498 = pneg %p239
        %p499 = pneg %p263
        %p500 = pneg %p260
        %p501 = pneg %p291
        %p502 = pneg %p288
        %s503 = sand.u32 %s278, 1
        %s504 = scalar_lea.sflag [#allocation4], %s503
        %s505 = sand.u32 %s278, 1
        %s506 = smul.addr %s505, 128
        %s507 = scalar_lea.vmem [#allocation11], %s506
        %s508 = smul.u32 16, %s35
        %s509 = smul.u32 %s35, 16
        %s510 = ssub.s32 %s509, 1
        %p511 = scmp.gt.s32.totalorder %s510, 0
        %s512 = scalar_select %p511, %s510, 0
        %s513 = sadd.s32 %s35, 1
        %s514 = smul.u32 %s513, 16
        %p515 = scmp.lt.s32.totalorder %s514, 15
        %s516 = scalar_select %p515, %s514, 15
        %s517 = smul.u32 16, %s35
        %v519 = vld [vmem:[%s437] sm:$0xf]
        %v520 = vld [vmem:[%s437 + $0x4] sm:$0xf]
        %v521 = vld [vmem:[%s437 + $0x8] sm:$0xf]
        %v522 = vld [vmem:[%s437 + $0xc] sm:$0xf]
        %v523 = vld [vmem:[%s437 + $0x10] sm:$0xf]
        %v524 = vld [vmem:[%s437 + $0x14] sm:$0xf]
        %v525 = vld [vmem:[%s437 + $0x18] sm:$0xf]
        %v526 = vld [vmem:[%s437 + $0x1c] sm:$0xf]
        %v527 = vld [vmem:[%s437 + $0x20] sm:$0xf]
        %v528 = vld [vmem:[%s437 + $0x24] sm:$0xf]
        %v529 = vld [vmem:[%s437 + $0x28] sm:$0xf]
        %v530 = vld [vmem:[%s437 + $0x2c] sm:$0xf]
        %v531 = vld [vmem:[%s437 + $0x30] sm:$0xf]
        %v532 = vld [vmem:[%s437 + $0x34] sm:$0xf]
        %v533 = vld [vmem:[%s437 + $0x38] sm:$0xf]
        %v534 = vld [vmem:[%s437 + $0x3c] sm:$0xf]
        %v535 = vld [vmem:[%s437 + $0x40] sm:$0xf]
        %v536 = vld [vmem:[%s437 + $0x44] sm:$0xf]
        %v537 = vld [vmem:[%s437 + $0x48] sm:$0xf]
        %v538 = vld [vmem:[%s437 + $0x4c] sm:$0xf]
        %v539 = vld [vmem:[%s437 + $0x50] sm:$0xf]
        %v540 = vld [vmem:[%s437 + $0x54] sm:$0xf]
        %v541 = vld [vmem:[%s437 + $0x58] sm:$0xf]
        %v542 = vld [vmem:[%s437 + $0x5c] sm:$0xf]
        %v543 = vld [vmem:[%s437 + $0x60] sm:$0xf]
        %v544 = vld [vmem:[%s437 + $0x64] sm:$0xf]
        %v545 = vld [vmem:[%s437 + $0x68] sm:$0xf]
        %v546 = vld [vmem:[%s437 + $0x6c] sm:$0xf]
        %v547 = vld [vmem:[%s437 + $0x70] sm:$0xf]
        %v548 = vld [vmem:[%s437 + $0x74] sm:$0xf]
        %v549 = vld [vmem:[%s437 + $0x78] sm:$0xf]
        %v550 = vld [vmem:[%s437 + $0x7c] sm:$0xf]
        %v551 = vld [vmem:[%s446] sm:$0xf]
        %v552 = vld [vmem:[%s446 + $0x4] sm:$0xf]
        %v553 = vld [vmem:[%s455] sm:$0xf]
        %v554 = vld [vmem:[%s455 + $0x4] sm:$0xf]
        %v555 = vld [vmem:[#allocation8] sm:$0xf]
        %v556 = vld [vmem:[#allocation8 + $0x4] sm:$0xf]
        %v557 = vld [vmem:[#allocation8 + $0x8] sm:$0xf]
        %v558 = vld [vmem:[#allocation8 + $0xc] sm:$0xf]
        %v559 = vld [vmem:[#allocation8 + $0x10] sm:$0xf]
        %v560 = vld [vmem:[#allocation8 + $0x14] sm:$0xf]
        %v561 = vld [vmem:[#allocation8 + $0x18] sm:$0xf]
        %v562 = vld [vmem:[#allocation8 + $0x1c] sm:$0xf]
        %v563 = vld [vmem:[#allocation8 + $0x20] sm:$0xf]
        %v564 = vld [vmem:[#allocation8 + $0x24] sm:$0xf]
        %v565 = vld [vmem:[#allocation8 + $0x28] sm:$0xf]
        %v566 = vld [vmem:[#allocation8 + $0x2c] sm:$0xf]
        %v567 = vld [vmem:[#allocation8 + $0x30] sm:$0xf]
        %v568 = vld [vmem:[#allocation8 + $0x34] sm:$0xf]
        %v569 = vld [vmem:[#allocation8 + $0x38] sm:$0xf]
        %v570 = vld [vmem:[#allocation8 + $0x3c] sm:$0xf]
        %v607 = vunpack.c.l.b16 %v551
        %v608 = vunpack.c.l.b16 %v552
        %v609 = vunpack.c.l.b16 %v519
        %v610 = vunpack.c.l.b16 %v520
        %v611 = vunpack.c.l.b16 %v521
        %v612 = vunpack.c.l.b16 %v522
        %v613 = vunpack.c.l.b16 %v523
        %v614 = vunpack.c.l.b16 %v524
        %v615 = vunpack.c.l.b16 %v525
        %v616 = vunpack.c.l.b16 %v526
        %v617 = vunpack.c.l.b16 %v527
        %v618 = vunpack.c.l.b16 %v528
        %v619 = vunpack.c.l.b16 %v529
        %v620 = vunpack.c.l.b16 %v530
        %v621 = vunpack.c.l.b16 %v531
        %v622 = vunpack.c.l.b16 %v532
        %v623 = vunpack.c.l.b16 %v533
        %v624 = vunpack.c.l.b16 %v534
        %v625 = vunpack.c.l.b16 %v535
        %v626 = vunpack.c.l.b16 %v536
        %v627 = vunpack.c.l.b16 %v537
        %v628 = vunpack.c.l.b16 %v538
        %v629 = vunpack.c.l.b16 %v539
        %v630 = vunpack.c.l.b16 %v540
        %v631 = vunpack.c.l.b16 %v541
        %v632 = vunpack.c.l.b16 %v542
        %v633 = vunpack.c.l.b16 %v543
        %v634 = vunpack.c.l.b16 %v544
        %v635 = vunpack.c.l.b16 %v545
        %v636 = vunpack.c.l.b16 %v546
        %v637 = vunpack.c.l.b16 %v547
        %v638 = vunpack.c.l.b16 %v548
        %v639 = vunpack.c.l.b16 %v549
        %v640 = vunpack.c.l.b16 %v550
        %v641 = vunpack.c.l.b16 %v553
        %v642 = vunpack.c.l.b16 %v554
        %v643 = vpack.c.b16 %v608, %v607
        %v644 = vpack.c.b16 %v610, %v609
        %v645 = vpack.c.b16 %v612, %v611
        %v646 = vpack.c.b16 %v614, %v613
        %v647 = vpack.c.b16 %v616, %v615
        %v648 = vpack.c.b16 %v618, %v617
        %v649 = vpack.c.b16 %v620, %v619
        %v650 = vpack.c.b16 %v622, %v621
        %v651 = vpack.c.b16 %v624, %v623
        %v652 = vpack.c.b16 %v626, %v625
        %v653 = vpack.c.b16 %v628, %v627
        %v654 = vpack.c.b16 %v630, %v629
        %v655 = vpack.c.b16 %v632, %v631
        %v656 = vpack.c.b16 %v634, %v633
        %v657 = vpack.c.b16 %v636, %v635
        %v658 = vpack.c.b16 %v638, %v637
        %v659 = vpack.c.b16 %v640, %v639
        %v660 = vpack.c.b16 %v642, %v641
        %v695 = vunpack.c.l.b16 %v555
        %v696 = vunpack.c.l.b16 %v556
        %v697 = vunpack.c.l.b16 %v557
        %v698 = vunpack.c.l.b16 %v558
        %v699 = vunpack.c.l.b16 %v559
        %v700 = vunpack.c.l.b16 %v560
        %v701 = vunpack.c.l.b16 %v561
        %v702 = vunpack.c.l.b16 %v562
        %v703 = vunpack.c.l.b16 %v563
        %v704 = vunpack.c.l.b16 %v564
        %v705 = vunpack.c.l.b16 %v565
        %v706 = vunpack.c.l.b16 %v566
        %v707 = vunpack.c.l.b16 %v567
        %v708 = vunpack.c.l.b16 %v568
        %v709 = vunpack.c.l.b16 %v569
        %v710 = vunpack.c.l.b16 %v570
        %v711 = vpack.c.b16 %v696, %v695
        %v712 = vpack.c.b16 %v698, %v697
        %v713 = vpack.c.b16 %v700, %v699
        %v714 = vpack.c.b16 %v702, %v701
        %v715 = vpack.c.b16 %v704, %v703
        %v716 = vpack.c.b16 %v706, %v705
        %v717 = vpack.c.b16 %v708, %v707
        %v718 = vpack.c.b16 %v710, %v709
        %727 = vmatprep.subr.bf16.mxu0 0
        %728 = vmatpush1.bf16.msra.mxu0 %v711
        %729 = vmatprep.subr.bf16.mxu0 0
        %730 = vmatpush1.bf16.msra.mxu0 %v712
        %731 = vmatprep.subr.bf16.mxu0 0
        %732 = vmatpush1.bf16.msra.mxu0 %v713
        %733 = vmatprep.subr.bf16.mxu0 0
        %734 = vmatpush1.bf16.msra.mxu0 %v714
        %735 = vmatprep.subr.bf16.mxu0 0
        %736 = vmatpush1.bf16.msra.mxu0 %v715
        %737 = vmatprep.subr.bf16.mxu0 0
        %738 = vmatpush1.bf16.msra.mxu0 %v716
        %739 = vmatprep.subr.bf16.mxu0 0
        %740 = vmatpush1.bf16.msra.mxu0 %v717
        %741 = vmatprep.subr.bf16.mxu0 0
        %742 = vmatpush1.bf16.msra.mxu0 %v718
        %743 = vmatprep.subr.bf16.mxu0 0
        %744 = vmatpush1.bf16.msra.mxu0 0
        %745 = vmatprep.subr.bf16.mxu0 0
        %746 = vmatpush1.bf16.msra.mxu0 0
        %747 = vmatprep.subr.bf16.mxu0 0
        %748 = vmatpush1.bf16.msra.mxu0 0
        %749 = vmatprep.subr.bf16.mxu0 0
        %750 = vmatpush1.bf16.msra.mxu0 0
        %751 = vmatprep.subr.bf16.mxu0 0
        %752 = vmatpush1.bf16.msra.mxu0 0
        %753 = vmatprep.subr.bf16.mxu0 0
        %754 = vmatpush1.bf16.msra.mxu0 0
        %755 = vmatprep.subr.bf16.mxu0 0
        %756 = vmatpush1.bf16.msra.mxu0 0
        %757 = vmatprep.subr.bf16.mxu0 0
        %758 = vmatpush1.bf16.msra.mxu0 0
        %759 = vmatprep.mubr.bf16.mxu0 0
        %760 = vmatmul.mubr.bf16.gmra.mrb[0].mxu0 %v643
        %v761 = vpop.f32.mrb[0].mxu0
        %v762 = vadd.f32 0.0, %v761
        %v763 = vpop.f32.mrb[0].mxu0
        %v764 = vpop.f32.mrb[0].mxu0
        %v765 = vadd.f32 0.0, %v764
        %v766 = vpop.f32.mrb[0].mxu0
        %767 = vmatprep.mubr.bf16.mxu0 0
        %768 = vmatmul.mubr.bf16.gmra.mrb[0].mxu0 %v644
        %v769 = vpop.f32.mrb[0].mxu0
        %v770 = vadd.f32 0.0, %v769
        %v771 = vpop.f32.mrb[0].mxu0
        %v772 = vpop.f32.mrb[0].mxu0
        %v773 = vadd.f32 0.0, %v772
        %v774 = vpop.f32.mrb[0].mxu0
        %775 = vmatprep.mubr.bf16.mxu0 0
        %776 = vmatmul.mubr.bf16.gmra.mrb[0].mxu0 %v645
        %v777 = vpop.f32.mrb[0].mxu0
        %v778 = vadd.f32 0.0, %v777
        %v779 = vpop.f32.mrb[0].mxu0
        %v780 = vpop.f32.mrb[0].mxu0
        %v781 = vadd.f32 0.0, %v780
        %v782 = vpop.f32.mrb[0].mxu0
        %783 = vmatprep.mubr.bf16.mxu0 0
        %784 = vmatmul.mubr.bf16.gmra.mrb[0].mxu0 %v646
        %v785 = vpop.f32.mrb[0].mxu0
        %v786 = vadd.f32 0.0, %v785
        %v787 = vpop.f32.mrb[0].mxu0
        %v788 = vpop.f32.mrb[0].mxu0
        %v789 = vadd.f32 0.0, %v788
        %v790 = vpop.f32.mrb[0].mxu0
        %791 = vmatprep.mubr.bf16.mxu0 0
        %792 = vmatmul.mubr.bf16.gmra.mrb[0].mxu0 %v647
        %v793 = vpop.f32.mrb[0].mxu0
        %v794 = vadd.f32 0.0, %v793
        %v795 = vpop.f32.mrb[0].mxu0
        %v796 = vpop.f32.mrb[0].mxu0
        %v797 = vadd.f32 0.0, %v796
        %v798 = vpop.f32.mrb[0].mxu0
        %799 = vmatprep.mubr.bf16.mxu0 0
        %800 = vmatmul.mubr.bf16.gmra.mrb[0].mxu0 %v648
        %v801 = vpop.f32.mrb[0].mxu0
        %v802 = vadd.f32 0.0, %v801
        %v803 = vpop.f32.mrb[0].mxu0
        %v804 = vpop.f32.mrb[0].mxu0
        %v805 = vadd.f32 0.0, %v804
        %v806 = vpop.f32.mrb[0].mxu0
        %807 = vmatprep.mubr.bf16.mxu0 0
        %808 = vmatmul.mubr.bf16.gmra.mrb[0].mxu0 %v649
        %v809 = vpop.f32.mrb[0].mxu0
        %v810 = vadd.f32 0.0, %v809
        %v811 = vpop.f32.mrb[0].mxu0
        %v812 = vpop.f32.mrb[0].mxu0
        %v813 = vadd.f32 0.0, %v812
        %v814 = vpop.f32.mrb[0].mxu0
        %815 = vmatprep.mubr.bf16.mxu0 0
        %816 = vmatmul.mubr.bf16.gmra.mrb[0].mxu0 %v650
        %v817 = vpop.f32.mrb[0].mxu0
        %v818 = vadd.f32 0.0, %v817
        %v819 = vpop.f32.mrb[0].mxu0
        %v820 = vpop.f32.mrb[0].mxu0
        %v821 = vadd.f32 0.0, %v820
        %v822 = vpop.f32.mrb[0].mxu0
        %823 = vmatprep.mubr.bf16.mxu0 0
        %824 = vmatmul.mubr.bf16.gmra.mrb[0].mxu0 %v651
        %v825 = vpop.f32.mrb[0].mxu0
        %v826 = vadd.f32 0.0, %v825
        %v827 = vpop.f32.mrb[0].mxu0
        %v828 = vpop.f32.mrb[0].mxu0
        %v829 = vadd.f32 0.0, %v828
        %v830 = vpop.f32.mrb[0].mxu0
        %831 = vmatprep.mubr.bf16.mxu0 0
        %832 = vmatmul.mubr.bf16.gmra.mrb[0].mxu0 %v652
        %v833 = vpop.f32.mrb[0].mxu0
        %v834 = vadd.f32 0.0, %v833
        %v835 = vpop.f32.mrb[0].mxu0
        %v836 = vpop.f32.mrb[0].mxu0
        %v837 = vadd.f32 0.0, %v836
        %v838 = vpop.f32.mrb[0].mxu0
        %839 = vmatprep.mubr.bf16.mxu0 0
        %840 = vmatmul.mubr.bf16.gmra.mrb[0].mxu0 %v653
        %v841 = vpop.f32.mrb[0].mxu0
        %v842 = vadd.f32 0.0, %v841
        %v843 = vpop.f32.mrb[0].mxu0
        %v844 = vpop.f32.mrb[0].mxu0
        %v845 = vadd.f32 0.0, %v844
        %v846 = vpop.f32.mrb[0].mxu0
        %847 = vmatprep.mubr.bf16.mxu0 0
        %848 = vmatmul.mubr.bf16.gmra.mrb[0].mxu0 %v654
        %v849 = vpop.f32.mrb[0].mxu0
        %v850 = vadd.f32 0.0, %v849
        %v851 = vpop.f32.mrb[0].mxu0
        %v852 = vpop.f32.mrb[0].mxu0
        %v853 = vadd.f32 0.0, %v852
        %v854 = vpop.f32.mrb[0].mxu0
        %855 = vmatprep.mubr.bf16.mxu0 0
        %856 = vmatmul.mubr.bf16.gmra.mrb[0].mxu0 %v655
        %v857 = vpop.f32.mrb[0].mxu0
        %v858 = vadd.f32 0.0, %v857
        %v859 = vpop.f32.mrb[0].mxu0
        %v860 = vpop.f32.mrb[0].mxu0
        %v861 = vadd.f32 0.0, %v860
        %v862 = vpop.f32.mrb[0].mxu0
        %863 = vmatprep.mubr.bf16.mxu0 0
        %864 = vmatmul.mubr.bf16.gmra.mrb[0].mxu0 %v656
        %v865 = vpop.f32.mrb[0].mxu0
        %v866 = vadd.f32 0.0, %v865
        %v867 = vpop.f32.mrb[0].mxu0
        %v868 = vpop.f32.mrb[0].mxu0
        %v869 = vadd.f32 0.0, %v868
        %v870 = vpop.f32.mrb[0].mxu0
        %871 = vmatprep.mubr.bf16.mxu0 0
        %872 = vmatmul.mubr.bf16.gmra.mrb[0].mxu0 %v657
        %v873 = vpop.f32.mrb[0].mxu0
        %v874 = vadd.f32 0.0, %v873
        %v875 = vpop.f32.mrb[0].mxu0
        %v876 = vpop.f32.mrb[0].mxu0
        %v877 = vadd.f32 0.0, %v876
        %v878 = vpop.f32.mrb[0].mxu0
        %879 = vmatprep.mubr.bf16.mxu0 0
        %880 = vmatmul.mubr.bf16.gmra.mrb[0].mxu0 %v658
        %v881 = vpop.f32.mrb[0].mxu0
        %v882 = vadd.f32 0.0, %v881
        %v883 = vpop.f32.mrb[0].mxu0
        %v884 = vpop.f32.mrb[0].mxu0
        %v885 = vadd.f32 0.0, %v884
        %v886 = vpop.f32.mrb[0].mxu0
        %887 = vmatprep.mubr.bf16.mxu0 0
        %888 = vmatmul.mubr.bf16.gmra.mrb[0].mxu0 %v659
        %v889 = vpop.f32.mrb[0].mxu0
        %v890 = vadd.f32 0.0, %v889
        %v891 = vpop.f32.mrb[0].mxu0
        %v892 = vpop.f32.mrb[0].mxu0
        %v893 = vadd.f32 0.0, %v892
        %v894 = vpop.f32.mrb[0].mxu0
        %895 = vmatprep.mubr.bf16.mxu0 0
        %896 = vmatmul.mubr.bf16.gmra.mrb[0].mxu0 %v660
        %v897 = vpop.f32.mrb[0].mxu0
        %v898 = vadd.f32 0.0, %v897
        %v899 = vpop.f32.mrb[0].mxu0
        %v900 = vpop.f32.mrb[0].mxu0
        %v901 = vadd.f32 0.0, %v900
        %v902 = vpop.f32.mrb[0].mxu0
        %903 = vdwg.mxu0
        %v904 = vld [vmem:[%s4] sm:$0x1]
        %v906 = vlaneseq
        %v907 = vshrl.u32 %v906, 7
        %v908 = vsub.s32 0, %v907
        %v909 = vrot.slane %v904, %v908
        %v911 = vmul.f32 %v762, %v909
        %v912 = vmul.f32 %v765, %v909
        %v913 = vmul.f32 %v770, %v909
        %v914 = vmul.f32 %v773, %v909
        %v915 = vmul.f32 %v778, %v909
        %v916 = vmul.f32 %v781, %v909
        %v917 = vmul.f32 %v786, %v909
        %v918 = vmul.f32 %v789, %v909
        %v919 = vmul.f32 %v794, %v909
        %v920 = vmul.f32 %v797, %v909
        %v921 = vmul.f32 %v802, %v909
        %v922 = vmul.f32 %v805, %v909
        %v923 = vmul.f32 %v810, %v909
        %v924 = vmul.f32 %v813, %v909
        %v925 = vmul.f32 %v818, %v909
        %v926 = vmul.f32 %v821, %v909
        %v927 = vmul.f32 %v826, %v909
        %v928 = vmul.f32 %v829, %v909
        %v929 = vmul.f32 %v834, %v909
        %v930 = vmul.f32 %v837, %v909
        %v931 = vmul.f32 %v842, %v909
        %v932 = vmul.f32 %v845, %v909
        %v933 = vmul.f32 %v850, %v909
        %v934 = vmul.f32 %v853, %v909
        %v935 = vmul.f32 %v858, %v909
        %v936 = vmul.f32 %v861, %v909
        %v937 = vmul.f32 %v866, %v909
        %v938 = vmul.f32 %v869, %v909
        %v939 = vmul.f32 %v874, %v909
        %v940 = vmul.f32 %v877, %v909
        %v941 = vmul.f32 %v882, %v909
        %v942 = vmul.f32 %v885, %v909
        %v943 = vmul.f32 %v890, %v909
        %v944 = vmul.f32 %v893, %v909
        %v945 = vmul.f32 %v898, %v909
        %v946 = vmul.f32 %v901, %v909
        %v947 = vld [vmem:[%s5] sm:$0x1]
        %v949 = vlaneseq
        %v950 = vshrl.u32 %v949, 7
        %v951 = vsub.s32 0, %v950
        %v952 = vrot.slane %v947, %v951
        %v954 = vadd.f32 %v911, %v952
        %v955 = vadd.f32 %v912, %v952
        %v956 = vadd.f32 %v913, %v952
        %v957 = vadd.f32 %v914, %v952
        %v958 = vadd.f32 %v915, %v952
        %v959 = vadd.f32 %v916, %v952
        %v960 = vadd.f32 %v917, %v952
        %v961 = vadd.f32 %v918, %v952
        %v962 = vadd.f32 %v919, %v952
        %v963 = vadd.f32 %v920, %v952
        %v964 = vadd.f32 %v921, %v952
        %v965 = vadd.f32 %v922, %v952
        %v966 = vadd.f32 %v923, %v952
        %v967 = vadd.f32 %v924, %v952
        %v968 = vadd.f32 %v925, %v952
        %v969 = vadd.f32 %v926, %v952
        %v970 = vadd.f32 %v927, %v952
        %v971 = vadd.f32 %v928, %v952
        %v972 = vadd.f32 %v929, %v952
        %v973 = vadd.f32 %v930, %v952
        %v974 = vadd.f32 %v931, %v952
        %v975 = vadd.f32 %v932, %v952
        %v976 = vadd.f32 %v933, %v952
        %v977 = vadd.f32 %v934, %v952
        %v978 = vadd.f32 %v935, %v952
        %v979 = vadd.f32 %v936, %v952
        %v980 = vadd.f32 %v937, %v952
        %v981 = vadd.f32 %v938, %v952
        %v982 = vadd.f32 %v939, %v952
        %v983 = vadd.f32 %v940, %v952
        %v984 = vadd.f32 %v941, %v952
        %v985 = vadd.f32 %v942, %v952
        %v986 = vadd.f32 %v943, %v952
        %v987 = vadd.f32 %v944, %v952
        %v988 = vadd.f32 %v945, %v952
        %v989 = vadd.f32 %v946, %v952
        %v990 = vsub.f32 0.0, %v954
        %v991 = vsub.f32 0.0, %v955
        %v992 = vsub.f32 0.0, %v956
        %v993 = vsub.f32 0.0, %v957
        %v994 = vsub.f32 0.0, %v958
        %v995 = vsub.f32 0.0, %v959
        %v996 = vsub.f32 0.0, %v960
        %v997 = vsub.f32 0.0, %v961
        %v998 = vsub.f32 0.0, %v962
        %v999 = vsub.f32 0.0, %v963
        %v1000 = vsub.f32 0.0, %v964
        %v1001 = vsub.f32 0.0, %v965
        %v1002 = vsub.f32 0.0, %v966
        %v1003 = vsub.f32 0.0, %v967
        %v1004 = vsub.f32 0.0, %v968
        %v1005 = vsub.f32 0.0, %v969
        %v1006 = vsub.f32 0.0, %v970
        %v1007 = vsub.f32 0.0, %v971
        %v1008 = vsub.f32 0.0, %v972
        %v1009 = vsub.f32 0.0, %v973
        %v1010 = vsub.f32 0.0, %v974
        %v1011 = vsub.f32 0.0, %v975
        %v1012 = vsub.f32 0.0, %v976
        %v1013 = vsub.f32 0.0, %v977
        %v1014 = vsub.f32 0.0, %v978
        %v1015 = vsub.f32 0.0, %v979
        %v1016 = vsub.f32 0.0, %v980
        %v1017 = vsub.f32 0.0, %v981
        %v1018 = vsub.f32 0.0, %v982
        %v1019 = vsub.f32 0.0, %v983
        %v1020 = vsub.f32 0.0, %v984
        %v1021 = vsub.f32 0.0, %v985
        %v1022 = vsub.f32 0.0, %v986
        %v1023 = vsub.f32 0.0, %v987
        %v1024 = vsub.f32 0.0, %v988
        %v1025 = vsub.f32 0.0, %v989
        %v1026 = vmul.f32 %v990, 1.442695
        %v1027 = vpow.pop %v1026
        %v1028 = vmul.f32 %v991, 1.442695
        %v1029 = vpow.pop %v1028
        %v1030 = vmul.f32 %v992, 1.442695
        %v1031 = vpow.pop %v1030
        %v1032 = vmul.f32 %v993, 1.442695
        %v1033 = vpow.pop %v1032
        %v1034 = vmul.f32 %v994, 1.442695
        %v1035 = vpow.pop %v1034
        %v1036 = vmul.f32 %v995, 1.442695
        %v1037 = vpow.pop %v1036
        %v1038 = vmul.f32 %v996, 1.442695
        %v1039 = vpow.pop %v1038
        %v1040 = vmul.f32 %v997, 1.442695
        %v1041 = vpow.pop %v1040
        %v1042 = vmul.f32 %v998, 1.442695
        %v1043 = vpow.pop %v1042
        %v1044 = vmul.f32 %v999, 1.442695
        %v1045 = vpow.pop %v1044
        %v1046 = vmul.f32 %v1000, 1.442695
        %v1047 = vpow.pop %v1046
        %v1048 = vmul.f32 %v1001, 1.442695
        %v1049 = vpow.pop %v1048
        %v1050 = vmul.f32 %v1002, 1.442695
        %v1051 = vpow.pop %v1050
        %v1052 = vmul.f32 %v1003, 1.442695
        %v1053 = vpow.pop %v1052
        %v1054 = vmul.f32 %v1004, 1.442695
        %v1055 = vpow.pop %v1054
        %v1056 = vmul.f32 %v1005, 1.442695
        %v1057 = vpow.pop %v1056
        %v1058 = vmul.f32 %v1006, 1.442695
        %v1059 = vpow.pop %v1058
        %v1060 = vmul.f32 %v1007, 1.442695
        %v1061 = vpow.pop %v1060
        %v1062 = vmul.f32 %v1008, 1.442695
        %v1063 = vpow.pop %v1062
        %v1064 = vmul.f32 %v1009, 1.442695
        %v1065 = vpow.pop %v1064
        %v1066 = vmul.f32 %v1010, 1.442695
        %v1067 = vpow.pop %v1066
        %v1068 = vmul.f32 %v1011, 1.442695
        %v1069 = vpow.pop %v1068
        %v1070 = vmul.f32 %v1012, 1.442695
        %v1071 = vpow.pop %v1070
        %v1072 = vmul.f32 %v1013, 1.442695
        %v1073 = vpow.pop %v1072
        %v1074 = vmul.f32 %v1014, 1.442695
        %v1075 = vpow.pop %v1074
        %v1076 = vmul.f32 %v1015, 1.442695
        %v1077 = vpow.pop %v1076
        %v1078 = vmul.f32 %v1016, 1.442695
        %v1079 = vpow.pop %v1078
        %v1080 = vmul.f32 %v1017, 1.442695
        %v1081 = vpow.pop %v1080
        %v1082 = vmul.f32 %v1018, 1.442695
        %v1083 = vpow.pop %v1082
        %v1084 = vmul.f32 %v1019, 1.442695
        %v1085 = vpow.pop %v1084
        %v1086 = vmul.f32 %v1020, 1.442695
        %v1087 = vpow.pop %v1086
        %v1088 = vmul.f32 %v1021, 1.442695
        %v1089 = vpow.pop %v1088
        %v1090 = vmul.f32 %v1022, 1.442695
        %v1091 = vpow.pop %v1090
        %v1092 = vmul.f32 %v1023, 1.442695
        %v1093 = vpow.pop %v1092
        %v1094 = vmul.f32 %v1024, 1.442695
        %v1095 = vpow.pop %v1094
        %v1096 = vmul.f32 %v1025, 1.442695
        %v1097 = vpow.pop %v1096
        %v1098 = vadd.f32 %v1027, 1.0
        %v1099 = vadd.f32 %v1029, 1.0
        %v1100 = vadd.f32 %v1031, 1.0
        %v1101 = vadd.f32 %v1033, 1.0
        %v1102 = vadd.f32 %v1035, 1.0
        %v1103 = vadd.f32 %v1037, 1.0
        %v1104 = vadd.f32 %v1039, 1.0
        %v1105 = vadd.f32 %v1041, 1.0
        %v1106 = vadd.f32 %v1043, 1.0
        %v1107 = vadd.f32 %v1045, 1.0
        %v1108 = vadd.f32 %v1047, 1.0
        %v1109 = vadd.f32 %v1049, 1.0
        %v1110 = vadd.f32 %v1051, 1.0
        %v1111 = vadd.f32 %v1053, 1.0
        %v1112 = vadd.f32 %v1055, 1.0
        %v1113 = vadd.f32 %v1057, 1.0
        %v1114 = vadd.f32 %v1059, 1.0
        %v1115 = vadd.f32 %v1061, 1.0
        %v1116 = vadd.f32 %v1063, 1.0
        %v1117 = vadd.f32 %v1065, 1.0
        %v1118 = vadd.f32 %v1067, 1.0
        %v1119 = vadd.f32 %v1069, 1.0
        %v1120 = vadd.f32 %v1071, 1.0
        %v1121 = vadd.f32 %v1073, 1.0
        %v1122 = vadd.f32 %v1075, 1.0
        %v1123 = vadd.f32 %v1077, 1.0
        %v1124 = vadd.f32 %v1079, 1.0
        %v1125 = vadd.f32 %v1081, 1.0
        %v1126 = vadd.f32 %v1083, 1.0
        %v1127 = vadd.f32 %v1085, 1.0
        %v1128 = vadd.f32 %v1087, 1.0
        %v1129 = vadd.f32 %v1089, 1.0
        %v1130 = vadd.f32 %v1091, 1.0
        %v1131 = vadd.f32 %v1093, 1.0
        %v1132 = vadd.f32 %v1095, 1.0
        %v1133 = vadd.f32 %v1097, 1.0
        %v1134 = vrcp.pop %v1098
        %v1135 = vrcp.pop %v1099
        %v1136 = vrcp.pop %v1100
        %v1137 = vrcp.pop %v1101
        %v1138 = vrcp.pop %v1102
        %v1139 = vrcp.pop %v1103
        %v1140 = vrcp.pop %v1104
        %v1141 = vrcp.pop %v1105
        %v1142 = vrcp.pop %v1106
        %v1143 = vrcp.pop %v1107
        %v1144 = vrcp.pop %v1108
        %v1145 = vrcp.pop %v1109
        %v1146 = vrcp.pop %v1110
        %v1147 = vrcp.pop %v1111
        %v1148 = vrcp.pop %v1112
        %v1149 = vrcp.pop %v1113
        %v1150 = vrcp.pop %v1114
        %v1151 = vrcp.pop %v1115
        %v1152 = vrcp.pop %v1116
        %v1153 = vrcp.pop %v1117
        %v1154 = vrcp.pop %v1118
        %v1155 = vrcp.pop %v1119
        %v1156 = vrcp.pop %v1120
        %v1157 = vrcp.pop %v1121
        %v1158 = vrcp.pop %v1122
        %v1159 = vrcp.pop %v1123
        %v1160 = vrcp.pop %v1124
        %v1161 = vrcp.pop %v1125
        %v1162 = vrcp.pop %v1126
        %v1163 = vrcp.pop %v1127
        %v1164 = vrcp.pop %v1128
        %v1165 = vrcp.pop %v1129
        %v1166 = vrcp.pop %v1130
        %v1167 = vrcp.pop %v1131
        %v1168 = vrcp.pop %v1132
        %v1169 = vrcp.pop %v1133
        %v1170 = vmul.f32 %v954, %v1134
        %v1171 = vmul.f32 %v955, %v1135
        %v1172 = vmul.f32 %v956, %v1136
        %v1173 = vmul.f32 %v957, %v1137
        %v1174 = vmul.f32 %v958, %v1138
        %v1175 = vmul.f32 %v959, %v1139
        %v1176 = vmul.f32 %v960, %v1140
        %v1177 = vmul.f32 %v961, %v1141
        %v1178 = vmul.f32 %v962, %v1142
        %v1179 = vmul.f32 %v963, %v1143
        %v1180 = vmul.f32 %v964, %v1144
        %v1181 = vmul.f32 %v965, %v1145
        %v1182 = vmul.f32 %v966, %v1146
        %v1183 = vmul.f32 %v967, %v1147
        %v1184 = vmul.f32 %v968, %v1148
        %v1185 = vmul.f32 %v969, %v1149
        %v1186 = vmul.f32 %v970, %v1150
        %v1187 = vmul.f32 %v971, %v1151
        %v1188 = vmul.f32 %v972, %v1152
        %v1189 = vmul.f32 %v973, %v1153
        %v1190 = vmul.f32 %v974, %v1154
        %v1191 = vmul.f32 %v975, %v1155
        %v1192 = vmul.f32 %v976, %v1156
        %v1193 = vmul.f32 %v977, %v1157
        %v1194 = vmul.f32 %v978, %v1158
        %v1195 = vmul.f32 %v979, %v1159
        %v1196 = vmul.f32 %v980, %v1160
        %v1197 = vmul.f32 %v981, %v1161
        %v1198 = vmul.f32 %v982, %v1162
        %v1199 = vmul.f32 %v983, %v1163
        %v1200 = vmul.f32 %v984, %v1164
        %v1201 = vmul.f32 %v985, %v1165
        %v1202 = vmul.f32 %v986, %v1166
        %v1203 = vmul.f32 %v987, %v1167
        %v1204 = vmul.f32 %v988, %v1168
        %v1205 = vmul.f32 %v989, %v1169
        %v1206 = vlaneseq
        %v1207 = vshrl.u32 %v1206, 7
        %v1208 = vadd.s32 %v1207, 8
        %v1209 = vadd.s32 %v1207, 16
        %v1210 = vadd.s32 %v1207, 24
        %v1211 = vadd.s32 %v1207, 32
        %v1212 = vadd.s32 %v1207, 40
        %v1213 = vadd.s32 %v1207, 48
        %v1214 = vadd.s32 %v1207, 56
        %v1215 = vadd.s32 %v1207, 64
        %v1216 = vadd.s32 %v1207, 72
        %v1217 = vadd.s32 %v1207, 80
        %v1218 = vadd.s32 %v1207, 88
        %v1219 = vadd.s32 %v1207, 96
        %v1220 = vadd.s32 %v1207, 104
        %v1221 = vadd.s32 %v1207, 112
        %v1222 = vadd.s32 %v1207, 120
        %v1223 = vadd.s32 %v1207, 128
        %v1224 = vadd.s32 %v1207, 136
        %v1225 = vadd.s32 %v1207, 144
        %v1226 = vadd.s32 %v1207, 152
        %v1227 = vadd.s32 %v1207, 160
        %v1228 = vadd.s32 %v1207, 168
        %v1229 = vadd.s32 %v1207, 176
        %v1230 = vadd.s32 %v1207, 184
        %v1231 = vadd.s32 %v1207, 192
        %v1232 = vadd.s32 %v1207, 200
        %v1233 = vadd.s32 %v1207, 208
        %v1234 = vadd.s32 %v1207, 216
        %v1235 = vadd.s32 %v1207, 224
        %v1236 = vadd.s32 %v1207, 232
        %v1237 = vadd.s32 %v1207, 240
        %v1238 = vadd.s32 %v1207, 248
        %v1239 = vadd.s32 %v1207, 256
        %v1240 = vadd.s32 %v1207, 264
        %v1241 = vadd.s32 %v1207, 272
        %v1242 = vadd.s32 %v1207, 280
        %p1243 = scmp.gt.s32.totalorder %s35, 0
        %vm1244 = vcmp.ge.s32.totalorder %v1207, 16
        %vm1245 = vcmp.ge.s32.totalorder %v1208, 16
        %vm1246 = vcmp.ge.s32.totalorder %v1209, 16
        %vm1247 = vcmp.ge.s32.totalorder %v1210, 16
        %vm1248 = vcmp.ge.s32.totalorder %v1211, 16
        %vm1249 = vcmp.ge.s32.totalorder %v1212, 16
        %vm1250 = vcmp.ge.s32.totalorder %v1213, 16
        %vm1251 = vcmp.ge.s32.totalorder %v1214, 16
        %vm1252 = vcmp.ge.s32.totalorder %v1215, 16
        %vm1253 = vcmp.ge.s32.totalorder %v1216, 16
        %vm1254 = vcmp.ge.s32.totalorder %v1217, 16
        %vm1255 = vcmp.ge.s32.totalorder %v1218, 16
        %vm1256 = vcmp.ge.s32.totalorder %v1219, 16
        %vm1257 = vcmp.ge.s32.totalorder %v1220, 16
        %vm1258 = vcmp.ge.s32.totalorder %v1221, 16
        %vm1259 = vcmp.ge.s32.totalorder %v1222, 16
        %vm1260 = vcmp.ge.s32.totalorder %v1223, 16
        %vm1261 = vcmp.ge.s32.totalorder %v1224, 16
        %vm1262 = vcmp.ge.s32.totalorder %v1225, 16
        %vm1263 = vcmp.ge.s32.totalorder %v1226, 16
        %vm1264 = vcmp.ge.s32.totalorder %v1227, 16
        %vm1265 = vcmp.ge.s32.totalorder %v1228, 16
        %vm1266 = vcmp.ge.s32.totalorder %v1229, 16
        %vm1267 = vcmp.ge.s32.totalorder %v1230, 16
        %vm1268 = vcmp.ge.s32.totalorder %v1231, 16
        %vm1269 = vcmp.ge.s32.totalorder %v1232, 16
        %vm1270 = vcmp.ge.s32.totalorder %v1233, 16
        %vm1271 = vcmp.ge.s32.totalorder %v1234, 16
        %vm1272 = vcmp.ge.s32.totalorder %v1235, 16
        %vm1273 = vcmp.ge.s32.totalorder %v1236, 16
        %vm1274 = vcmp.ge.s32.totalorder %v1237, 16
        %vm1275 = vcmp.ge.s32.totalorder %v1238, 16
        %vm1276 = vcmp.ge.s32.totalorder %v1239, 16
        %vm1277 = vcmp.ge.s32.totalorder %v1240, 16
        %vm1278 = vcmp.ge.s32.totalorder %v1241, 16
        %vm1279 = vcmp.ge.s32.totalorder %v1242, 16
        %s1280 = scalar_select %p1243, 1, 0
        %v1281 = vstv %s1280
        %vm1282 = vcmp.eq.s32.totalorder %v1281, 1
        %vm1283 = vmor %vm1282, %vm1244
        %vm1284 = vmor %vm1282, %vm1245
        %vm1285 = vmor %vm1282, %vm1246
        %vm1286 = vmor %vm1282, %vm1247
        %vm1287 = vmor %vm1282, %vm1248
        %vm1288 = vmor %vm1282, %vm1249
        %vm1289 = vmor %vm1282, %vm1250
        %vm1290 = vmor %vm1282, %vm1251
        %vm1291 = vmor %vm1282, %vm1252
        %vm1292 = vmor %vm1282, %vm1253
        %vm1293 = vmor %vm1282, %vm1254
        %vm1294 = vmor %vm1282, %vm1255
        %vm1295 = vmor %vm1282, %vm1256
        %vm1296 = vmor %vm1282, %vm1257
        %vm1297 = vmor %vm1282, %vm1258
        %vm1298 = vmor %vm1282, %vm1259
        %vm1299 = vmor %vm1282, %vm1260
        %vm1300 = vmor %vm1282, %vm1261
        %vm1301 = vmor %vm1282, %vm1262
        %vm1302 = vmor %vm1282, %vm1263
        %vm1303 = vmor %vm1282, %vm1264
        %vm1304 = vmor %vm1282, %vm1265
        %vm1305 = vmor %vm1282, %vm1266
        %vm1306 = vmor %vm1282, %vm1267
        %vm1307 = vmor %vm1282, %vm1268
        %vm1308 = vmor %vm1282, %vm1269
        %vm1309 = vmor %vm1282, %vm1270
        %vm1310 = vmor %vm1282, %vm1271
        %vm1311 = vmor %vm1282, %vm1272
        %vm1312 = vmor %vm1282, %vm1273
        %vm1313 = vmor %vm1282, %vm1274
        %vm1314 = vmor %vm1282, %vm1275
        %vm1315 = vmor %vm1282, %vm1276
        %vm1316 = vmor %vm1282, %vm1277
        %vm1317 = vmor %vm1282, %vm1278
        %vm1318 = vmor %vm1282, %vm1279
        %p1319 = scmp.lt.s32.totalorder %s35, 0
        %vm1320 = vcmp.lt.s32.totalorder %v1207, 272
        %vm1321 = vcmp.lt.s32.totalorder %v1208, 272
        %vm1322 = vcmp.lt.s32.totalorder %v1209, 272
        %vm1323 = vcmp.lt.s32.totalorder %v1210, 272
        %vm1324 = vcmp.lt.s32.totalorder %v1211, 272
        %vm1325 = vcmp.lt.s32.totalorder %v1212, 272
        %vm1326 = vcmp.lt.s32.totalorder %v1213, 272
        %vm1327 = vcmp.lt.s32.totalorder %v1214, 272
        %vm1328 = vcmp.lt.s32.totalorder %v1215, 272
        %vm1329 = vcmp.lt.s32.totalorder %v1216, 272
        %vm1330 = vcmp.lt.s32.totalorder %v1217, 272
        %vm1331 = vcmp.lt.s32.totalorder %v1218, 272
        %vm1332 = vcmp.lt.s32.totalorder %v1219, 272
        %vm1333 = vcmp.lt.s32.totalorder %v1220, 272
        %vm1334 = vcmp.lt.s32.totalorder %v1221, 272
        %vm1335 = vcmp.lt.s32.totalorder %v1222, 272
        %vm1336 = vcmp.lt.s32.totalorder %v1223, 272
        %vm1337 = vcmp.lt.s32.totalorder %v1224, 272
        %vm1338 = vcmp.lt.s32.totalorder %v1225, 272
        %vm1339 = vcmp.lt.s32.totalorder %v1226, 272
        %vm1340 = vcmp.lt.s32.totalorder %v1227, 272
        %vm1341 = vcmp.lt.s32.totalorder %v1228, 272
        %vm1342 = vcmp.lt.s32.totalorder %v1229, 272
        %vm1343 = vcmp.lt.s32.totalorder %v1230, 272
        %vm1344 = vcmp.lt.s32.totalorder %v1231, 272
        %vm1345 = vcmp.lt.s32.totalorder %v1232, 272
        %vm1346 = vcmp.lt.s32.totalorder %v1233, 272
        %vm1347 = vcmp.lt.s32.totalorder %v1234, 272
        %vm1348 = vcmp.lt.s32.totalorder %v1235, 272
        %vm1349 = vcmp.lt.s32.totalorder %v1236, 272
        %vm1350 = vcmp.lt.s32.totalorder %v1237, 272
        %vm1351 = vcmp.lt.s32.totalorder %v1238, 272
        %vm1352 = vcmp.lt.s32.totalorder %v1239, 272
        %vm1353 = vcmp.lt.s32.totalorder %v1240, 272
        %vm1354 = vcmp.lt.s32.totalorder %v1241, 272
        %vm1355 = vcmp.lt.s32.totalorder %v1242, 272
        %s1356 = scalar_select %p1319, 1, 0
        %v1357 = vstv %s1356
        %vm1358 = vcmp.eq.s32.totalorder %v1357, 1
        %vm1359 = vmor %vm1358, %vm1320
        %vm1360 = vmor %vm1358, %vm1321
        %vm1361 = vmor %vm1358, %vm1322
        %vm1362 = vmor %vm1358, %vm1323
        %vm1363 = vmor %vm1358, %vm1324
        %vm1364 = vmor %vm1358, %vm1325
        %vm1365 = vmor %vm1358, %vm1326
        %vm1366 = vmor %vm1358, %vm1327
        %vm1367 = vmor %vm1358, %vm1328
        %vm1368 = vmor %vm1358, %vm1329
        %vm1369 = vmor %vm1358, %vm1330
        %vm1370 = vmor %vm1358, %vm1331
        %vm1371 = vmor %vm1358, %vm1332
        %vm1372 = vmor %vm1358, %vm1333
        %vm1373 = vmor %vm1358, %vm1334
        %vm1374 = vmor %vm1358, %vm1335
        %vm1375 = vmor %vm1358, %vm1336
        %vm1376 = vmor %vm1358, %vm1337
        %vm1377 = vmor %vm1358, %vm1338
        %vm1378 = vmor %vm1358, %vm1339
        %vm1379 = vmor %vm1358, %vm1340
        %vm1380 = vmor %vm1358, %vm1341
        %vm1381 = vmor %vm1358, %vm1342
        %vm1382 = vmor %vm1358, %vm1343
        %vm1383 = vmor %vm1358, %vm1344
        %vm1384 = vmor %vm1358, %vm1345
        %vm1385 = vmor %vm1358, %vm1346
        %vm1386 = vmor %vm1358, %vm1347
        %vm1387 = vmor %vm1358, %vm1348
        %vm1388 = vmor %vm1358, %vm1349
        %vm1389 = vmor %vm1358, %vm1350
        %vm1390 = vmor %vm1358, %vm1351
        %vm1391 = vmor %vm1358, %vm1352
        %vm1392 = vmor %vm1358, %vm1353
        %vm1393 = vmor %vm1358, %vm1354
        %vm1394 = vmor %vm1358, %vm1355
        %vm1395 = vmand %vm1283, %vm1359
        %vm1396 = vmand %vm1284, %vm1360
        %vm1397 = vmand %vm1285, %vm1361
        %vm1398 = vmand %vm1286, %vm1362
        %vm1399 = vmand %vm1287, %vm1363
        %vm1400 = vmand %vm1288, %vm1364
        %vm1401 = vmand %vm1289, %vm1365
        %vm1402 = vmand %vm1290, %vm1366
        %vm1403 = vmand %vm1291, %vm1367
        %vm1404 = vmand %vm1292, %vm1368
        %vm1405 = vmand %vm1293, %vm1369
        %vm1406 = vmand %vm1294, %vm1370
        %vm1407 = vmand %vm1295, %vm1371
        %vm1408 = vmand %vm1296, %vm1372
        %vm1409 = vmand %vm1297, %vm1373
        %vm1410 = vmand %vm1298, %vm1374
        %vm1411 = vmand %vm1299, %vm1375
        %vm1412 = vmand %vm1300, %vm1376
        %vm1413 = vmand %vm1301, %vm1377
        %vm1414 = vmand %vm1302, %vm1378
        %vm1415 = vmand %vm1303, %vm1379
        %vm1416 = vmand %vm1304, %vm1380
        %vm1417 = vmand %vm1305, %vm1381
        %vm1418 = vmand %vm1306, %vm1382
        %vm1419 = vmand %vm1307, %vm1383
        %vm1420 = vmand %vm1308, %vm1384
        %vm1421 = vmand %vm1309, %vm1385
        %vm1422 = vmand %vm1310, %vm1386
        %vm1423 = vmand %vm1311, %vm1387
        %vm1424 = vmand %vm1312, %vm1388
        %vm1425 = vmand %vm1313, %vm1389
        %vm1426 = vmand %vm1314, %vm1390
        %vm1427 = vmand %vm1315, %vm1391
        %vm1428 = vmand %vm1316, %vm1392
        %vm1429 = vmand %vm1317, %vm1393
        %vm1430 = vmand %vm1318, %vm1394
        %v1431 = vsel %vm1395, %v1170, 0.0
        %v1432 = vsel %vm1396, %v1171, 0.0
        %v1433 = vsel %vm1397, %v1172, 0.0
        %v1434 = vsel %vm1398, %v1173, 0.0
        %v1435 = vsel %vm1399, %v1174, 0.0
        %v1436 = vsel %vm1400, %v1175, 0.0
        %v1437 = vsel %vm1401, %v1176, 0.0
        %v1438 = vsel %vm1402, %v1177, 0.0
        %v1439 = vsel %vm1403, %v1178, 0.0
        %v1440 = vsel %vm1404, %v1179, 0.0
        %v1441 = vsel %vm1405, %v1180, 0.0
        %v1442 = vsel %vm1406, %v1181, 0.0
        %v1443 = vsel %vm1407, %v1182, 0.0
        %v1444 = vsel %vm1408, %v1183, 0.0
        %v1445 = vsel %vm1409, %v1184, 0.0
        %v1446 = vsel %vm1410, %v1185, 0.0
        %v1447 = vsel %vm1411, %v1186, 0.0
        %v1448 = vsel %vm1412, %v1187, 0.0
        %v1449 = vsel %vm1413, %v1188, 0.0
        %v1450 = vsel %vm1414, %v1189, 0.0
        %v1451 = vsel %vm1415, %v1190, 0.0
        %v1452 = vsel %vm1416, %v1191, 0.0
        %v1453 = vsel %vm1417, %v1192, 0.0
        %v1454 = vsel %vm1418, %v1193, 0.0
        %v1455 = vsel %vm1419, %v1194, 0.0
        %v1456 = vsel %vm1420, %v1195, 0.0
        %v1457 = vsel %vm1421, %v1196, 0.0
        %v1458 = vsel %vm1422, %v1197, 0.0
        %v1459 = vsel %vm1423, %v1198, 0.0
        %v1460 = vsel %vm1424, %v1199, 0.0
        %v1461 = vsel %vm1425, %v1200, 0.0
        %v1462 = vsel %vm1426, %v1201, 0.0
        %v1463 = vsel %vm1427, %v1202, 0.0
        %v1464 = vsel %vm1428, %v1203, 0.0
        %v1465 = vsel %vm1429, %v1204, 0.0
        %v1466 = vsel %vm1430, %v1205, 0.0
        %vm1467 = vcmp.ge.s32.totalorder %v1207, 1
        %vm1468 = vcmp.ge.s32.totalorder %v1208, 1
        %v1469 = vrot.slane %v1431, 7
        %v1470 = vrot.slane %v1432, 7
        %v1471 = vrot.slane %v1433, 7
        %v1472 = vrot.slane %v1434, 7
        %v1473 = vrot.slane %v1435, 7
        %v1474 = vrot.slane %v1436, 7
        %v1475 = vrot.slane %v1437, 7
        %v1476 = vrot.slane %v1438, 7
        %v1477 = vrot.slane %v1439, 7
        %v1478 = vrot.slane %v1440, 7
        %v1479 = vrot.slane %v1441, 7
        %v1480 = vrot.slane %v1442, 7
        %v1481 = vrot.slane %v1443, 7
        %v1482 = vrot.slane %v1444, 7
        %v1483 = vrot.slane %v1445, 7
        %v1484 = vrot.slane %v1446, 7
        %v1485 = vrot.slane %v1447, 7
        %v1486 = vrot.slane %v1448, 7
        %v1487 = vrot.slane %v1449, 7
        %v1488 = vrot.slane %v1450, 7
        %v1489 = vrot.slane %v1451, 7
        %v1490 = vrot.slane %v1452, 7
        %v1491 = vrot.slane %v1453, 7
        %v1492 = vrot.slane %v1454, 7
        %v1493 = vrot.slane %v1455, 7
        %v1494 = vrot.slane %v1456, 7
        %v1495 = vrot.slane %v1457, 7
        %v1496 = vrot.slane %v1458, 7
        %v1497 = vrot.slane %v1459, 7
        %v1498 = vrot.slane %v1460, 7
        %v1499 = vrot.slane %v1461, 7
        %v1500 = vrot.slane %v1462, 7
        %v1501 = vrot.slane %v1463, 7
        %v1502 = vrot.slane %v1464, 7
        %v1503 = vrot.slane %v1465, 7
        %v1504 = vrot.slane %v1466, 7
        %vm1505 = vcmp.lt.s32.totalorder %v1207, 1
        %v1506 = vsel %vm1505, %v1503, %v1504
        %v1507 = vsel %vm1505, %v1502, %v1503
        %v1508 = vsel %vm1505, %v1501, %v1502
        %v1509 = vsel %vm1505, %v1500, %v1501
        %v1510 = vsel %vm1505, %v1499, %v1500
        %v1511 = vsel %vm1505, %v1498, %v1499
        %v1512 = vsel %vm1505, %v1497, %v1498
        %v1513 = vsel %vm1505, %v1496, %v1497
        %v1514 = vsel %vm1505, %v1495, %v1496
        %v1515 = vsel %vm1505, %v1494, %v1495
        %v1516 = vsel %vm1505, %v1493, %v1494
        %v1517 = vsel %vm1505, %v1492, %v1493
        %v1518 = vsel %vm1505, %v1491, %v1492
        %v1519 = vsel %vm1505, %v1490, %v1491
        %v1520 = vsel %vm1505, %v1489, %v1490
        %v1521 = vsel %vm1505, %v1488, %v1489
        %v1522 = vsel %vm1505, %v1487, %v1488
        %v1523 = vsel %vm1505, %v1486, %v1487
        %v1524 = vsel %vm1505, %v1485, %v1486
        %v1525 = vsel %vm1505, %v1484, %v1485
        %v1526 = vsel %vm1505, %v1483, %v1484
        %v1527 = vsel %vm1505, %v1482, %v1483
        %v1528 = vsel %vm1505, %v1481, %v1482
        %v1529 = vsel %vm1505, %v1480, %v1481
        %v1530 = vsel %vm1505, %v1479, %v1480
        %v1531 = vsel %vm1505, %v1478, %v1479
        %v1532 = vsel %vm1505, %v1477, %v1478
        %v1533 = vsel %vm1505, %v1476, %v1477
        %v1534 = vsel %vm1505, %v1475, %v1476
        %v1535 = vsel %vm1505, %v1474, %v1475
        %v1536 = vsel %vm1505, %v1473, %v1474
        %v1537 = vsel %vm1505, %v1472, %v1473
        %v1538 = vsel %vm1505, %v1471, %v1472
        %v1539 = vsel %vm1505, %v1470, %v1471
        %v1540 = vsel %vm1505, %v1469, %v1470
        %v1541 = vsel %vm1505, %v1504, %v1469
        %v1542 = vsel %vm1467, %v1541, 0.0
        %v1543 = vsel %vm1468, %v1540, 0.0
        %v1544 = vsel %vm1467, %v1539, 0.0
        %v1545 = vsel %vm1468, %v1538, 0.0
        %v1546 = vsel %vm1467, %v1537, 0.0
        %v1547 = vsel %vm1468, %v1536, 0.0
        %v1548 = vsel %vm1467, %v1535, 0.0
        %v1549 = vsel %vm1468, %v1534, 0.0
        %v1550 = vsel %vm1467, %v1533, 0.0
        %v1551 = vsel %vm1468, %v1532, 0.0
        %v1552 = vsel %vm1467, %v1531, 0.0
        %v1553 = vsel %vm1468, %v1530, 0.0
        %v1554 = vsel %vm1467, %v1529, 0.0
        %v1555 = vsel %vm1468, %v1528, 0.0
        %v1556 = vsel %vm1467, %v1527, 0.0
        %v1557 = vsel %vm1468, %v1526, 0.0
        %v1558 = vsel %vm1467, %v1525, 0.0
        %v1559 = vsel %vm1468, %v1524, 0.0
        %v1560 = vsel %vm1467, %v1523, 0.0
        %v1561 = vsel %vm1468, %v1522, 0.0
        %v1562 = vsel %vm1467, %v1521, 0.0
        %v1563 = vsel %vm1468, %v1520, 0.0
        %v1564 = vsel %vm1467, %v1519, 0.0
        %v1565 = vsel %vm1468, %v1518, 0.0
        %v1566 = vsel %vm1467, %v1517, 0.0
        %v1567 = vsel %vm1468, %v1516, 0.0
        %v1568 = vsel %vm1467, %v1515, 0.0
        %v1569 = vsel %vm1468, %v1514, 0.0
        %v1570 = vsel %vm1467, %v1513, 0.0
        %v1571 = vsel %vm1468, %v1512, 0.0
        %v1572 = vsel %vm1467, %v1511, 0.0
        %v1573 = vsel %vm1468, %v1510, 0.0
        %v1574 = vsel %vm1467, %v1509, 0.0
        %v1575 = vsel %vm1468, %v1508, 0.0
        %v1576 = vsel %vm1467, %v1507, 0.0
        %v1577 = vsel %vm1468, %v1506, 0.0
        %vm1578 = vcmp.le.s32.totalorder %v1207, 14
        %vm1579 = vcmp.le.s32.totalorder %v1208, 14
        %v1580 = vrot.slane %v1431, 1
        %v1581 = vrot.slane %v1432, 1
        %v1582 = vrot.slane %v1433, 1
        %v1583 = vrot.slane %v1434, 1
        %v1584 = vrot.slane %v1435, 1
        %v1585 = vrot.slane %v1436, 1
        %v1586 = vrot.slane %v1437, 1
        %v1587 = vrot.slane %v1438, 1
        %v1588 = vrot.slane %v1439, 1
        %v1589 = vrot.slane %v1440, 1
        %v1590 = vrot.slane %v1441, 1
        %v1591 = vrot.slane %v1442, 1
        %v1592 = vrot.slane %v1443, 1
        %v1593 = vrot.slane %v1444, 1
        %v1594 = vrot.slane %v1445, 1
        %v1595 = vrot.slane %v1446, 1
        %v1596 = vrot.slane %v1447, 1
        %v1597 = vrot.slane %v1448, 1
        %v1598 = vrot.slane %v1449, 1
        %v1599 = vrot.slane %v1450, 1
        %v1600 = vrot.slane %v1451, 1
        %v1601 = vrot.slane %v1452, 1
        %v1602 = vrot.slane %v1453, 1
        %v1603 = vrot.slane %v1454, 1
        %v1604 = vrot.slane %v1455, 1
        %v1605 = vrot.slane %v1456, 1
        %v1606 = vrot.slane %v1457, 1
        %v1607 = vrot.slane %v1458, 1
        %v1608 = vrot.slane %v1459, 1
        %v1609 = vrot.slane %v1460, 1
        %v1610 = vrot.slane %v1461, 1
        %v1611 = vrot.slane %v1462, 1
        %v1612 = vrot.slane %v1463, 1
        %v1613 = vrot.slane %v1464, 1
        %v1614 = vrot.slane %v1465, 1
        %v1615 = vrot.slane %v1466, 1
        %vm1616 = vcmp.lt.s32.totalorder %v1207, 7
        %v1617 = vsel %vm1616, %v1614, %v1615
        %v1618 = vsel %vm1616, %v1613, %v1614
        %v1619 = vsel %vm1616, %v1612, %v1613
        %v1620 = vsel %vm1616, %v1611, %v1612
        %v1621 = vsel %vm1616, %v1610, %v1611
        %v1622 = vsel %vm1616, %v1609, %v1610
        %v1623 = vsel %vm1616, %v1608, %v1609
        %v1624 = vsel %vm1616, %v1607, %v1608
        %v1625 = vsel %vm1616, %v1606, %v1607
        %v1626 = vsel %vm1616, %v1605, %v1606
        %v1627 = vsel %vm1616, %v1604, %v1605
        %v1628 = vsel %vm1616, %v1603, %v1604
        %v1629 = vsel %vm1616, %v1602, %v1603
        %v1630 = vsel %vm1616, %v1601, %v1602
        %v1631 = vsel %vm1616, %v1600, %v1601
        %v1632 = vsel %vm1616, %v1599, %v1600
        %v1633 = vsel %vm1616, %v1598, %v1599
        %v1634 = vsel %vm1616, %v1597, %v1598
        %v1635 = vsel %vm1616, %v1596, %v1597
        %v1636 = vsel %vm1616, %v1595, %v1596
        %v1637 = vsel %vm1616, %v1594, %v1595
        %v1638 = vsel %vm1616, %v1593, %v1594
        %v1639 = vsel %vm1616, %v1592, %v1593
        %v1640 = vsel %vm1616, %v1591, %v1592
        %v1641 = vsel %vm1616, %v1590, %v1591
        %v1642 = vsel %vm1616, %v1589, %v1590
        %v1643 = vsel %vm1616, %v1588, %v1589
        %v1644 = vsel %vm1616, %v1587, %v1588
        %v1645 = vsel %vm1616, %v1586, %v1587
        %v1646 = vsel %vm1616, %v1585, %v1586
        %v1647 = vsel %vm1616, %v1584, %v1585
        %v1648 = vsel %vm1616, %v1583, %v1584
        %v1649 = vsel %vm1616, %v1582, %v1583
        %v1650 = vsel %vm1616, %v1581, %v1582
        %v1651 = vsel %vm1616, %v1580, %v1581
        %v1652 = vsel %vm1616, %v1615, %v1580
        %v1653 = vsel %vm1578, %v1651, 0.0
        %v1654 = vsel %vm1579, %v1650, 0.0
        %v1655 = vsel %vm1578, %v1649, 0.0
        %v1656 = vsel %vm1579, %v1648, 0.0
        %v1657 = vsel %vm1578, %v1647, 0.0
        %v1658 = vsel %vm1579, %v1646, 0.0
        %v1659 = vsel %vm1578, %v1645, 0.0
        %v1660 = vsel %vm1579, %v1644, 0.0
        %v1661 = vsel %vm1578, %v1643, 0.0
        %v1662 = vsel %vm1579, %v1642, 0.0
        %v1663 = vsel %vm1578, %v1641, 0.0
        %v1664 = vsel %vm1579, %v1640, 0.0
        %v1665 = vsel %vm1578, %v1639, 0.0
        %v1666 = vsel %vm1579, %v1638, 0.0
        %v1667 = vsel %vm1578, %v1637, 0.0
        %v1668 = vsel %vm1579, %v1636, 0.0
        %v1669 = vsel %vm1578, %v1635, 0.0
        %v1670 = vsel %vm1579, %v1634, 0.0
        %v1671 = vsel %vm1578, %v1633, 0.0
        %v1672 = vsel %vm1579, %v1632, 0.0
        %v1673 = vsel %vm1578, %v1631, 0.0
        %v1674 = vsel %vm1579, %v1630, 0.0
        %v1675 = vsel %vm1578, %v1629, 0.0
        %v1676 = vsel %vm1579, %v1628, 0.0
        %v1677 = vsel %vm1578, %v1627, 0.0
        %v1678 = vsel %vm1579, %v1626, 0.0
        %v1679 = vsel %vm1578, %v1625, 0.0
        %v1680 = vsel %vm1579, %v1624, 0.0
        %v1681 = vsel %vm1578, %v1623, 0.0
        %v1682 = vsel %vm1579, %v1622, 0.0
        %v1683 = vsel %vm1578, %v1621, 0.0
        %v1684 = vsel %vm1579, %v1620, 0.0
        %v1685 = vsel %vm1578, %v1619, 0.0
        %v1686 = vsel %vm1579, %v1618, 0.0
        %v1687 = vsel %vm1578, %v1617, 0.0
        %v1688 = vsel %vm1579, %v1652, 0.0
        %v1689 = vpack.c.bf16 %v1543, %v1542
        %v1690 = vpack.c.bf16 %v1545, %v1544
        %v1691 = vpack.c.bf16 %v1547, %v1546
        %v1692 = vpack.c.bf16 %v1549, %v1548
        %v1693 = vpack.c.bf16 %v1551, %v1550
        %v1694 = vpack.c.bf16 %v1553, %v1552
        %v1695 = vpack.c.bf16 %v1555, %v1554
        %v1696 = vpack.c.bf16 %v1557, %v1556
        %v1697 = vpack.c.bf16 %v1559, %v1558
        %v1698 = vpack.c.bf16 %v1561, %v1560
        %v1699 = vpack.c.bf16 %v1563, %v1562
        %v1700 = vpack.c.bf16 %v1565, %v1564
        %v1701 = vpack.c.bf16 %v1567, %v1566
        %v1702 = vpack.c.bf16 %v1569, %v1568
        %v1703 = vpack.c.bf16 %v1571, %v1570
        %v1704 = vpack.c.bf16 %v1573, %v1572
        %v1705 = vpack.c.bf16 %v1575, %v1574
        %v1706 = vpack.c.bf16 %v1577, %v1576
        %v1707 = vpack.c.bf16 %v1432, %v1431
        %v1708 = vpack.c.bf16 %v1434, %v1433
        %v1709 = vpack.c.bf16 %v1436, %v1435
        %v1710 = vpack.c.bf16 %v1438, %v1437
        %v1711 = vpack.c.bf16 %v1440, %v1439
        %v1712 = vpack.c.bf16 %v1442, %v1441
        %v1713 = vpack.c.bf16 %v1444, %v1443
        %v1714 = vpack.c.bf16 %v1446, %v1445
        %v1715 = vpack.c.bf16 %v1448, %v1447
        %v1716 = vpack.c.bf16 %v1450, %v1449
        %v1717 = vpack.c.bf16 %v1452, %v1451
        %v1718 = vpack.c.bf16 %v1454, %v1453
        %v1719 = vpack.c.bf16 %v1456, %v1455
        %v1720 = vpack.c.bf16 %v1458, %v1457
        %v1721 = vpack.c.bf16 %v1460, %v1459
        %v1722 = vpack.c.bf16 %v1462, %v1461
        %v1723 = vpack.c.bf16 %v1464, %v1463
        %v1724 = vpack.c.bf16 %v1466, %v1465
        %v1725 = vpack.c.bf16 %v1654, %v1653
        %v1726 = vpack.c.bf16 %v1656, %v1655
        %v1727 = vpack.c.bf16 %v1658, %v1657
        %v1728 = vpack.c.bf16 %v1660, %v1659
        %v1729 = vpack.c.bf16 %v1662, %v1661
        %v1730 = vpack.c.bf16 %v1664, %v1663
        %v1731 = vpack.c.bf16 %v1666, %v1665
        %v1732 = vpack.c.bf16 %v1668, %v1667
        %v1733 = vpack.c.bf16 %v1670, %v1669
        %v1734 = vpack.c.bf16 %v1672, %v1671
        %v1735 = vpack.c.bf16 %v1674, %v1673
        %v1736 = vpack.c.bf16 %v1676, %v1675
        %v1737 = vpack.c.bf16 %v1678, %v1677
        %v1738 = vpack.c.bf16 %v1680, %v1679
        %v1739 = vpack.c.bf16 %v1682, %v1681
        %v1740 = vpack.c.bf16 %v1684, %v1683
        %v1741 = vpack.c.bf16 %v1686, %v1685
        %v1742 = vpack.c.bf16 %v1688, %v1687
        %v1743 = vld [vmem:[#allocation10] sm:$0xf]
        %v1744 = vld [vmem:[#allocation10 + $0x4] sm:$0xf]
        %v1745 = vld [vmem:[#allocation10 + $0x8] sm:$0xf]
        %v1746 = vld [vmem:[#allocation10 + $0xc] sm:$0xf]
        %v1747 = vld [vmem:[#allocation10 + $0x10] sm:$0xf]
        %v1748 = vld [vmem:[#allocation10 + $0x14] sm:$0xf]
        %v1749 = vld [vmem:[#allocation10 + $0x18] sm:$0xf]
        %v1750 = vld [vmem:[#allocation10 + $0x1c] sm:$0xf]
        %v1751 = vld [vmem:[#allocation10 + $0x20] sm:$0xf]
        %v1752 = vld [vmem:[#allocation10 + $0x24] sm:$0xf]
        %v1753 = vld [vmem:[#allocation10 + $0x28] sm:$0xf]
        %v1754 = vld [vmem:[#allocation10 + $0x2c] sm:$0xf]
        %v1755 = vld [vmem:[#allocation10 + $0x30] sm:$0xf]
        %v1756 = vld [vmem:[#allocation10 + $0x34] sm:$0xf]
        %v1757 = vld [vmem:[#allocation10 + $0x38] sm:$0xf]
        %v1758 = vld [vmem:[#allocation10 + $0x3c] sm:$0xf]
        %s1759 = scalar_lea.vmem [#allocation10], 64
        %v1760 = vld [vmem:[%s1759] sm:$0xf]
        %v1761 = vld [vmem:[%s1759 + $0x4] sm:$0xf]
        %v1762 = vld [vmem:[%s1759 + $0x8] sm:$0xf]
        %v1763 = vld [vmem:[%s1759 + $0xc] sm:$0xf]
        %v1764 = vld [vmem:[%s1759 + $0x10] sm:$0xf]
        %v1765 = vld [vmem:[%s1759 + $0x14] sm:$0xf]
        %v1766 = vld [vmem:[%s1759 + $0x18] sm:$0xf]
        %v1767 = vld [vmem:[%s1759 + $0x1c] sm:$0xf]
        %v1768 = vld [vmem:[%s1759 + $0x20] sm:$0xf]
        %v1769 = vld [vmem:[%s1759 + $0x24] sm:$0xf]
        %v1770 = vld [vmem:[%s1759 + $0x28] sm:$0xf]
        %v1771 = vld [vmem:[%s1759 + $0x2c] sm:$0xf]
        %v1772 = vld [vmem:[%s1759 + $0x30] sm:$0xf]
        %v1773 = vld [vmem:[%s1759 + $0x34] sm:$0xf]
        %v1774 = vld [vmem:[%s1759 + $0x38] sm:$0xf]
        %v1775 = vld [vmem:[%s1759 + $0x3c] sm:$0xf]
        %v1792 = vunpack.c.l.b16 %v1760
        %v1793 = vunpack.c.l.b16 %v1761
        %v1794 = vunpack.c.l.b16 %v1762
        %v1795 = vunpack.c.l.b16 %v1763
        %v1796 = vunpack.c.l.b16 %v1764
        %v1797 = vunpack.c.l.b16 %v1765
        %v1798 = vunpack.c.l.b16 %v1766
        %v1799 = vunpack.c.l.b16 %v1767
        %v1800 = vunpack.c.l.b16 %v1768
        %v1801 = vunpack.c.l.b16 %v1769
        %v1802 = vunpack.c.l.b16 %v1770
        %v1803 = vunpack.c.l.b16 %v1771
        %v1804 = vunpack.c.l.b16 %v1772
        %v1805 = vunpack.c.l.b16 %v1773
        %v1806 = vunpack.c.l.b16 %v1774
        %v1807 = vunpack.c.l.b16 %v1775
        %v1808 = vpack.c.b16 %v1793, %v1792
        %v1809 = vpack.c.b16 %v1795, %v1794
        %v1810 = vpack.c.b16 %v1797, %v1796
        %v1811 = vpack.c.b16 %v1799, %v1798
        %v1812 = vpack.c.b16 %v1801, %v1800
        %v1813 = vpack.c.b16 %v1803, %v1802
        %v1814 = vpack.c.b16 %v1805, %v1804
        %v1815 = vpack.c.b16 %v1807, %v1806
        %1824 = vmatprep.subr.bf16.mxu0 0
        %1825 = vmatpush1.bf16.msra.mxu0 %v1808
        %1826 = vmatprep.subr.bf16.mxu0 0
        %1827 = vmatpush1.bf16.msra.mxu0 %v1809
        %1828 = vmatprep.subr.bf16.mxu0 0
        %1829 = vmatpush1.bf16.msra.mxu0 %v1810
        %1830 = vmatprep.subr.bf16.mxu0 0
        %1831 = vmatpush1.bf16.msra.mxu0 %v1811
        %1832 = vmatprep.subr.bf16.mxu0 0
        %1833 = vmatpush1.bf16.msra.mxu0 %v1812
        %1834 = vmatprep.subr.bf16.mxu0 0
        %1835 = vmatpush1.bf16.msra.mxu0 %v1813
        %1836 = vmatprep.subr.bf16.mxu0 0
        %1837 = vmatpush1.bf16.msra.mxu0 %v1814
        %1838 = vmatprep.subr.bf16.mxu0 0
        %1839 = vmatpush1.bf16.msra.mxu0 %v1815
        %1840 = vmatprep.subr.bf16.mxu0 0
        %1841 = vmatpush1.bf16.msra.mxu0 0
        %1842 = vmatprep.subr.bf16.mxu0 0
        %1843 = vmatpush1.bf16.msra.mxu0 0
        %1844 = vmatprep.subr.bf16.mxu0 0
        %1845 = vmatpush1.bf16.msra.mxu0 0
        %1846 = vmatprep.subr.bf16.mxu0 0
        %1847 = vmatpush1.bf16.msra.mxu0 0
        %1848 = vmatprep.subr.bf16.mxu0 0
        %1849 = vmatpush1.bf16.msra.mxu0 0
        %1850 = vmatprep.subr.bf16.mxu0 0
        %1851 = vmatpush1.bf16.msra.mxu0 0
        %1852 = vmatprep.subr.bf16.mxu0 0
        %1853 = vmatpush1.bf16.msra.mxu0 0
        %1854 = vmatprep.subr.bf16.mxu0 0
        %1855 = vmatpush1.bf16.msra.mxu0 0
        %1856 = vmatprep.mubr.bf16.mxu0 0
        %1857 = vmatmul.mubr.bf16.gmra.mrb[0].mxu0 %v1707
        %v1858 = vpop.f32.mrb[0].mxu0
        %v1859 = vadd.f32 0.0, %v1858
        %v1860 = vpop.f32.mrb[0].mxu0
        %v1861 = vpop.f32.mrb[0].mxu0
        %v1862 = vadd.f32 0.0, %v1861
        %v1863 = vpop.f32.mrb[0].mxu0
        %1864 = vmatprep.mubr.bf16.mxu0 0
        %1865 = vmatmul.mubr.bf16.gmra.mrb[0].mxu0 %v1708
        %v1866 = vpop.f32.mrb[0].mxu0
        %v1867 = vadd.f32 0.0, %v1866
        %v1868 = vpop.f32.mrb[0].mxu0
        %v1869 = vpop.f32.mrb[0].mxu0
        %v1870 = vadd.f32 0.0, %v1869
        %v1871 = vpop.f32.mrb[0].mxu0
        %1872 = vmatprep.mubr.bf16.mxu0 0
        %1873 = vmatmul.mubr.bf16.gmra.mrb[0].mxu0 %v1709
        %v1874 = vpop.f32.mrb[0].mxu0
        %v1875 = vadd.f32 0.0, %v1874
        %v1876 = vpop.f32.mrb[0].mxu0
        %v1877 = vpop.f32.mrb[0].mxu0
        %v1878 = vadd.f32 0.0, %v1877
        %v1879 = vpop.f32.mrb[0].mxu0
        %1880 = vmatprep.mubr.bf16.mxu0 0
        %1881 = vmatmul.mubr.bf16.gmra.mrb[0].mxu0 %v1710
        %v1882 = vpop.f32.mrb[0].mxu0
        %v1883 = vadd.f32 0.0, %v1882
        %v1884 = vpop.f32.mrb[0].mxu0
        %v1885 = vpop.f32.mrb[0].mxu0
        %v1886 = vadd.f32 0.0, %v1885
        %v1887 = vpop.f32.mrb[0].mxu0
        %1888 = vmatprep.mubr.bf16.mxu0 0
        %1889 = vmatmul.mubr.bf16.gmra.mrb[0].mxu0 %v1711
        %v1890 = vpop.f32.mrb[0].mxu0
        %v1891 = vadd.f32 0.0, %v1890
        %v1892 = vpop.f32.mrb[0].mxu0
        %v1893 = vpop.f32.mrb[0].mxu0
        %v1894 = vadd.f32 0.0, %v1893
        %v1895 = vpop.f32.mrb[0].mxu0
        %1896 = vmatprep.mubr.bf16.mxu0 0
        %1897 = vmatmul.mubr.bf16.gmra.mrb[0].mxu0 %v1712
        %v1898 = vpop.f32.mrb[0].mxu0
        %v1899 = vadd.f32 0.0, %v1898
        %v1900 = vpop.f32.mrb[0].mxu0
        %v1901 = vpop.f32.mrb[0].mxu0
        %v1902 = vadd.f32 0.0, %v1901
        %v1903 = vpop.f32.mrb[0].mxu0
        %1904 = vmatprep.mubr.bf16.mxu0 0
        %1905 = vmatmul.mubr.bf16.gmra.mrb[0].mxu0 %v1713
        %v1906 = vpop.f32.mrb[0].mxu0
        %v1907 = vadd.f32 0.0, %v1906
        %v1908 = vpop.f32.mrb[0].mxu0
        %v1909 = vpop.f32.mrb[0].mxu0
        %v1910 = vadd.f32 0.0, %v1909
        %v1911 = vpop.f32.mrb[0].mxu0
        %1912 = vmatprep.mubr.bf16.mxu0 0
        %1913 = vmatmul.mubr.bf16.gmra.mrb[0].mxu0 %v1714
        %v1914 = vpop.f32.mrb[0].mxu0
        %v1915 = vadd.f32 0.0, %v1914
        %v1916 = vpop.f32.mrb[0].mxu0
        %v1917 = vpop.f32.mrb[0].mxu0
        %v1918 = vadd.f32 0.0, %v1917
        %v1919 = vpop.f32.mrb[0].mxu0
        %1920 = vmatprep.mubr.bf16.mxu0 0
        %1921 = vmatmul.mubr.bf16.gmra.mrb[0].mxu0 %v1715
        %v1922 = vpop.f32.mrb[0].mxu0
        %v1923 = vadd.f32 0.0, %v1922
        %v1924 = vpop.f32.mrb[0].mxu0
        %v1925 = vpop.f32.mrb[0].mxu0
        %v1926 = vadd.f32 0.0, %v1925
        %v1927 = vpop.f32.mrb[0].mxu0
        %1928 = vmatprep.mubr.bf16.mxu0 0
        %1929 = vmatmul.mubr.bf16.gmra.mrb[0].mxu0 %v1716
        %v1930 = vpop.f32.mrb[0].mxu0
        %v1931 = vadd.f32 0.0, %v1930
        %v1932 = vpop.f32.mrb[0].mxu0
        %v1933 = vpop.f32.mrb[0].mxu0
        %v1934 = vadd.f32 0.0, %v1933
        %v1935 = vpop.f32.mrb[0].mxu0
        %1936 = vmatprep.mubr.bf16.mxu0 0
        %1937 = vmatmul.mubr.bf16.gmra.mrb[0].mxu0 %v1717
        %v1938 = vpop.f32.mrb[0].mxu0
        %v1939 = vadd.f32 0.0, %v1938
        %v1940 = vpop.f32.mrb[0].mxu0
        %v1941 = vpop.f32.mrb[0].mxu0
        %v1942 = vadd.f32 0.0, %v1941
        %v1943 = vpop.f32.mrb[0].mxu0
        %1944 = vmatprep.mubr.bf16.mxu0 0
        %1945 = vmatmul.mubr.bf16.gmra.mrb[0].mxu0 %v1718
        %v1946 = vpop.f32.mrb[0].mxu0
        %v1947 = vadd.f32 0.0, %v1946
        %v1948 = vpop.f32.mrb[0].mxu0
        %v1949 = vpop.f32.mrb[0].mxu0
        %v1950 = vadd.f32 0.0, %v1949
        %v1951 = vpop.f32.mrb[0].mxu0
        %1952 = vmatprep.mubr.bf16.mxu0 0
        %1953 = vmatmul.mubr.bf16.gmra.mrb[0].mxu0 %v1719
        %v1954 = vpop.f32.mrb[0].mxu0
        %v1955 = vadd.f32 0.0, %v1954
        %v1956 = vpop.f32.mrb[0].mxu0
        %v1957 = vpop.f32.mrb[0].mxu0
        %v1958 = vadd.f32 0.0, %v1957
        %v1959 = vpop.f32.mrb[0].mxu0
        %1960 = vmatprep.mubr.bf16.mxu0 0
        %1961 = vmatmul.mubr.bf16.gmra.mrb[0].mxu0 %v1720
        %v1962 = vpop.f32.mrb[0].mxu0
        %v1963 = vadd.f32 0.0, %v1962
        %v1964 = vpop.f32.mrb[0].mxu0
        %v1965 = vpop.f32.mrb[0].mxu0
        %v1966 = vadd.f32 0.0, %v1965
        %v1967 = vpop.f32.mrb[0].mxu0
        %1968 = vmatprep.mubr.bf16.mxu0 0
        %1969 = vmatmul.mubr.bf16.gmra.mrb[0].mxu0 %v1721
        %v1970 = vpop.f32.mrb[0].mxu0
        %v1971 = vadd.f32 0.0, %v1970
        %v1972 = vpop.f32.mrb[0].mxu0
        %v1973 = vpop.f32.mrb[0].mxu0
        %v1974 = vadd.f32 0.0, %v1973
        %v1975 = vpop.f32.mrb[0].mxu0
        %1976 = vmatprep.mubr.bf16.mxu0 0
        %1977 = vmatmul.mubr.bf16.gmra.mrb[0].mxu0 %v1722
        %v1978 = vpop.f32.mrb[0].mxu0
        %v1979 = vadd.f32 0.0, %v1978
        %v1980 = vpop.f32.mrb[0].mxu0
        %v1981 = vpop.f32.mrb[0].mxu0
        %v1982 = vadd.f32 0.0, %v1981
        %v1983 = vpop.f32.mrb[0].mxu0
        %1984 = vdwg.mxu0
        %v2001 = vunpack.c.l.b16 %v1743
        %v2002 = vunpack.c.l.b16 %v1744
        %v2003 = vunpack.c.l.b16 %v1745
        %v2004 = vunpack.c.l.b16 %v1746
        %v2005 = vunpack.c.l.b16 %v1747
        %v2006 = vunpack.c.l.b16 %v1748
        %v2007 = vunpack.c.l.b16 %v1749
        %v2008 = vunpack.c.l.b16 %v1750
        %v2009 = vunpack.c.l.b16 %v1751
        %v2010 = vunpack.c.l.b16 %v1752
        %v2011 = vunpack.c.l.b16 %v1753
        %v2012 = vunpack.c.l.b16 %v1754
        %v2013 = vunpack.c.l.b16 %v1755
        %v2014 = vunpack.c.l.b16 %v1756
        %v2015 = vunpack.c.l.b16 %v1757
        %v2016 = vunpack.c.l.b16 %v1758
        %v2017 = vpack.c.b16 %v2002, %v2001
        %v2018 = vpack.c.b16 %v2004, %v2003
        %v2019 = vpack.c.b16 %v2006, %v2005
        %v2020 = vpack.c.b16 %v2008, %v2007
        %v2021 = vpack.c.b16 %v2010, %v2009
        %v2022 = vpack.c.b16 %v2012, %v2011
        %v2023 = vpack.c.b16 %v2014, %v2013
        %v2024 = vpack.c.b16 %v2016, %v2015
        %2033 = vmatprep.subr.bf16.mxu0 0
        %2034 = vmatpush1.bf16.msra.mxu0 %v2017
        %2035 = vmatprep.subr.bf16.mxu0 0
        %2036 = vmatpush1.bf16.msra.mxu0 %v2018
        %2037 = vmatprep.subr.bf16.mxu0 0
        %2038 = vmatpush1.bf16.msra.mxu0 %v2019
        %2039 = vmatprep.subr.bf16.mxu0 0
        %2040 = vmatpush1.bf16.msra.mxu0 %v2020
        %2041 = vmatprep.subr.bf16.mxu0 0
        %2042 = vmatpush1.bf16.msra.mxu0 %v2021
        %2043 = vmatprep.subr.bf16.mxu0 0
        %2044 = vmatpush1.bf16.msra.mxu0 %v2022
        %2045 = vmatprep.subr.bf16.mxu0 0
        %2046 = vmatpush1.bf16.msra.mxu0 %v2023
        %2047 = vmatprep.subr.bf16.mxu0 0
        %2048 = vmatpush1.bf16.msra.mxu0 %v2024
        %2049 = vmatprep.subr.bf16.mxu0 0
        %2050 = vmatpush1.bf16.msra.mxu0 0
        %2051 = vmatprep.subr.bf16.mxu0 0
        %2052 = vmatpush1.bf16.msra.mxu0 0
        %2053 = vmatprep.subr.bf16.mxu0 0
        %2054 = vmatpush1.bf16.msra.mxu0 0
        %2055 = vmatprep.subr.bf16.mxu0 0
        %2056 = vmatpush1.bf16.msra.mxu0 0
        %2057 = vmatprep.subr.bf16.mxu0 0
        %2058 = vmatpush1.bf16.msra.mxu0 0
        %2059 = vmatprep.subr.bf16.mxu0 0
        %2060 = vmatpush1.bf16.msra.mxu0 0
        %2061 = vmatprep.subr.bf16.mxu0 0
        %2062 = vmatpush1.bf16.msra.mxu0 0
        %2063 = vmatprep.subr.bf16.mxu0 0
        %2064 = vmatpush1.bf16.msra.mxu0 0
        %2065 = vmatprep.mubr.bf16.mxu0 0
        %2066 = vmatmul.mubr.bf16.gmra.mrb[0].mxu0 %v1689
        %v2067 = vpop.f32.mrb[0].mxu0
        %v2068 = vadd.f32 %v1859, %v2067
        %v2069 = vpop.f32.mrb[0].mxu0
        %v2070 = vpop.f32.mrb[0].mxu0
        %v2071 = vadd.f32 %v1862, %v2070
        %v2072 = vpop.f32.mrb[0].mxu0
        %2073 = vmatprep.mubr.bf16.mxu0 0
        %2074 = vmatmul.mubr.bf16.gmra.mrb[0].mxu0 %v1690
        %v2075 = vpop.f32.mrb[0].mxu0
        %v2076 = vadd.f32 %v1867, %v2075
        %v2077 = vpop.f32.mrb[0].mxu0
        %v2078 = vpop.f32.mrb[0].mxu0
        %v2079 = vadd.f32 %v1870, %v2078
        %v2080 = vpop.f32.mrb[0].mxu0
        %2081 = vmatprep.mubr.bf16.mxu0 0
        %2082 = vmatmul.mubr.bf16.gmra.mrb[0].mxu0 %v1691
        %v2083 = vpop.f32.mrb[0].mxu0
        %v2084 = vadd.f32 %v1875, %v2083
        %v2085 = vpop.f32.mrb[0].mxu0
        %v2086 = vpop.f32.mrb[0].mxu0
        %v2087 = vadd.f32 %v1878, %v2086
        %v2088 = vpop.f32.mrb[0].mxu0
        %2089 = vmatprep.mubr.bf16.mxu0 0
        %2090 = vmatmul.mubr.bf16.gmra.mrb[0].mxu0 %v1692
        %v2091 = vpop.f32.mrb[0].mxu0
        %v2092 = vadd.f32 %v1883, %v2091
        %v2093 = vpop.f32.mrb[0].mxu0
        %v2094 = vpop.f32.mrb[0].mxu0
        %v2095 = vadd.f32 %v1886, %v2094
        %v2096 = vpop.f32.mrb[0].mxu0
        %2097 = vmatprep.mubr.bf16.mxu0 0
        %2098 = vmatmul.mubr.bf16.gmra.mrb[0].mxu0 %v1693
        %v2099 = vpop.f32.mrb[0].mxu0
        %v2100 = vadd.f32 %v1891, %v2099
        %v2101 = vpop.f32.mrb[0].mxu0
        %v2102 = vpop.f32.mrb[0].mxu0
        %v2103 = vadd.f32 %v1894, %v2102
        %v2104 = vpop.f32.mrb[0].mxu0
        %2105 = vmatprep.mubr.bf16.mxu0 0
        %2106 = vmatmul.mubr.bf16.gmra.mrb[0].mxu0 %v1694
        %v2107 = vpop.f32.mrb[0].mxu0
        %v2108 = vadd.f32 %v1899, %v2107
        %v2109 = vpop.f32.mrb[0].mxu0
        %v2110 = vpop.f32.mrb[0].mxu0
        %v2111 = vadd.f32 %v1902, %v2110
        %v2112 = vpop.f32.mrb[0].mxu0
        %2113 = vmatprep.mubr.bf16.mxu0 0
        %2114 = vmatmul.mubr.bf16.gmra.mrb[0].mxu0 %v1695
        %v2115 = vpop.f32.mrb[0].mxu0
        %v2116 = vadd.f32 %v1907, %v2115
        %v2117 = vpop.f32.mrb[0].mxu0
        %v2118 = vpop.f32.mrb[0].mxu0
        %v2119 = vadd.f32 %v1910, %v2118
        %v2120 = vpop.f32.mrb[0].mxu0
        %2121 = vmatprep.mubr.bf16.mxu0 0
        %2122 = vmatmul.mubr.bf16.gmra.mrb[0].mxu0 %v1696
        %v2123 = vpop.f32.mrb[0].mxu0
        %v2124 = vadd.f32 %v1915, %v2123
        %v2125 = vpop.f32.mrb[0].mxu0
        %v2126 = vpop.f32.mrb[0].mxu0
        %v2127 = vadd.f32 %v1918, %v2126
        %v2128 = vpop.f32.mrb[0].mxu0
        %2129 = vmatprep.mubr.bf16.mxu0 0
        %2130 = vmatmul.mubr.bf16.gmra.mrb[0].mxu0 %v1697
        %v2131 = vpop.f32.mrb[0].mxu0
        %v2132 = vadd.f32 %v1923, %v2131
        %v2133 = vpop.f32.mrb[0].mxu0
        %v2134 = vpop.f32.mrb[0].mxu0
        %v2135 = vadd.f32 %v1926, %v2134
        %v2136 = vpop.f32.mrb[0].mxu0
        %2137 = vmatprep.mubr.bf16.mxu0 0
        %2138 = vmatmul.mubr.bf16.gmra.mrb[0].mxu0 %v1698
        %v2139 = vpop.f32.mrb[0].mxu0
        %v2140 = vadd.f32 %v1931, %v2139
        %v2141 = vpop.f32.mrb[0].mxu0
        %v2142 = vpop.f32.mrb[0].mxu0
        %v2143 = vadd.f32 %v1934, %v2142
        %v2144 = vpop.f32.mrb[0].mxu0
        %2145 = vmatprep.mubr.bf16.mxu0 0
        %2146 = vmatmul.mubr.bf16.gmra.mrb[0].mxu0 %v1699
        %v2147 = vpop.f32.mrb[0].mxu0
        %v2148 = vadd.f32 %v1939, %v2147
        %v2149 = vpop.f32.mrb[0].mxu0
        %v2150 = vpop.f32.mrb[0].mxu0
        %v2151 = vadd.f32 %v1942, %v2150
        %v2152 = vpop.f32.mrb[0].mxu0
        %2153 = vmatprep.mubr.bf16.mxu0 0
        %2154 = vmatmul.mubr.bf16.gmra.mrb[0].mxu0 %v1700
        %v2155 = vpop.f32.mrb[0].mxu0
        %v2156 = vadd.f32 %v1947, %v2155
        %v2157 = vpop.f32.mrb[0].mxu0
        %v2158 = vpop.f32.mrb[0].mxu0
        %v2159 = vadd.f32 %v1950, %v2158
        %v2160 = vpop.f32.mrb[0].mxu0
        %2161 = vmatprep.mubr.bf16.mxu0 0
        %2162 = vmatmul.mubr.bf16.gmra.mrb[0].mxu0 %v1701
        %v2163 = vpop.f32.mrb[0].mxu0
        %v2164 = vadd.f32 %v1955, %v2163
        %v2165 = vpop.f32.mrb[0].mxu0
        %v2166 = vpop.f32.mrb[0].mxu0
        %v2167 = vadd.f32 %v1958, %v2166
        %v2168 = vpop.f32.mrb[0].mxu0
        %2169 = vmatprep.mubr.bf16.mxu0 0
        %2170 = vmatmul.mubr.bf16.gmra.mrb[0].mxu0 %v1702
        %v2171 = vpop.f32.mrb[0].mxu0
        %v2172 = vadd.f32 %v1963, %v2171
        %v2173 = vpop.f32.mrb[0].mxu0
        %v2174 = vpop.f32.mrb[0].mxu0
        %v2175 = vadd.f32 %v1966, %v2174
        %v2176 = vpop.f32.mrb[0].mxu0
        %2177 = vmatprep.mubr.bf16.mxu0 0
        %2178 = vmatmul.mubr.bf16.gmra.mrb[0].mxu0 %v1703
        %v2179 = vpop.f32.mrb[0].mxu0
        %v2180 = vadd.f32 %v1971, %v2179
        %v2181 = vpop.f32.mrb[0].mxu0
        %v2182 = vpop.f32.mrb[0].mxu0
        %v2183 = vadd.f32 %v1974, %v2182
        %v2184 = vpop.f32.mrb[0].mxu0
        %2185 = vmatprep.mubr.bf16.mxu0 0
        %2186 = vmatmul.mubr.bf16.gmra.mrb[0].mxu0 %v1704
        %v2187 = vpop.f32.mrb[0].mxu0
        %v2188 = vadd.f32 %v1979, %v2187
        %v2189 = vpop.f32.mrb[0].mxu0
        %v2190 = vpop.f32.mrb[0].mxu0
        %v2191 = vadd.f32 %v1982, %v2190
        %v2192 = vpop.f32.mrb[0].mxu0
        %2193 = vdwg.mxu0
        %s2194 = scalar_lea.vmem [#allocation10], 128
        %v2195 = vld [vmem:[%s2194] sm:$0xf]
        %v2196 = vld [vmem:[%s2194 + $0x4] sm:$0xf]
        %v2197 = vld [vmem:[%s2194 + $0x8] sm:$0xf]
        %v2198 = vld [vmem:[%s2194 + $0xc] sm:$0xf]
        %v2199 = vld [vmem:[%s2194 + $0x10] sm:$0xf]
        %v2200 = vld [vmem:[%s2194 + $0x14] sm:$0xf]
        %v2201 = vld [vmem:[%s2194 + $0x18] sm:$0xf]
        %v2202 = vld [vmem:[%s2194 + $0x1c] sm:$0xf]
        %v2203 = vld [vmem:[%s2194 + $0x20] sm:$0xf]
        %v2204 = vld [vmem:[%s2194 + $0x24] sm:$0xf]
        %v2205 = vld [vmem:[%s2194 + $0x28] sm:$0xf]
        %v2206 = vld [vmem:[%s2194 + $0x2c] sm:$0xf]
        %v2207 = vld [vmem:[%s2194 + $0x30] sm:$0xf]
        %v2208 = vld [vmem:[%s2194 + $0x34] sm:$0xf]
        %v2209 = vld [vmem:[%s2194 + $0x38] sm:$0xf]
        %v2210 = vld [vmem:[%s2194 + $0x3c] sm:$0xf]
        %v2227 = vunpack.c.l.b16 %v2195
        %v2228 = vunpack.c.l.b16 %v2196
        %v2229 = vunpack.c.l.b16 %v2197
        %v2230 = vunpack.c.l.b16 %v2198
        %v2231 = vunpack.c.l.b16 %v2199
        %v2232 = vunpack.c.l.b16 %v2200
        %v2233 = vunpack.c.l.b16 %v2201
        %v2234 = vunpack.c.l.b16 %v2202
        %v2235 = vunpack.c.l.b16 %v2203
        %v2236 = vunpack.c.l.b16 %v2204
        %v2237 = vunpack.c.l.b16 %v2205
        %v2238 = vunpack.c.l.b16 %v2206
        %v2239 = vunpack.c.l.b16 %v2207
        %v2240 = vunpack.c.l.b16 %v2208
        %v2241 = vunpack.c.l.b16 %v2209
        %v2242 = vunpack.c.l.b16 %v2210
        %v2243 = vpack.c.b16 %v2228, %v2227
        %v2244 = vpack.c.b16 %v2230, %v2229
        %v2245 = vpack.c.b16 %v2232, %v2231
        %v2246 = vpack.c.b16 %v2234, %v2233
        %v2247 = vpack.c.b16 %v2236, %v2235
        %v2248 = vpack.c.b16 %v2238, %v2237
        %v2249 = vpack.c.b16 %v2240, %v2239
        %v2250 = vpack.c.b16 %v2242, %v2241
        %2259 = vmatprep.subr.bf16.mxu0 0
        %2260 = vmatpush1.bf16.msra.mxu0 %v2243
        %2261 = vmatprep.subr.bf16.mxu0 0
        %2262 = vmatpush1.bf16.msra.mxu0 %v2244
        %2263 = vmatprep.subr.bf16.mxu0 0
        %2264 = vmatpush1.bf16.msra.mxu0 %v2245
        %2265 = vmatprep.subr.bf16.mxu0 0
        %2266 = vmatpush1.bf16.msra.mxu0 %v2246
        %2267 = vmatprep.subr.bf16.mxu0 0
        %2268 = vmatpush1.bf16.msra.mxu0 %v2247
        %2269 = vmatprep.subr.bf16.mxu0 0
        %2270 = vmatpush1.bf16.msra.mxu0 %v2248
        %2271 = vmatprep.subr.bf16.mxu0 0
        %2272 = vmatpush1.bf16.msra.mxu0 %v2249
        %2273 = vmatprep.subr.bf16.mxu0 0
        %2274 = vmatpush1.bf16.msra.mxu0 %v2250
        %2275 = vmatprep.subr.bf16.mxu0 0
        %2276 = vmatpush1.bf16.msra.mxu0 0
        %2277 = vmatprep.subr.bf16.mxu0 0
        %2278 = vmatpush1.bf16.msra.mxu0 0
        %2279 = vmatprep.subr.bf16.mxu0 0
        %2280 = vmatpush1.bf16.msra.mxu0 0
        %2281 = vmatprep.subr.bf16.mxu0 0
        %2282 = vmatpush1.bf16.msra.mxu0 0
        %2283 = vmatprep.subr.bf16.mxu0 0
        %2284 = vmatpush1.bf16.msra.mxu0 0
        %2285 = vmatprep.subr.bf16.mxu0 0
        %2286 = vmatpush1.bf16.msra.mxu0 0
        %2287 = vmatprep.subr.bf16.mxu0 0
        %2288 = vmatpush1.bf16.msra.mxu0 0
        %2289 = vmatprep.subr.bf16.mxu0 0
        %2290 = vmatpush1.bf16.msra.mxu0 0
        %2291 = vmatprep.mubr.bf16.mxu0 0
        %2292 = vmatmul.mubr.bf16.gmra.mrb[0].mxu0 %v1725
        %v2293 = vpop.f32.mrb[0].mxu0
        %v2294 = vadd.f32 0.0, %v2293
        %v2295 = vpop.f32.mrb[0].mxu0
        %v2296 = vpop.f32.mrb[0].mxu0
        %v2297 = vadd.f32 0.0, %v2296
        %v2298 = vpop.f32.mrb[0].mxu0
        %2299 = vmatprep.mubr.bf16.mxu0 0
        %2300 = vmatmul.mubr.bf16.gmra.mrb[0].mxu0 %v1726
        %v2301 = vpop.f32.mrb[0].mxu0
        %v2302 = vadd.f32 0.0, %v2301
        %v2303 = vpop.f32.mrb[0].mxu0
        %v2304 = vpop.f32.mrb[0].mxu0
        %v2305 = vadd.f32 0.0, %v2304
        %v2306 = vpop.f32.mrb[0].mxu0
        %2307 = vmatprep.mubr.bf16.mxu0 0
        %2308 = vmatmul.mubr.bf16.gmra.mrb[0].mxu0 %v1727
        %v2309 = vpop.f32.mrb[0].mxu0
        %v2310 = vadd.f32 0.0, %v2309
        %v2311 = vpop.f32.mrb[0].mxu0
        %v2312 = vpop.f32.mrb[0].mxu0
        %v2313 = vadd.f32 0.0, %v2312
        %v2314 = vpop.f32.mrb[0].mxu0
        %2315 = vmatprep.mubr.bf16.mxu0 0
        %2316 = vmatmul.mubr.bf16.gmra.mrb[0].mxu0 %v1728
        %v2317 = vpop.f32.mrb[0].mxu0
        %v2318 = vadd.f32 0.0, %v2317
        %v2319 = vpop.f32.mrb[0].mxu0
        %v2320 = vpop.f32.mrb[0].mxu0
        %v2321 = vadd.f32 0.0, %v2320
        %v2322 = vpop.f32.mrb[0].mxu0
        %2323 = vmatprep.mubr.bf16.mxu0 0
        %2324 = vmatmul.mubr.bf16.gmra.mrb[0].mxu0 %v1729
        %v2325 = vpop.f32.mrb[0].mxu0
        %v2326 = vadd.f32 0.0, %v2325
        %v2327 = vpop.f32.mrb[0].mxu0
        %v2328 = vpop.f32.mrb[0].mxu0
        %v2329 = vadd.f32 0.0, %v2328
        %v2330 = vpop.f32.mrb[0].mxu0
        %2331 = vmatprep.mubr.bf16.mxu0 0
        %2332 = vmatmul.mubr.bf16.gmra.mrb[0].mxu0 %v1730
        %v2333 = vpop.f32.mrb[0].mxu0
        %v2334 = vadd.f32 0.0, %v2333
        %v2335 = vpop.f32.mrb[0].mxu0
        %v2336 = vpop.f32.mrb[0].mxu0
        %v2337 = vadd.f32 0.0, %v2336
        %v2338 = vpop.f32.mrb[0].mxu0
        %2339 = vmatprep.mubr.bf16.mxu0 0
        %2340 = vmatmul.mubr.bf16.gmra.mrb[0].mxu0 %v1731
        %v2341 = vpop.f32.mrb[0].mxu0
        %v2342 = vadd.f32 0.0, %v2341
        %v2343 = vpop.f32.mrb[0].mxu0
        %v2344 = vpop.f32.mrb[0].mxu0
        %v2345 = vadd.f32 0.0, %v2344
        %v2346 = vpop.f32.mrb[0].mxu0
        %2347 = vmatprep.mubr.bf16.mxu0 0
        %2348 = vmatmul.mubr.bf16.gmra.mrb[0].mxu0 %v1732
        %v2349 = vpop.f32.mrb[0].mxu0
        %v2350 = vadd.f32 0.0, %v2349
        %v2351 = vpop.f32.mrb[0].mxu0
        %v2352 = vpop.f32.mrb[0].mxu0
        %v2353 = vadd.f32 0.0, %v2352
        %v2354 = vpop.f32.mrb[0].mxu0
        %2355 = vmatprep.mubr.bf16.mxu0 0
        %2356 = vmatmul.mubr.bf16.gmra.mrb[0].mxu0 %v1733
        %v2357 = vpop.f32.mrb[0].mxu0
        %v2358 = vadd.f32 0.0, %v2357
        %v2359 = vpop.f32.mrb[0].mxu0
        %v2360 = vpop.f32.mrb[0].mxu0
        %v2361 = vadd.f32 0.0, %v2360
        %v2362 = vpop.f32.mrb[0].mxu0
        %2363 = vmatprep.mubr.bf16.mxu0 0
        %2364 = vmatmul.mubr.bf16.gmra.mrb[0].mxu0 %v1734
        %v2365 = vpop.f32.mrb[0].mxu0
        %v2366 = vadd.f32 0.0, %v2365
        %v2367 = vpop.f32.mrb[0].mxu0
        %v2368 = vpop.f32.mrb[0].mxu0
        %v2369 = vadd.f32 0.0, %v2368
        %v2370 = vpop.f32.mrb[0].mxu0
        %2371 = vmatprep.mubr.bf16.mxu0 0
        %2372 = vmatmul.mubr.bf16.gmra.mrb[0].mxu0 %v1735
        %v2373 = vpop.f32.mrb[0].mxu0
        %v2374 = vadd.f32 0.0, %v2373
        %v2375 = vpop.f32.mrb[0].mxu0
        %v2376 = vpop.f32.mrb[0].mxu0
        %v2377 = vadd.f32 0.0, %v2376
        %v2378 = vpop.f32.mrb[0].mxu0
        %2379 = vmatprep.mubr.bf16.mxu0 0
        %2380 = vmatmul.mubr.bf16.gmra.mrb[0].mxu0 %v1736
        %v2381 = vpop.f32.mrb[0].mxu0
        %v2382 = vadd.f32 0.0, %v2381
        %v2383 = vpop.f32.mrb[0].mxu0
        %v2384 = vpop.f32.mrb[0].mxu0
        %v2385 = vadd.f32 0.0, %v2384
        %v2386 = vpop.f32.mrb[0].mxu0
        %2387 = vmatprep.mubr.bf16.mxu0 0
        %2388 = vmatmul.mubr.bf16.gmra.mrb[0].mxu0 %v1737
        %v2389 = vpop.f32.mrb[0].mxu0
        %v2390 = vadd.f32 0.0, %v2389
        %v2391 = vpop.f32.mrb[0].mxu0
        %v2392 = vpop.f32.mrb[0].mxu0
        %v2393 = vadd.f32 0.0, %v2392
        %v2394 = vpop.f32.mrb[0].mxu0
        %2395 = vmatprep.mubr.bf16.mxu0 0
        %2396 = vmatmul.mubr.bf16.gmra.mrb[0].mxu0 %v1738
        %v2397 = vpop.f32.mrb[0].mxu0
        %v2398 = vadd.f32 0.0, %v2397
        %v2399 = vpop.f32.mrb[0].mxu0
        %v2400 = vpop.f32.mrb[0].mxu0
        %v2401 = vadd.f32 0.0, %v2400
        %v2402 = vpop.f32.mrb[0].mxu0
        %2403 = vmatprep.mubr.bf16.mxu0 0
        %2404 = vmatmul.mubr.bf16.gmra.mrb[0].mxu0 %v1739
        %v2405 = vpop.f32.mrb[0].mxu0
        %v2406 = vadd.f32 0.0, %v2405
        %v2407 = vpop.f32.mrb[0].mxu0
        %v2408 = vpop.f32.mrb[0].mxu0
        %v2409 = vadd.f32 0.0, %v2408
        %v2410 = vpop.f32.mrb[0].mxu0
        %2411 = vmatprep.mubr.bf16.mxu0 0
        %2412 = vmatmul.mubr.bf16.gmra.mrb[0].mxu0 %v1740
        %v2413 = vpop.f32.mrb[0].mxu0
        %v2414 = vadd.f32 0.0, %v2413
        %v2415 = vpop.f32.mrb[0].mxu0
        %v2416 = vpop.f32.mrb[0].mxu0
        %v2417 = vadd.f32 0.0, %v2416
        %v2418 = vpop.f32.mrb[0].mxu0
        %2419 = vdwg.mxu0
        %v2420 = vadd.f32 %v2068, %v2294
        %v2421 = vadd.f32 %v2071, %v2297
        %v2422 = vadd.f32 %v2076, %v2302
        %v2423 = vadd.f32 %v2079, %v2305
        %v2424 = vadd.f32 %v2084, %v2310
        %v2425 = vadd.f32 %v2087, %v2313
        %v2426 = vadd.f32 %v2092, %v2318
        %v2427 = vadd.f32 %v2095, %v2321
        %v2428 = vadd.f32 %v2100, %v2326
        %v2429 = vadd.f32 %v2103, %v2329
        %v2430 = vadd.f32 %v2108, %v2334
        %v2431 = vadd.f32 %v2111, %v2337
        %v2432 = vadd.f32 %v2116, %v2342
        %v2433 = vadd.f32 %v2119, %v2345
        %v2434 = vadd.f32 %v2124, %v2350
        %v2435 = vadd.f32 %v2127, %v2353
        %v2436 = vadd.f32 %v2132, %v2358
        %v2437 = vadd.f32 %v2135, %v2361
        %v2438 = vadd.f32 %v2140, %v2366
        %v2439 = vadd.f32 %v2143, %v2369
        %v2440 = vadd.f32 %v2148, %v2374
        %v2441 = vadd.f32 %v2151, %v2377
        %v2442 = vadd.f32 %v2156, %v2382
        %v2443 = vadd.f32 %v2159, %v2385
        %v2444 = vadd.f32 %v2164, %v2390
        %v2445 = vadd.f32 %v2167, %v2393
        %v2446 = vadd.f32 %v2172, %v2398
        %v2447 = vadd.f32 %v2175, %v2401
        %v2448 = vadd.f32 %v2180, %v2406
        %v2449 = vadd.f32 %v2183, %v2409
        %v2450 = vadd.f32 %v2188, %v2414
        %v2451 = vadd.f32 %v2191, %v2417
        %s2452 = scalar_lea.vmem [#allocation10], 192
        %v2453 = vld [vmem:[%s2452] sm:$0xf]
        %v2454 = vld [vmem:[%s2452 + $0x4] sm:$0xf]
        %v2455 = vld [vmem:[%s2452 + $0x8] sm:$0xf]
        %v2456 = vld [vmem:[%s2452 + $0xc] sm:$0xf]
        %v2457 = vld [vmem:[%s2452 + $0x10] sm:$0xf]
        %v2458 = vld [vmem:[%s2452 + $0x14] sm:$0xf]
        %v2459 = vld [vmem:[%s2452 + $0x18] sm:$0xf]
        %v2460 = vld [vmem:[%s2452 + $0x1c] sm:$0xf]
        %v2461 = vld [vmem:[%s2452 + $0x20] sm:$0xf]
        %v2462 = vld [vmem:[%s2452 + $0x24] sm:$0xf]
        %v2463 = vld [vmem:[%s2452 + $0x28] sm:$0xf]
        %v2464 = vld [vmem:[%s2452 + $0x2c] sm:$0xf]
        %v2465 = vld [vmem:[%s2452 + $0x30] sm:$0xf]
        %v2466 = vld [vmem:[%s2452 + $0x34] sm:$0xf]
        %v2467 = vld [vmem:[%s2452 + $0x38] sm:$0xf]
        %v2468 = vld [vmem:[%s2452 + $0x3c] sm:$0xf]
        %v2485 = vunpack.c.l.b16 %v2453
        %v2486 = vunpack.c.l.b16 %v2454
        %v2487 = vunpack.c.l.b16 %v2455
        %v2488 = vunpack.c.l.b16 %v2456
        %v2489 = vunpack.c.l.b16 %v2457
        %v2490 = vunpack.c.l.b16 %v2458
        %v2491 = vunpack.c.l.b16 %v2459
        %v2492 = vunpack.c.l.b16 %v2460
        %v2493 = vunpack.c.l.b16 %v2461
        %v2494 = vunpack.c.l.b16 %v2462
        %v2495 = vunpack.c.l.b16 %v2463
        %v2496 = vunpack.c.l.b16 %v2464
        %v2497 = vunpack.c.l.b16 %v2465
        %v2498 = vunpack.c.l.b16 %v2466
        %v2499 = vunpack.c.l.b16 %v2467
        %v2500 = vunpack.c.l.b16 %v2468
        %v2501 = vpack.c.b16 %v2486, %v2485
        %v2502 = vpack.c.b16 %v2488, %v2487
        %v2503 = vpack.c.b16 %v2490, %v2489
        %v2504 = vpack.c.b16 %v2492, %v2491
        %v2505 = vpack.c.b16 %v2494, %v2493
        %v2506 = vpack.c.b16 %v2496, %v2495
        %v2507 = vpack.c.b16 %v2498, %v2497
        %v2508 = vpack.c.b16 %v2500, %v2499
        %2517 = vmatprep.subr.bf16.mxu0 0
        %2518 = vmatpush1.bf16.msra.mxu0 %v2501
        %2519 = vmatprep.subr.bf16.mxu0 0
        %2520 = vmatpush1.bf16.msra.mxu0 %v2502
        %2521 = vmatprep.subr.bf16.mxu0 0
        %2522 = vmatpush1.bf16.msra.mxu0 %v2503
        %2523 = vmatprep.subr.bf16.mxu0 0
        %2524 = vmatpush1.bf16.msra.mxu0 %v2504
        %2525 = vmatprep.subr.bf16.mxu0 0
        %2526 = vmatpush1.bf16.msra.mxu0 %v2505
        %2527 = vmatprep.subr.bf16.mxu0 0
        %2528 = vmatpush1.bf16.msra.mxu0 %v2506
        %2529 = vmatprep.subr.bf16.mxu0 0
        %2530 = vmatpush1.bf16.msra.mxu0 %v2507
        %2531 = vmatprep.subr.bf16.mxu0 0
        %2532 = vmatpush1.bf16.msra.mxu0 %v2508
        %2533 = vmatprep.subr.bf16.mxu0 0
        %2534 = vmatpush1.bf16.msra.mxu0 0
        %2535 = vmatprep.subr.bf16.mxu0 0
        %2536 = vmatpush1.bf16.msra.mxu0 0
        %2537 = vmatprep.subr.bf16.mxu0 0
        %2538 = vmatpush1.bf16.msra.mxu0 0
        %2539 = vmatprep.subr.bf16.mxu0 0
        %2540 = vmatpush1.bf16.msra.mxu0 0
        %2541 = vmatprep.subr.bf16.mxu0 0
        %2542 = vmatpush1.bf16.msra.mxu0 0
        %2543 = vmatprep.subr.bf16.mxu0 0
        %2544 = vmatpush1.bf16.msra.mxu0 0
        %2545 = vmatprep.subr.bf16.mxu0 0
        %2546 = vmatpush1.bf16.msra.mxu0 0
        %2547 = vmatprep.subr.bf16.mxu0 0
        %2548 = vmatpush1.bf16.msra.mxu0 0
        %2549 = vmatprep.mubr.bf16.mxu0 0
        %2550 = vmatmul.mubr.bf16.gmra.mrb[0].mxu0 %v1690
        %v2551 = vpop.f32.mrb[0].mxu0
        %v2552 = vadd.f32 0.0, %v2551
        %v2553 = vpop.f32.mrb[0].mxu0
        %v2554 = vpop.f32.mrb[0].mxu0
        %v2555 = vadd.f32 0.0, %v2554
        %v2556 = vpop.f32.mrb[0].mxu0
        %2557 = vmatprep.mubr.bf16.mxu0 0
        %2558 = vmatmul.mubr.bf16.gmra.mrb[0].mxu0 %v1691
        %v2559 = vpop.f32.mrb[0].mxu0
        %v2560 = vadd.f32 0.0, %v2559
        %v2561 = vpop.f32.mrb[0].mxu0
        %v2562 = vpop.f32.mrb[0].mxu0
        %v2563 = vadd.f32 0.0, %v2562
        %v2564 = vpop.f32.mrb[0].mxu0
        %2565 = vmatprep.mubr.bf16.mxu0 0
        %2566 = vmatmul.mubr.bf16.gmra.mrb[0].mxu0 %v1692
        %v2567 = vpop.f32.mrb[0].mxu0
        %v2568 = vadd.f32 0.0, %v2567
        %v2569 = vpop.f32.mrb[0].mxu0
        %v2570 = vpop.f32.mrb[0].mxu0
        %v2571 = vadd.f32 0.0, %v2570
        %v2572 = vpop.f32.mrb[0].mxu0
        %2573 = vmatprep.mubr.bf16.mxu0 0
        %2574 = vmatmul.mubr.bf16.gmra.mrb[0].mxu0 %v1693
        %v2575 = vpop.f32.mrb[0].mxu0
        %v2576 = vadd.f32 0.0, %v2575
        %v2577 = vpop.f32.mrb[0].mxu0
        %v2578 = vpop.f32.mrb[0].mxu0
        %v2579 = vadd.f32 0.0, %v2578
        %v2580 = vpop.f32.mrb[0].mxu0
        %2581 = vmatprep.mubr.bf16.mxu0 0
        %2582 = vmatmul.mubr.bf16.gmra.mrb[0].mxu0 %v1694
        %v2583 = vpop.f32.mrb[0].mxu0
        %v2584 = vadd.f32 0.0, %v2583
        %v2585 = vpop.f32.mrb[0].mxu0
        %v2586 = vpop.f32.mrb[0].mxu0
        %v2587 = vadd.f32 0.0, %v2586
        %v2588 = vpop.f32.mrb[0].mxu0
        %2589 = vmatprep.mubr.bf16.mxu0 0
        %2590 = vmatmul.mubr.bf16.gmra.mrb[0].mxu0 %v1695
        %v2591 = vpop.f32.mrb[0].mxu0
        %v2592 = vadd.f32 0.0, %v2591
        %v2593 = vpop.f32.mrb[0].mxu0
        %v2594 = vpop.f32.mrb[0].mxu0
        %v2595 = vadd.f32 0.0, %v2594
        %v2596 = vpop.f32.mrb[0].mxu0
        %2597 = vmatprep.mubr.bf16.mxu0 0
        %2598 = vmatmul.mubr.bf16.gmra.mrb[0].mxu0 %v1696
        %v2599 = vpop.f32.mrb[0].mxu0
        %v2600 = vadd.f32 0.0, %v2599
        %v2601 = vpop.f32.mrb[0].mxu0
        %v2602 = vpop.f32.mrb[0].mxu0
        %v2603 = vadd.f32 0.0, %v2602
        %v2604 = vpop.f32.mrb[0].mxu0
        %2605 = vmatprep.mubr.bf16.mxu0 0
        %2606 = vmatmul.mubr.bf16.gmra.mrb[0].mxu0 %v1697
        %v2607 = vpop.f32.mrb[0].mxu0
        %v2608 = vadd.f32 0.0, %v2607
        %v2609 = vpop.f32.mrb[0].mxu0
        %v2610 = vpop.f32.mrb[0].mxu0
        %v2611 = vadd.f32 0.0, %v2610
        %v2612 = vpop.f32.mrb[0].mxu0
        %2613 = vmatprep.mubr.bf16.mxu0 0
        %2614 = vmatmul.mubr.bf16.gmra.mrb[0].mxu0 %v1698
        %v2615 = vpop.f32.mrb[0].mxu0
        %v2616 = vadd.f32 0.0, %v2615
        %v2617 = vpop.f32.mrb[0].mxu0
        %v2618 = vpop.f32.mrb[0].mxu0
        %v2619 = vadd.f32 0.0, %v2618
        %v2620 = vpop.f32.mrb[0].mxu0
        %2621 = vmatprep.mubr.bf16.mxu0 0
        %2622 = vmatmul.mubr.bf16.gmra.mrb[0].mxu0 %v1699
        %v2623 = vpop.f32.mrb[0].mxu0
        %v2624 = vadd.f32 0.0, %v2623
        %v2625 = vpop.f32.mrb[0].mxu0
        %v2626 = vpop.f32.mrb[0].mxu0
        %v2627 = vadd.f32 0.0, %v2626
        %v2628 = vpop.f32.mrb[0].mxu0
        %2629 = vmatprep.mubr.bf16.mxu0 0
        %2630 = vmatmul.mubr.bf16.gmra.mrb[0].mxu0 %v1700
        %v2631 = vpop.f32.mrb[0].mxu0
        %v2632 = vadd.f32 0.0, %v2631
        %v2633 = vpop.f32.mrb[0].mxu0
        %v2634 = vpop.f32.mrb[0].mxu0
        %v2635 = vadd.f32 0.0, %v2634
        %v2636 = vpop.f32.mrb[0].mxu0
        %2637 = vmatprep.mubr.bf16.mxu0 0
        %2638 = vmatmul.mubr.bf16.gmra.mrb[0].mxu0 %v1701
        %v2639 = vpop.f32.mrb[0].mxu0
        %v2640 = vadd.f32 0.0, %v2639
        %v2641 = vpop.f32.mrb[0].mxu0
        %v2642 = vpop.f32.mrb[0].mxu0
        %v2643 = vadd.f32 0.0, %v2642
        %v2644 = vpop.f32.mrb[0].mxu0
        %2645 = vmatprep.mubr.bf16.mxu0 0
        %2646 = vmatmul.mubr.bf16.gmra.mrb[0].mxu0 %v1702
        %v2647 = vpop.f32.mrb[0].mxu0
        %v2648 = vadd.f32 0.0, %v2647
        %v2649 = vpop.f32.mrb[0].mxu0
        %v2650 = vpop.f32.mrb[0].mxu0
        %v2651 = vadd.f32 0.0, %v2650
        %v2652 = vpop.f32.mrb[0].mxu0
        %2653 = vmatprep.mubr.bf16.mxu0 0
        %2654 = vmatmul.mubr.bf16.gmra.mrb[0].mxu0 %v1703
        %v2655 = vpop.f32.mrb[0].mxu0
        %v2656 = vadd.f32 0.0, %v2655
        %v2657 = vpop.f32.mrb[0].mxu0
        %v2658 = vpop.f32.mrb[0].mxu0
        %v2659 = vadd.f32 0.0, %v2658
        %v2660 = vpop.f32.mrb[0].mxu0
        %2661 = vmatprep.mubr.bf16.mxu0 0
        %2662 = vmatmul.mubr.bf16.gmra.mrb[0].mxu0 %v1704
        %v2663 = vpop.f32.mrb[0].mxu0
        %v2664 = vadd.f32 0.0, %v2663
        %v2665 = vpop.f32.mrb[0].mxu0
        %v2666 = vpop.f32.mrb[0].mxu0
        %v2667 = vadd.f32 0.0, %v2666
        %v2668 = vpop.f32.mrb[0].mxu0
        %2669 = vmatprep.mubr.bf16.mxu0 0
        %2670 = vmatmul.mubr.bf16.gmra.mrb[0].mxu0 %v1705
        %v2671 = vpop.f32.mrb[0].mxu0
        %v2672 = vadd.f32 0.0, %v2671
        %v2673 = vpop.f32.mrb[0].mxu0
        %v2674 = vpop.f32.mrb[0].mxu0
        %v2675 = vadd.f32 0.0, %v2674
        %v2676 = vpop.f32.mrb[0].mxu0
        %2677 = vdwg.mxu0
        %v2678 = vadd.f32 %v2420, %v2552
        %v2679 = vadd.f32 %v2421, %v2555
        %v2680 = vadd.f32 %v2422, %v2560
        %v2681 = vadd.f32 %v2423, %v2563
        %v2682 = vadd.f32 %v2424, %v2568
        %v2683 = vadd.f32 %v2425, %v2571
        %v2684 = vadd.f32 %v2426, %v2576
        %v2685 = vadd.f32 %v2427, %v2579
        %v2686 = vadd.f32 %v2428, %v2584
        %v2687 = vadd.f32 %v2429, %v2587
        %v2688 = vadd.f32 %v2430, %v2592
        %v2689 = vadd.f32 %v2431, %v2595
        %v2690 = vadd.f32 %v2432, %v2600
        %v2691 = vadd.f32 %v2433, %v2603
        %v2692 = vadd.f32 %v2434, %v2608
        %v2693 = vadd.f32 %v2435, %v2611
        %v2694 = vadd.f32 %v2436, %v2616
        %v2695 = vadd.f32 %v2437, %v2619
        %v2696 = vadd.f32 %v2438, %v2624
        %v2697 = vadd.f32 %v2439, %v2627
        %v2698 = vadd.f32 %v2440, %v2632
        %v2699 = vadd.f32 %v2441, %v2635
        %v2700 = vadd.f32 %v2442, %v2640
        %v2701 = vadd.f32 %v2443, %v2643
        %v2702 = vadd.f32 %v2444, %v2648
        %v2703 = vadd.f32 %v2445, %v2651
        %v2704 = vadd.f32 %v2446, %v2656
        %v2705 = vadd.f32 %v2447, %v2659
        %v2706 = vadd.f32 %v2448, %v2664
        %v2707 = vadd.f32 %v2449, %v2667
        %v2708 = vadd.f32 %v2450, %v2672
        %v2709 = vadd.f32 %v2451, %v2675
        %s2710 = scalar_lea.vmem [#allocation10], 256
        %v2711 = vld [vmem:[%s2710] sm:$0xf]
        %v2712 = vld [vmem:[%s2710 + $0x4] sm:$0xf]
        %v2713 = vld [vmem:[%s2710 + $0x8] sm:$0xf]
        %v2714 = vld [vmem:[%s2710 + $0xc] sm:$0xf]
        %v2715 = vld [vmem:[%s2710 + $0x10] sm:$0xf]
        %v2716 = vld [vmem:[%s2710 + $0x14] sm:$0xf]
        %v2717 = vld [vmem:[%s2710 + $0x18] sm:$0xf]
        %v2718 = vld [vmem:[%s2710 + $0x1c] sm:$0xf]
        %v2719 = vld [vmem:[%s2710 + $0x20] sm:$0xf]
        %v2720 = vld [vmem:[%s2710 + $0x24] sm:$0xf]
        %v2721 = vld [vmem:[%s2710 + $0x28] sm:$0xf]
        %v2722 = vld [vmem:[%s2710 + $0x2c] sm:$0xf]
        %v2723 = vld [vmem:[%s2710 + $0x30] sm:$0xf]
        %v2724 = vld [vmem:[%s2710 + $0x34] sm:$0xf]
        %v2725 = vld [vmem:[%s2710 + $0x38] sm:$0xf]
        %v2726 = vld [vmem:[%s2710 + $0x3c] sm:$0xf]
        %v2743 = vunpack.c.l.b16 %v2711
        %v2744 = vunpack.c.l.b16 %v2712
        %v2745 = vunpack.c.l.b16 %v2713
        %v2746 = vunpack.c.l.b16 %v2714
        %v2747 = vunpack.c.l.b16 %v2715
        %v2748 = vunpack.c.l.b16 %v2716
        %v2749 = vunpack.c.l.b16 %v2717
        %v2750 = vunpack.c.l.b16 %v2718
        %v2751 = vunpack.c.l.b16 %v2719
        %v2752 = vunpack.c.l.b16 %v2720
        %v2753 = vunpack.c.l.b16 %v2721
        %v2754 = vunpack.c.l.b16 %v2722
        %v2755 = vunpack.c.l.b16 %v2723
        %v2756 = vunpack.c.l.b16 %v2724
        %v2757 = vunpack.c.l.b16 %v2725
        %v2758 = vunpack.c.l.b16 %v2726
        %v2759 = vpack.c.b16 %v2744, %v2743
        %v2760 = vpack.c.b16 %v2746, %v2745
        %v2761 = vpack.c.b16 %v2748, %v2747
        %v2762 = vpack.c.b16 %v2750, %v2749
        %v2763 = vpack.c.b16 %v2752, %v2751
        %v2764 = vpack.c.b16 %v2754, %v2753
        %v2765 = vpack.c.b16 %v2756, %v2755
        %v2766 = vpack.c.b16 %v2758, %v2757
        %2775 = vmatprep.subr.bf16.mxu0 0
        %2776 = vmatpush1.bf16.msra.mxu0 %v2759
        %2777 = vmatprep.subr.bf16.mxu0 0
        %2778 = vmatpush1.bf16.msra.mxu0 %v2760
        %2779 = vmatprep.subr.bf16.mxu0 0
        %2780 = vmatpush1.bf16.msra.mxu0 %v2761
        %2781 = vmatprep.subr.bf16.mxu0 0
        %2782 = vmatpush1.bf16.msra.mxu0 %v2762
        %2783 = vmatprep.subr.bf16.mxu0 0
        %2784 = vmatpush1.bf16.msra.mxu0 %v2763
        %2785 = vmatprep.subr.bf16.mxu0 0
        %2786 = vmatpush1.bf16.msra.mxu0 %v2764
        %2787 = vmatprep.subr.bf16.mxu0 0
        %2788 = vmatpush1.bf16.msra.mxu0 %v2765
        %2789 = vmatprep.subr.bf16.mxu0 0
        %2790 = vmatpush1.bf16.msra.mxu0 %v2766
        %2791 = vmatprep.subr.bf16.mxu0 0
        %2792 = vmatpush1.bf16.msra.mxu0 0
        %2793 = vmatprep.subr.bf16.mxu0 0
        %2794 = vmatpush1.bf16.msra.mxu0 0
        %2795 = vmatprep.subr.bf16.mxu0 0
        %2796 = vmatpush1.bf16.msra.mxu0 0
        %2797 = vmatprep.subr.bf16.mxu0 0
        %2798 = vmatpush1.bf16.msra.mxu0 0
        %2799 = vmatprep.subr.bf16.mxu0 0
        %2800 = vmatpush1.bf16.msra.mxu0 0
        %2801 = vmatprep.subr.bf16.mxu0 0
        %2802 = vmatpush1.bf16.msra.mxu0 0
        %2803 = vmatprep.subr.bf16.mxu0 0
        %2804 = vmatpush1.bf16.msra.mxu0 0
        %2805 = vmatprep.subr.bf16.mxu0 0
        %2806 = vmatpush1.bf16.msra.mxu0 0
        %2807 = vmatprep.mubr.bf16.mxu0 0
        %2808 = vmatmul.mubr.bf16.gmra.mrb[0].mxu0 %v1708
        %v2809 = vpop.f32.mrb[0].mxu0
        %v2810 = vadd.f32 0.0, %v2809
        %v2811 = vpop.f32.mrb[0].mxu0
        %v2812 = vpop.f32.mrb[0].mxu0
        %v2813 = vadd.f32 0.0, %v2812
        %v2814 = vpop.f32.mrb[0].mxu0
        %2815 = vmatprep.mubr.bf16.mxu0 0
        %2816 = vmatmul.mubr.bf16.gmra.mrb[0].mxu0 %v1709
        %v2817 = vpop.f32.mrb[0].mxu0
        %v2818 = vadd.f32 0.0, %v2817
        %v2819 = vpop.f32.mrb[0].mxu0
        %v2820 = vpop.f32.mrb[0].mxu0
        %v2821 = vadd.f32 0.0, %v2820
        %v2822 = vpop.f32.mrb[0].mxu0
        %2823 = vmatprep.mubr.bf16.mxu0 0
        %2824 = vmatmul.mubr.bf16.gmra.mrb[0].mxu0 %v1710
        %v2825 = vpop.f32.mrb[0].mxu0
        %v2826 = vadd.f32 0.0, %v2825
        %v2827 = vpop.f32.mrb[0].mxu0
        %v2828 = vpop.f32.mrb[0].mxu0
        %v2829 = vadd.f32 0.0, %v2828
        %v2830 = vpop.f32.mrb[0].mxu0
        %2831 = vmatprep.mubr.bf16.mxu0 0
        %2832 = vmatmul.mubr.bf16.gmra.mrb[0].mxu0 %v1711
        %v2833 = vpop.f32.mrb[0].mxu0
        %v2834 = vadd.f32 0.0, %v2833
        %v2835 = vpop.f32.mrb[0].mxu0
        %v2836 = vpop.f32.mrb[0].mxu0
        %v2837 = vadd.f32 0.0, %v2836
        %v2838 = vpop.f32.mrb[0].mxu0
        %2839 = vmatprep.mubr.bf16.mxu0 0
        %2840 = vmatmul.mubr.bf16.gmra.mrb[0].mxu0 %v1712
        %v2841 = vpop.f32.mrb[0].mxu0
        %v2842 = vadd.f32 0.0, %v2841
        %v2843 = vpop.f32.mrb[0].mxu0
        %v2844 = vpop.f32.mrb[0].mxu0
        %v2845 = vadd.f32 0.0, %v2844
        %v2846 = vpop.f32.mrb[0].mxu0
        %2847 = vmatprep.mubr.bf16.mxu0 0
        %2848 = vmatmul.mubr.bf16.gmra.mrb[0].mxu0 %v1713
        %v2849 = vpop.f32.mrb[0].mxu0
        %v2850 = vadd.f32 0.0, %v2849
        %v2851 = vpop.f32.mrb[0].mxu0
        %v2852 = vpop.f32.mrb[0].mxu0
        %v2853 = vadd.f32 0.0, %v2852
        %v2854 = vpop.f32.mrb[0].mxu0
        %2855 = vmatprep.mubr.bf16.mxu0 0
        %2856 = vmatmul.mubr.bf16.gmra.mrb[0].mxu0 %v1714
        %v2857 = vpop.f32.mrb[0].mxu0
        %v2858 = vadd.f32 0.0, %v2857
        %v2859 = vpop.f32.mrb[0].mxu0
        %v2860 = vpop.f32.mrb[0].mxu0
        %v2861 = vadd.f32 0.0, %v2860
        %v2862 = vpop.f32.mrb[0].mxu0
        %2863 = vmatprep.mubr.bf16.mxu0 0
        %2864 = vmatmul.mubr.bf16.gmra.mrb[0].mxu0 %v1715
        %v2865 = vpop.f32.mrb[0].mxu0
        %v2866 = vadd.f32 0.0, %v2865
        %v2867 = vpop.f32.mrb[0].mxu0
        %v2868 = vpop.f32.mrb[0].mxu0
        %v2869 = vadd.f32 0.0, %v2868
        %v2870 = vpop.f32.mrb[0].mxu0
        %2871 = vmatprep.mubr.bf16.mxu0 0
        %2872 = vmatmul.mubr.bf16.gmra.mrb[0].mxu0 %v1716
        %v2873 = vpop.f32.mrb[0].mxu0
        %v2874 = vadd.f32 0.0, %v2873
        %v2875 = vpop.f32.mrb[0].mxu0
        %v2876 = vpop.f32.mrb[0].mxu0
        %v2877 = vadd.f32 0.0, %v2876
        %v2878 = vpop.f32.mrb[0].mxu0
        %2879 = vmatprep.mubr.bf16.mxu0 0
        %2880 = vmatmul.mubr.bf16.gmra.mrb[0].mxu0 %v1717
        %v2881 = vpop.f32.mrb[0].mxu0
        %v2882 = vadd.f32 0.0, %v2881
        %v2883 = vpop.f32.mrb[0].mxu0
        %v2884 = vpop.f32.mrb[0].mxu0
        %v2885 = vadd.f32 0.0, %v2884
        %v2886 = vpop.f32.mrb[0].mxu0
        %2887 = vmatprep.mubr.bf16.mxu0 0
        %2888 = vmatmul.mubr.bf16.gmra.mrb[0].mxu0 %v1718
        %v2889 = vpop.f32.mrb[0].mxu0
        %v2890 = vadd.f32 0.0, %v2889
        %v2891 = vpop.f32.mrb[0].mxu0
        %v2892 = vpop.f32.mrb[0].mxu0
        %v2893 = vadd.f32 0.0, %v2892
        %v2894 = vpop.f32.mrb[0].mxu0
        %2895 = vmatprep.mubr.bf16.mxu0 0
        %2896 = vmatmul.mubr.bf16.gmra.mrb[0].mxu0 %v1719
        %v2897 = vpop.f32.mrb[0].mxu0
        %v2898 = vadd.f32 0.0, %v2897
        %v2899 = vpop.f32.mrb[0].mxu0
        %v2900 = vpop.f32.mrb[0].mxu0
        %v2901 = vadd.f32 0.0, %v2900
        %v2902 = vpop.f32.mrb[0].mxu0
        %2903 = vmatprep.mubr.bf16.mxu0 0
        %2904 = vmatmul.mubr.bf16.gmra.mrb[0].mxu0 %v1720
        %v2905 = vpop.f32.mrb[0].mxu0
        %v2906 = vadd.f32 0.0, %v2905
        %v2907 = vpop.f32.mrb[0].mxu0
        %v2908 = vpop.f32.mrb[0].mxu0
        %v2909 = vadd.f32 0.0, %v2908
        %v2910 = vpop.f32.mrb[0].mxu0
        %2911 = vmatprep.mubr.bf16.mxu0 0
        %2912 = vmatmul.mubr.bf16.gmra.mrb[0].mxu0 %v1721
        %v2913 = vpop.f32.mrb[0].mxu0
        %v2914 = vadd.f32 0.0, %v2913
        %v2915 = vpop.f32.mrb[0].mxu0
        %v2916 = vpop.f32.mrb[0].mxu0
        %v2917 = vadd.f32 0.0, %v2916
        %v2918 = vpop.f32.mrb[0].mxu0
        %2919 = vmatprep.mubr.bf16.mxu0 0
        %2920 = vmatmul.mubr.bf16.gmra.mrb[0].mxu0 %v1722
        %v2921 = vpop.f32.mrb[0].mxu0
        %v2922 = vadd.f32 0.0, %v2921
        %v2923 = vpop.f32.mrb[0].mxu0
        %v2924 = vpop.f32.mrb[0].mxu0
        %v2925 = vadd.f32 0.0, %v2924
        %v2926 = vpop.f32.mrb[0].mxu0
        %2927 = vmatprep.mubr.bf16.mxu0 0
        %2928 = vmatmul.mubr.bf16.gmra.mrb[0].mxu0 %v1723
        %v2929 = vpop.f32.mrb[0].mxu0
        %v2930 = vadd.f32 0.0, %v2929
        %v2931 = vpop.f32.mrb[0].mxu0
        %v2932 = vpop.f32.mrb[0].mxu0
        %v2933 = vadd.f32 0.0, %v2932
        %v2934 = vpop.f32.mrb[0].mxu0
        %2935 = vdwg.mxu0
        %v2936 = vadd.f32 %v2678, %v2810
        %v2937 = vadd.f32 %v2679, %v2813
        %v2938 = vadd.f32 %v2680, %v2818
        %v2939 = vadd.f32 %v2681, %v2821
        %v2940 = vadd.f32 %v2682, %v2826
        %v2941 = vadd.f32 %v2683, %v2829
        %v2942 = vadd.f32 %v2684, %v2834
        %v2943 = vadd.f32 %v2685, %v2837
        %v2944 = vadd.f32 %v2686, %v2842
        %v2945 = vadd.f32 %v2687, %v2845
        %v2946 = vadd.f32 %v2688, %v2850
        %v2947 = vadd.f32 %v2689, %v2853
        %v2948 = vadd.f32 %v2690, %v2858
        %v2949 = vadd.f32 %v2691, %v2861
        %v2950 = vadd.f32 %v2692, %v2866
        %v2951 = vadd.f32 %v2693, %v2869
        %v2952 = vadd.f32 %v2694, %v2874
        %v2953 = vadd.f32 %v2695, %v2877
        %v2954 = vadd.f32 %v2696, %v2882
        %v2955 = vadd.f32 %v2697, %v2885
        %v2956 = vadd.f32 %v2698, %v2890
        %v2957 = vadd.f32 %v2699, %v2893
        %v2958 = vadd.f32 %v2700, %v2898
        %v2959 = vadd.f32 %v2701, %v2901
        %v2960 = vadd.f32 %v2702, %v2906
        %v2961 = vadd.f32 %v2703, %v2909
        %v2962 = vadd.f32 %v2704, %v2914
        %v2963 = vadd.f32 %v2705, %v2917
        %v2964 = vadd.f32 %v2706, %v2922
        %v2965 = vadd.f32 %v2707, %v2925
        %v2966 = vadd.f32 %v2708, %v2930
        %v2967 = vadd.f32 %v2709, %v2933
        %s2968 = scalar_lea.vmem [#allocation10], 320
        %v2969 = vld [vmem:[%s2968] sm:$0xf]
        %v2970 = vld [vmem:[%s2968 + $0x4] sm:$0xf]
        %v2971 = vld [vmem:[%s2968 + $0x8] sm:$0xf]
        %v2972 = vld [vmem:[%s2968 + $0xc] sm:$0xf]
        %v2973 = vld [vmem:[%s2968 + $0x10] sm:$0xf]
        %v2974 = vld [vmem:[%s2968 + $0x14] sm:$0xf]
        %v2975 = vld [vmem:[%s2968 + $0x18] sm:$0xf]
        %v2976 = vld [vmem:[%s2968 + $0x1c] sm:$0xf]
        %v2977 = vld [vmem:[%s2968 + $0x20] sm:$0xf]
        %v2978 = vld [vmem:[%s2968 + $0x24] sm:$0xf]
        %v2979 = vld [vmem:[%s2968 + $0x28] sm:$0xf]
        %v2980 = vld [vmem:[%s2968 + $0x2c] sm:$0xf]
        %v2981 = vld [vmem:[%s2968 + $0x30] sm:$0xf]
        %v2982 = vld [vmem:[%s2968 + $0x34] sm:$0xf]
        %v2983 = vld [vmem:[%s2968 + $0x38] sm:$0xf]
        %v2984 = vld [vmem:[%s2968 + $0x3c] sm:$0xf]
        %v3001 = vunpack.c.l.b16 %v2969
        %v3002 = vunpack.c.l.b16 %v2970
        %v3003 = vunpack.c.l.b16 %v2971
        %v3004 = vunpack.c.l.b16 %v2972
        %v3005 = vunpack.c.l.b16 %v2973
        %v3006 = vunpack.c.l.b16 %v2974
        %v3007 = vunpack.c.l.b16 %v2975
        %v3008 = vunpack.c.l.b16 %v2976
        %v3009 = vunpack.c.l.b16 %v2977
        %v3010 = vunpack.c.l.b16 %v2978
        %v3011 = vunpack.c.l.b16 %v2979
        %v3012 = vunpack.c.l.b16 %v2980
        %v3013 = vunpack.c.l.b16 %v2981
        %v3014 = vunpack.c.l.b16 %v2982
        %v3015 = vunpack.c.l.b16 %v2983
        %v3016 = vunpack.c.l.b16 %v2984
        %v3017 = vpack.c.b16 %v3002, %v3001
        %v3018 = vpack.c.b16 %v3004, %v3003
        %v3019 = vpack.c.b16 %v3006, %v3005
        %v3020 = vpack.c.b16 %v3008, %v3007
        %v3021 = vpack.c.b16 %v3010, %v3009
        %v3022 = vpack.c.b16 %v3012, %v3011
        %v3023 = vpack.c.b16 %v3014, %v3013
        %v3024 = vpack.c.b16 %v3016, %v3015
        %3033 = vmatprep.subr.bf16.mxu0 0
        %3034 = vmatpush1.bf16.msra.mxu0 %v3017
        %3035 = vmatprep.subr.bf16.mxu0 0
        %3036 = vmatpush1.bf16.msra.mxu0 %v3018
        %3037 = vmatprep.subr.bf16.mxu0 0
        %3038 = vmatpush1.bf16.msra.mxu0 %v3019
        %3039 = vmatprep.subr.bf16.mxu0 0
        %3040 = vmatpush1.bf16.msra.mxu0 %v3020
        %3041 = vmatprep.subr.bf16.mxu0 0
        %3042 = vmatpush1.bf16.msra.mxu0 %v3021
        %3043 = vmatprep.subr.bf16.mxu0 0
        %3044 = vmatpush1.bf16.msra.mxu0 %v3022
        %3045 = vmatprep.subr.bf16.mxu0 0
        %3046 = vmatpush1.bf16.msra.mxu0 %v3023
        %3047 = vmatprep.subr.bf16.mxu0 0
        %3048 = vmatpush1.bf16.msra.mxu0 %v3024
        %3049 = vmatprep.subr.bf16.mxu0 0
        %3050 = vmatpush1.bf16.msra.mxu0 0
        %3051 = vmatprep.subr.bf16.mxu0 0
        %3052 = vmatpush1.bf16.msra.mxu0 0
        %3053 = vmatprep.subr.bf16.mxu0 0
        %3054 = vmatpush1.bf16.msra.mxu0 0
        %3055 = vmatprep.subr.bf16.mxu0 0
        %3056 = vmatpush1.bf16.msra.mxu0 0
        %3057 = vmatprep.subr.bf16.mxu0 0
        %3058 = vmatpush1.bf16.msra.mxu0 0
        %3059 = vmatprep.subr.bf16.mxu0 0
        %3060 = vmatpush1.bf16.msra.mxu0 0
        %3061 = vmatprep.subr.bf16.mxu0 0
        %3062 = vmatpush1.bf16.msra.mxu0 0
        %3063 = vmatprep.subr.bf16.mxu0 0
        %3064 = vmatpush1.bf16.msra.mxu0 0
        %3065 = vmatprep.mubr.bf16.mxu0 0
        %3066 = vmatmul.mubr.bf16.gmra.mrb[0].mxu0 %v1726
        %v3067 = vpop.f32.mrb[0].mxu0
        %v3068 = vadd.f32 0.0, %v3067
        %v3069 = vpop.f32.mrb[0].mxu0
        %v3070 = vpop.f32.mrb[0].mxu0
        %v3071 = vadd.f32 0.0, %v3070
        %v3072 = vpop.f32.mrb[0].mxu0
        %3073 = vmatprep.mubr.bf16.mxu0 0
        %3074 = vmatmul.mubr.bf16.gmra.mrb[0].mxu0 %v1727
        %v3075 = vpop.f32.mrb[0].mxu0
        %v3076 = vadd.f32 0.0, %v3075
        %v3077 = vpop.f32.mrb[0].mxu0
        %v3078 = vpop.f32.mrb[0].mxu0
        %v3079 = vadd.f32 0.0, %v3078
        %v3080 = vpop.f32.mrb[0].mxu0
        %3081 = vmatprep.mubr.bf16.mxu0 0
        %3082 = vmatmul.mubr.bf16.gmra.mrb[0].mxu0 %v1728
        %v3083 = vpop.f32.mrb[0].mxu0
        %v3084 = vadd.f32 0.0, %v3083
        %v3085 = vpop.f32.mrb[0].mxu0
        %v3086 = vpop.f32.mrb[0].mxu0
        %v3087 = vadd.f32 0.0, %v3086
        %v3088 = vpop.f32.mrb[0].mxu0
        %3089 = vmatprep.mubr.bf16.mxu0 0
        %3090 = vmatmul.mubr.bf16.gmra.mrb[0].mxu0 %v1729
        %v3091 = vpop.f32.mrb[0].mxu0
        %v3092 = vadd.f32 0.0, %v3091
        %v3093 = vpop.f32.mrb[0].mxu0
        %v3094 = vpop.f32.mrb[0].mxu0
        %v3095 = vadd.f32 0.0, %v3094
        %v3096 = vpop.f32.mrb[0].mxu0
        %3097 = vmatprep.mubr.bf16.mxu0 0
        %3098 = vmatmul.mubr.bf16.gmra.mrb[0].mxu0 %v1730
        %v3099 = vpop.f32.mrb[0].mxu0
        %v3100 = vadd.f32 0.0, %v3099
        %v3101 = vpop.f32.mrb[0].mxu0
        %v3102 = vpop.f32.mrb[0].mxu0
        %v3103 = vadd.f32 0.0, %v3102
        %v3104 = vpop.f32.mrb[0].mxu0
        %3105 = vmatprep.mubr.bf16.mxu0 0
        %3106 = vmatmul.mubr.bf16.gmra.mrb[0].mxu0 %v1731
        %v3107 = vpop.f32.mrb[0].mxu0
        %v3108 = vadd.f32 0.0, %v3107
        %v3109 = vpop.f32.mrb[0].mxu0
        %v3110 = vpop.f32.mrb[0].mxu0
        %v3111 = vadd.f32 0.0, %v3110
        %v3112 = vpop.f32.mrb[0].mxu0
        %3113 = vmatprep.mubr.bf16.mxu0 0
        %3114 = vmatmul.mubr.bf16.gmra.mrb[0].mxu0 %v1732
        %v3115 = vpop.f32.mrb[0].mxu0
        %v3116 = vadd.f32 0.0, %v3115
        %v3117 = vpop.f32.mrb[0].mxu0
        %v3118 = vpop.f32.mrb[0].mxu0
        %v3119 = vadd.f32 0.0, %v3118
        %v3120 = vpop.f32.mrb[0].mxu0
        %3121 = vmatprep.mubr.bf16.mxu0 0
        %3122 = vmatmul.mubr.bf16.gmra.mrb[0].mxu0 %v1733
        %v3123 = vpop.f32.mrb[0].mxu0
        %v3124 = vadd.f32 0.0, %v3123
        %v3125 = vpop.f32.mrb[0].mxu0
        %v3126 = vpop.f32.mrb[0].mxu0
        %v3127 = vadd.f32 0.0, %v3126
        %v3128 = vpop.f32.mrb[0].mxu0
        %3129 = vmatprep.mubr.bf16.mxu0 0
        %3130 = vmatmul.mubr.bf16.gmra.mrb[0].mxu0 %v1734
        %v3131 = vpop.f32.mrb[0].mxu0
        %v3132 = vadd.f32 0.0, %v3131
        %v3133 = vpop.f32.mrb[0].mxu0
        %v3134 = vpop.f32.mrb[0].mxu0
        %v3135 = vadd.f32 0.0, %v3134
        %v3136 = vpop.f32.mrb[0].mxu0
        %3137 = vmatprep.mubr.bf16.mxu0 0
        %3138 = vmatmul.mubr.bf16.gmra.mrb[0].mxu0 %v1735
        %v3139 = vpop.f32.mrb[0].mxu0
        %v3140 = vadd.f32 0.0, %v3139
        %v3141 = vpop.f32.mrb[0].mxu0
        %v3142 = vpop.f32.mrb[0].mxu0
        %v3143 = vadd.f32 0.0, %v3142
        %v3144 = vpop.f32.mrb[0].mxu0
        %3145 = vmatprep.mubr.bf16.mxu0 0
        %3146 = vmatmul.mubr.bf16.gmra.mrb[0].mxu0 %v1736
        %v3147 = vpop.f32.mrb[0].mxu0
        %v3148 = vadd.f32 0.0, %v3147
        %v3149 = vpop.f32.mrb[0].mxu0
        %v3150 = vpop.f32.mrb[0].mxu0
        %v3151 = vadd.f32 0.0, %v3150
        %v3152 = vpop.f32.mrb[0].mxu0
        %3153 = vmatprep.mubr.bf16.mxu0 0
        %3154 = vmatmul.mubr.bf16.gmra.mrb[0].mxu0 %v1737
        %v3155 = vpop.f32.mrb[0].mxu0
        %v3156 = vadd.f32 0.0, %v3155
        %v3157 = vpop.f32.mrb[0].mxu0
        %v3158 = vpop.f32.mrb[0].mxu0
        %v3159 = vadd.f32 0.0, %v3158
        %v3160 = vpop.f32.mrb[0].mxu0
        %3161 = vmatprep.mubr.bf16.mxu0 0
        %3162 = vmatmul.mubr.bf16.gmra.mrb[0].mxu0 %v1738
        %v3163 = vpop.f32.mrb[0].mxu0
        %v3164 = vadd.f32 0.0, %v3163
        %v3165 = vpop.f32.mrb[0].mxu0
        %v3166 = vpop.f32.mrb[0].mxu0
        %v3167 = vadd.f32 0.0, %v3166
        %v3168 = vpop.f32.mrb[0].mxu0
        %3169 = vmatprep.mubr.bf16.mxu0 0
        %3170 = vmatmul.mubr.bf16.gmra.mrb[0].mxu0 %v1739
        %v3171 = vpop.f32.mrb[0].mxu0
        %v3172 = vadd.f32 0.0, %v3171
        %v3173 = vpop.f32.mrb[0].mxu0
        %v3174 = vpop.f32.mrb[0].mxu0
        %v3175 = vadd.f32 0.0, %v3174
        %v3176 = vpop.f32.mrb[0].mxu0
        %3177 = vmatprep.mubr.bf16.mxu0 0
        %3178 = vmatmul.mubr.bf16.gmra.mrb[0].mxu0 %v1740
        %v3179 = vpop.f32.mrb[0].mxu0
        %v3180 = vadd.f32 0.0, %v3179
        %v3181 = vpop.f32.mrb[0].mxu0
        %v3182 = vpop.f32.mrb[0].mxu0
        %v3183 = vadd.f32 0.0, %v3182
        %v3184 = vpop.f32.mrb[0].mxu0
        %3185 = vmatprep.mubr.bf16.mxu0 0
        %3186 = vmatmul.mubr.bf16.gmra.mrb[0].mxu0 %v1741
        %v3187 = vpop.f32.mrb[0].mxu0
        %v3188 = vadd.f32 0.0, %v3187
        %v3189 = vpop.f32.mrb[0].mxu0
        %v3190 = vpop.f32.mrb[0].mxu0
        %v3191 = vadd.f32 0.0, %v3190
        %v3192 = vpop.f32.mrb[0].mxu0
        %3193 = vdwg.mxu0
        %v3194 = vadd.f32 %v2936, %v3068
        %v3195 = vadd.f32 %v2937, %v3071
        %v3196 = vadd.f32 %v2938, %v3076
        %v3197 = vadd.f32 %v2939, %v3079
        %v3198 = vadd.f32 %v2940, %v3084
        %v3199 = vadd.f32 %v2941, %v3087
        %v3200 = vadd.f32 %v2942, %v3092
        %v3201 = vadd.f32 %v2943, %v3095
        %v3202 = vadd.f32 %v2944, %v3100
        %v3203 = vadd.f32 %v2945, %v3103
        %v3204 = vadd.f32 %v2946, %v3108
        %v3205 = vadd.f32 %v2947, %v3111
        %v3206 = vadd.f32 %v2948, %v3116
        %v3207 = vadd.f32 %v2949, %v3119
        %v3208 = vadd.f32 %v2950, %v3124
        %v3209 = vadd.f32 %v2951, %v3127
        %v3210 = vadd.f32 %v2952, %v3132
        %v3211 = vadd.f32 %v2953, %v3135
        %v3212 = vadd.f32 %v2954, %v3140
        %v3213 = vadd.f32 %v2955, %v3143
        %v3214 = vadd.f32 %v2956, %v3148
        %v3215 = vadd.f32 %v2957, %v3151
        %v3216 = vadd.f32 %v2958, %v3156
        %v3217 = vadd.f32 %v2959, %v3159
        %v3218 = vadd.f32 %v2960, %v3164
        %v3219 = vadd.f32 %v2961, %v3167
        %v3220 = vadd.f32 %v2962, %v3172
        %v3221 = vadd.f32 %v2963, %v3175
        %v3222 = vadd.f32 %v2964, %v3180
        %v3223 = vadd.f32 %v2965, %v3183
        %v3224 = vadd.f32 %v2966, %v3188
        %v3225 = vadd.f32 %v2967, %v3191
        %s3226 = scalar_lea.vmem [#allocation10], 384
        %v3227 = vld [vmem:[%s3226] sm:$0xf]
        %v3228 = vld [vmem:[%s3226 + $0x4] sm:$0xf]
        %v3229 = vld [vmem:[%s3226 + $0x8] sm:$0xf]
        %v3230 = vld [vmem:[%s3226 + $0xc] sm:$0xf]
        %v3231 = vld [vmem:[%s3226 + $0x10] sm:$0xf]
        %v3232 = vld [vmem:[%s3226 + $0x14] sm:$0xf]
        %v3233 = vld [vmem:[%s3226 + $0x18] sm:$0xf]
        %v3234 = vld [vmem:[%s3226 + $0x1c] sm:$0xf]
        %v3235 = vld [vmem:[%s3226 + $0x20] sm:$0xf]
        %v3236 = vld [vmem:[%s3226 + $0x24] sm:$0xf]
        %v3237 = vld [vmem:[%s3226 + $0x28] sm:$0xf]
        %v3238 = vld [vmem:[%s3226 + $0x2c] sm:$0xf]
        %v3239 = vld [vmem:[%s3226 + $0x30] sm:$0xf]
        %v3240 = vld [vmem:[%s3226 + $0x34] sm:$0xf]
        %v3241 = vld [vmem:[%s3226 + $0x38] sm:$0xf]
        %v3242 = vld [vmem:[%s3226 + $0x3c] sm:$0xf]
        %v3259 = vunpack.c.l.b16 %v3227
        %v3260 = vunpack.c.l.b16 %v3228
        %v3261 = vunpack.c.l.b16 %v3229
        %v3262 = vunpack.c.l.b16 %v3230
        %v3263 = vunpack.c.l.b16 %v3231
        %v3264 = vunpack.c.l.b16 %v3232
        %v3265 = vunpack.c.l.b16 %v3233
        %v3266 = vunpack.c.l.b16 %v3234
        %v3267 = vunpack.c.l.b16 %v3235
        %v3268 = vunpack.c.l.b16 %v3236
        %v3269 = vunpack.c.l.b16 %v3237
        %v3270 = vunpack.c.l.b16 %v3238
        %v3271 = vunpack.c.l.b16 %v3239
        %v3272 = vunpack.c.l.b16 %v3240
        %v3273 = vunpack.c.l.b16 %v3241
        %v3274 = vunpack.c.l.b16 %v3242
        %v3275 = vpack.c.b16 %v3260, %v3259
        %v3276 = vpack.c.b16 %v3262, %v3261
        %v3277 = vpack.c.b16 %v3264, %v3263
        %v3278 = vpack.c.b16 %v3266, %v3265
        %v3279 = vpack.c.b16 %v3268, %v3267
        %v3280 = vpack.c.b16 %v3270, %v3269
        %v3281 = vpack.c.b16 %v3272, %v3271
        %v3282 = vpack.c.b16 %v3274, %v3273
        %3291 = vmatprep.subr.bf16.mxu0 0
        %3292 = vmatpush1.bf16.msra.mxu0 %v3275
        %3293 = vmatprep.subr.bf16.mxu0 0
        %3294 = vmatpush1.bf16.msra.mxu0 %v3276
        %3295 = vmatprep.subr.bf16.mxu0 0
        %3296 = vmatpush1.bf16.msra.mxu0 %v3277
        %3297 = vmatprep.subr.bf16.mxu0 0
        %3298 = vmatpush1.bf16.msra.mxu0 %v3278
        %3299 = vmatprep.subr.bf16.mxu0 0
        %3300 = vmatpush1.bf16.msra.mxu0 %v3279
        %3301 = vmatprep.subr.bf16.mxu0 0
        %3302 = vmatpush1.bf16.msra.mxu0 %v3280
        %3303 = vmatprep.subr.bf16.mxu0 0
        %3304 = vmatpush1.bf16.msra.mxu0 %v3281
        %3305 = vmatprep.subr.bf16.mxu0 0
        %3306 = vmatpush1.bf16.msra.mxu0 %v3282
        %3307 = vmatprep.subr.bf16.mxu0 0
        %3308 = vmatpush1.bf16.msra.mxu0 0
        %3309 = vmatprep.subr.bf16.mxu0 0
        %3310 = vmatpush1.bf16.msra.mxu0 0
        %3311 = vmatprep.subr.bf16.mxu0 0
        %3312 = vmatpush1.bf16.msra.mxu0 0
        %3313 = vmatprep.subr.bf16.mxu0 0
        %3314 = vmatpush1.bf16.msra.mxu0 0
        %3315 = vmatprep.subr.bf16.mxu0 0
        %3316 = vmatpush1.bf16.msra.mxu0 0
        %3317 = vmatprep.subr.bf16.mxu0 0
        %3318 = vmatpush1.bf16.msra.mxu0 0
        %3319 = vmatprep.subr.bf16.mxu0 0
        %3320 = vmatpush1.bf16.msra.mxu0 0
        %3321 = vmatprep.subr.bf16.mxu0 0
        %3322 = vmatpush1.bf16.msra.mxu0 0
        %3323 = vmatprep.mubr.bf16.mxu0 0
        %3324 = vmatmul.mubr.bf16.gmra.mrb[0].mxu0 %v1691
        %v3325 = vpop.f32.mrb[0].mxu0
        %v3326 = vadd.f32 0.0, %v3325
        %v3327 = vpop.f32.mrb[0].mxu0
        %v3328 = vpop.f32.mrb[0].mxu0
        %v3329 = vadd.f32 0.0, %v3328
        %v3330 = vpop.f32.mrb[0].mxu0
        %3331 = vmatprep.mubr.bf16.mxu0 0
        %3332 = vmatmul.mubr.bf16.gmra.mrb[0].mxu0 %v1692
        %v3333 = vpop.f32.mrb[0].mxu0
        %v3334 = vadd.f32 0.0, %v3333
        %v3335 = vpop.f32.mrb[0].mxu0
        %v3336 = vpop.f32.mrb[0].mxu0
        %v3337 = vadd.f32 0.0, %v3336
        %v3338 = vpop.f32.mrb[0].mxu0
        %3339 = vmatprep.mubr.bf16.mxu0 0
        %3340 = vmatmul.mubr.bf16.gmra.mrb[0].mxu0 %v1693
        %v3341 = vpop.f32.mrb[0].mxu0
        %v3342 = vadd.f32 0.0, %v3341
        %v3343 = vpop.f32.mrb[0].mxu0
        %v3344 = vpop.f32.mrb[0].mxu0
        %v3345 = vadd.f32 0.0, %v3344
        %v3346 = vpop.f32.mrb[0].mxu0
        %3347 = vmatprep.mubr.bf16.mxu0 0
        %3348 = vmatmul.mubr.bf16.gmra.mrb[0].mxu0 %v1694
        %v3349 = vpop.f32.mrb[0].mxu0
        %v3350 = vadd.f32 0.0, %v3349
        %v3351 = vpop.f32.mrb[0].mxu0
        %v3352 = vpop.f32.mrb[0].mxu0
        %v3353 = vadd.f32 0.0, %v3352
        %v3354 = vpop.f32.mrb[0].mxu0
        %3355 = vmatprep.mubr.bf16.mxu0 0
        %3356 = vmatmul.mubr.bf16.gmra.mrb[0].mxu0 %v1695
        %v3357 = vpop.f32.mrb[0].mxu0
        %v3358 = vadd.f32 0.0, %v3357
        %v3359 = vpop.f32.mrb[0].mxu0
        %v3360 = vpop.f32.mrb[0].mxu0
        %v3361 = vadd.f32 0.0, %v3360
        %v3362 = vpop.f32.mrb[0].mxu0
        %3363 = vmatprep.mubr.bf16.mxu0 0
        %3364 = vmatmul.mubr.bf16.gmra.mrb[0].mxu0 %v1696
        %v3365 = vpop.f32.mrb[0].mxu0
        %v3366 = vadd.f32 0.0, %v3365
        %v3367 = vpop.f32.mrb[0].mxu0
        %v3368 = vpop.f32.mrb[0].mxu0
        %v3369 = vadd.f32 0.0, %v3368
        %v3370 = vpop.f32.mrb[0].mxu0
        %3371 = vmatprep.mubr.bf16.mxu0 0
        %3372 = vmatmul.mubr.bf16.gmra.mrb[0].mxu0 %v1697
        %v3373 = vpop.f32.mrb[0].mxu0
        %v3374 = vadd.f32 0.0, %v3373
        %v3375 = vpop.f32.mrb[0].mxu0
        %v3376 = vpop.f32.mrb[0].mxu0
        %v3377 = vadd.f32 0.0, %v3376
        %v3378 = vpop.f32.mrb[0].mxu0
        %3379 = vmatprep.mubr.bf16.mxu0 0
        %3380 = vmatmul.mubr.bf16.gmra.mrb[0].mxu0 %v1698
        %v3381 = vpop.f32.mrb[0].mxu0
        %v3382 = vadd.f32 0.0, %v3381
        %v3383 = vpop.f32.mrb[0].mxu0
        %v3384 = vpop.f32.mrb[0].mxu0
        %v3385 = vadd.f32 0.0, %v3384
        %v3386 = vpop.f32.mrb[0].mxu0
        %3387 = vmatprep.mubr.bf16.mxu0 0
        %3388 = vmatmul.mubr.bf16.gmra.mrb[0].mxu0 %v1699
        %v3389 = vpop.f32.mrb[0].mxu0
        %v3390 = vadd.f32 0.0, %v3389
        %v3391 = vpop.f32.mrb[0].mxu0
        %v3392 = vpop.f32.mrb[0].mxu0
        %v3393 = vadd.f32 0.0, %v3392
        %v3394 = vpop.f32.mrb[0].mxu0
        %3395 = vmatprep.mubr.bf16.mxu0 0
        %3396 = vmatmul.mubr.bf16.gmra.mrb[0].mxu0 %v1700
        %v3397 = vpop.f32.mrb[0].mxu0
        %v3398 = vadd.f32 0.0, %v3397
        %v3399 = vpop.f32.mrb[0].mxu0
        %v3400 = vpop.f32.mrb[0].mxu0
        %v3401 = vadd.f32 0.0, %v3400
        %v3402 = vpop.f32.mrb[0].mxu0
        %3403 = vmatprep.mubr.bf16.mxu0 0
        %3404 = vmatmul.mubr.bf16.gmra.mrb[0].mxu0 %v1701
        %v3405 = vpop.f32.mrb[0].mxu0
        %v3406 = vadd.f32 0.0, %v3405
        %v3407 = vpop.f32.mrb[0].mxu0
        %v3408 = vpop.f32.mrb[0].mxu0
        %v3409 = vadd.f32 0.0, %v3408
        %v3410 = vpop.f32.mrb[0].mxu0
        %3411 = vmatprep.mubr.bf16.mxu0 0
        %3412 = vmatmul.mubr.bf16.gmra.mrb[0].mxu0 %v1702
        %v3413 = vpop.f32.mrb[0].mxu0
        %v3414 = vadd.f32 0.0, %v3413
        %v3415 = vpop.f32.mrb[0].mxu0
        %v3416 = vpop.f32.mrb[0].mxu0
        %v3417 = vadd.f32 0.0, %v3416
        %v3418 = vpop.f32.mrb[0].mxu0
        %3419 = vmatprep.mubr.bf16.mxu0 0
        %3420 = vmatmul.mubr.bf16.gmra.mrb[0].mxu0 %v1703
        %v3421 = vpop.f32.mrb[0].mxu0
        %v3422 = vadd.f32 0.0, %v3421
        %v3423 = vpop.f32.mrb[0].mxu0
        %v3424 = vpop.f32.mrb[0].mxu0
        %v3425 = vadd.f32 0.0, %v3424
        %v3426 = vpop.f32.mrb[0].mxu0
        %3427 = vmatprep.mubr.bf16.mxu0 0
        %3428 = vmatmul.mubr.bf16.gmra.mrb[0].mxu0 %v1704
        %v3429 = vpop.f32.mrb[0].mxu0
        %v3430 = vadd.f32 0.0, %v3429
        %v3431 = vpop.f32.mrb[0].mxu0
        %v3432 = vpop.f32.mrb[0].mxu0
        %v3433 = vadd.f32 0.0, %v3432
        %v3434 = vpop.f32.mrb[0].mxu0
        %3435 = vmatprep.mubr.bf16.mxu0 0
        %3436 = vmatmul.mubr.bf16.gmra.mrb[0].mxu0 %v1705
        %v3437 = vpop.f32.mrb[0].mxu0
        %v3438 = vadd.f32 0.0, %v3437
        %v3439 = vpop.f32.mrb[0].mxu0
        %v3440 = vpop.f32.mrb[0].mxu0
        %v3441 = vadd.f32 0.0, %v3440
        %v3442 = vpop.f32.mrb[0].mxu0
        %3443 = vmatprep.mubr.bf16.mxu0 0
        %3444 = vmatmul.mubr.bf16.gmra.mrb[0].mxu0 %v1706
        %v3445 = vpop.f32.mrb[0].mxu0
        %v3446 = vadd.f32 0.0, %v3445
        %v3447 = vpop.f32.mrb[0].mxu0
        %v3448 = vpop.f32.mrb[0].mxu0
        %v3449 = vadd.f32 0.0, %v3448
        %v3450 = vpop.f32.mrb[0].mxu0
        %3451 = vdwg.mxu0
        %v3452 = vadd.f32 %v3194, %v3326
        %v3453 = vadd.f32 %v3195, %v3329
        %v3454 = vadd.f32 %v3196, %v3334
        %v3455 = vadd.f32 %v3197, %v3337
        %v3456 = vadd.f32 %v3198, %v3342
        %v3457 = vadd.f32 %v3199, %v3345
        %v3458 = vadd.f32 %v3200, %v3350
        %v3459 = vadd.f32 %v3201, %v3353
        %v3460 = vadd.f32 %v3202, %v3358
        %v3461 = vadd.f32 %v3203, %v3361
        %v3462 = vadd.f32 %v3204, %v3366
        %v3463 = vadd.f32 %v3205, %v3369
        %v3464 = vadd.f32 %v3206, %v3374
        %v3465 = vadd.f32 %v3207, %v3377
        %v3466 = vadd.f32 %v3208, %v3382
        %v3467 = vadd.f32 %v3209, %v3385
        %v3468 = vadd.f32 %v3210, %v3390
        %v3469 = vadd.f32 %v3211, %v3393
        %v3470 = vadd.f32 %v3212, %v3398
        %v3471 = vadd.f32 %v3213, %v3401
        %v3472 = vadd.f32 %v3214, %v3406
        %v3473 = vadd.f32 %v3215, %v3409
        %v3474 = vadd.f32 %v3216, %v3414
        %v3475 = vadd.f32 %v3217, %v3417
        %v3476 = vadd.f32 %v3218, %v3422
        %v3477 = vadd.f32 %v3219, %v3425
        %v3478 = vadd.f32 %v3220, %v3430
        %v3479 = vadd.f32 %v3221, %v3433
        %v3480 = vadd.f32 %v3222, %v3438
        %v3481 = vadd.f32 %v3223, %v3441
        %v3482 = vadd.f32 %v3224, %v3446
        %v3483 = vadd.f32 %v3225, %v3449
        %s3484 = scalar_lea.vmem [#allocation10], 448
        %v3485 = vld [vmem:[%s3484] sm:$0xf]
        %v3486 = vld [vmem:[%s3484 + $0x4] sm:$0xf]
        %v3487 = vld [vmem:[%s3484 + $0x8] sm:$0xf]
        %v3488 = vld [vmem:[%s3484 + $0xc] sm:$0xf]
        %v3489 = vld [vmem:[%s3484 + $0x10] sm:$0xf]
        %v3490 = vld [vmem:[%s3484 + $0x14] sm:$0xf]
        %v3491 = vld [vmem:[%s3484 + $0x18] sm:$0xf]
        %v3492 = vld [vmem:[%s3484 + $0x1c] sm:$0xf]
        %v3493 = vld [vmem:[%s3484 + $0x20] sm:$0xf]
        %v3494 = vld [vmem:[%s3484 + $0x24] sm:$0xf]
        %v3495 = vld [vmem:[%s3484 + $0x28] sm:$0xf]
        %v3496 = vld [vmem:[%s3484 + $0x2c] sm:$0xf]
        %v3497 = vld [vmem:[%s3484 + $0x30] sm:$0xf]
        %v3498 = vld [vmem:[%s3484 + $0x34] sm:$0xf]
        %v3499 = vld [vmem:[%s3484 + $0x38] sm:$0xf]
        %v3500 = vld [vmem:[%s3484 + $0x3c] sm:$0xf]
        %v3517 = vunpack.c.l.b16 %v3485
        %v3518 = vunpack.c.l.b16 %v3486
        %v3519 = vunpack.c.l.b16 %v3487
        %v3520 = vunpack.c.l.b16 %v3488
        %v3521 = vunpack.c.l.b16 %v3489
        %v3522 = vunpack.c.l.b16 %v3490
        %v3523 = vunpack.c.l.b16 %v3491
        %v3524 = vunpack.c.l.b16 %v3492
        %v3525 = vunpack.c.l.b16 %v3493
        %v3526 = vunpack.c.l.b16 %v3494
        %v3527 = vunpack.c.l.b16 %v3495
        %v3528 = vunpack.c.l.b16 %v3496
        %v3529 = vunpack.c.l.b16 %v3497
        %v3530 = vunpack.c.l.b16 %v3498
        %v3531 = vunpack.c.l.b16 %v3499
        %v3532 = vunpack.c.l.b16 %v3500
        %v3533 = vpack.c.b16 %v3518, %v3517
        %v3534 = vpack.c.b16 %v3520, %v3519
        %v3535 = vpack.c.b16 %v3522, %v3521
        %v3536 = vpack.c.b16 %v3524, %v3523
        %v3537 = vpack.c.b16 %v3526, %v3525
        %v3538 = vpack.c.b16 %v3528, %v3527
        %v3539 = vpack.c.b16 %v3530, %v3529
        %v3540 = vpack.c.b16 %v3532, %v3531
        %3549 = vmatprep.subr.bf16.mxu0 0
        %3550 = vmatpush1.bf16.msra.mxu0 %v3533
        %3551 = vmatprep.subr.bf16.mxu0 0
        %3552 = vmatpush1.bf16.msra.mxu0 %v3534
        %3553 = vmatprep.subr.bf16.mxu0 0
        %3554 = vmatpush1.bf16.msra.mxu0 %v3535
        %3555 = vmatprep.subr.bf16.mxu0 0
        %3556 = vmatpush1.bf16.msra.mxu0 %v3536
        %3557 = vmatprep.subr.bf16.mxu0 0
        %3558 = vmatpush1.bf16.msra.mxu0 %v3537
        %3559 = vmatprep.subr.bf16.mxu0 0
        %3560 = vmatpush1.bf16.msra.mxu0 %v3538
        %3561 = vmatprep.subr.bf16.mxu0 0
        %3562 = vmatpush1.bf16.msra.mxu0 %v3539
        %3563 = vmatprep.subr.bf16.mxu0 0
        %3564 = vmatpush1.bf16.msra.mxu0 %v3540
        %3565 = vmatprep.subr.bf16.mxu0 0
        %3566 = vmatpush1.bf16.msra.mxu0 0
        %3567 = vmatprep.subr.bf16.mxu0 0
        %3568 = vmatpush1.bf16.msra.mxu0 0
        %3569 = vmatprep.subr.bf16.mxu0 0
        %3570 = vmatpush1.bf16.msra.mxu0 0
        %3571 = vmatprep.subr.bf16.mxu0 0
        %3572 = vmatpush1.bf16.msra.mxu0 0
        %3573 = vmatprep.subr.bf16.mxu0 0
        %3574 = vmatpush1.bf16.msra.mxu0 0
        %3575 = vmatprep.subr.bf16.mxu0 0
        %3576 = vmatpush1.bf16.msra.mxu0 0
        %3577 = vmatprep.subr.bf16.mxu0 0
        %3578 = vmatpush1.bf16.msra.mxu0 0
        %3579 = vmatprep.subr.bf16.mxu0 0
        %3580 = vmatpush1.bf16.msra.mxu0 0
        %3581 = vmatprep.mubr.bf16.mxu0 0
        %3582 = vmatmul.mubr.bf16.gmra.mrb[0].mxu0 %v1709
        %v3583 = vpop.f32.mrb[0].mxu0
        %v3584 = vadd.f32 0.0, %v3583
        %v3585 = vpop.f32.mrb[0].mxu0
        %v3586 = vpop.f32.mrb[0].mxu0
        %v3587 = vadd.f32 0.0, %v3586
        %v3588 = vpop.f32.mrb[0].mxu0
        %3589 = vmatprep.mubr.bf16.mxu0 0
        %3590 = vmatmul.mubr.bf16.gmra.mrb[0].mxu0 %v1710
        %v3591 = vpop.f32.mrb[0].mxu0
        %v3592 = vadd.f32 0.0, %v3591
        %v3593 = vpop.f32.mrb[0].mxu0
        %v3594 = vpop.f32.mrb[0].mxu0
        %v3595 = vadd.f32 0.0, %v3594
        %v3596 = vpop.f32.mrb[0].mxu0
        %3597 = vmatprep.mubr.bf16.mxu0 0
        %3598 = vmatmul.mubr.bf16.gmra.mrb[0].mxu0 %v1711
        %v3599 = vpop.f32.mrb[0].mxu0
        %v3600 = vadd.f32 0.0, %v3599
        %v3601 = vpop.f32.mrb[0].mxu0
        %v3602 = vpop.f32.mrb[0].mxu0
        %v3603 = vadd.f32 0.0, %v3602
        %v3604 = vpop.f32.mrb[0].mxu0
        %3605 = vmatprep.mubr.bf16.mxu0 0
        %3606 = vmatmul.mubr.bf16.gmra.mrb[0].mxu0 %v1712
        %v3607 = vpop.f32.mrb[0].mxu0
        %v3608 = vadd.f32 0.0, %v3607
        %v3609 = vpop.f32.mrb[0].mxu0
        %v3610 = vpop.f32.mrb[0].mxu0
        %v3611 = vadd.f32 0.0, %v3610
        %v3612 = vpop.f32.mrb[0].mxu0
        %3613 = vmatprep.mubr.bf16.mxu0 0
        %3614 = vmatmul.mubr.bf16.gmra.mrb[0].mxu0 %v1713
        %v3615 = vpop.f32.mrb[0].mxu0
        %v3616 = vadd.f32 0.0, %v3615
        %v3617 = vpop.f32.mrb[0].mxu0
        %v3618 = vpop.f32.mrb[0].mxu0
        %v3619 = vadd.f32 0.0, %v3618
        %v3620 = vpop.f32.mrb[0].mxu0
        %3621 = vmatprep.mubr.bf16.mxu0 0
        %3622 = vmatmul.mubr.bf16.gmra.mrb[0].mxu0 %v1714
        %v3623 = vpop.f32.mrb[0].mxu0
        %v3624 = vadd.f32 0.0, %v3623
        %v3625 = vpop.f32.mrb[0].mxu0
        %v3626 = vpop.f32.mrb[0].mxu0
        %v3627 = vadd.f32 0.0, %v3626
        %v3628 = vpop.f32.mrb[0].mxu0
        %3629 = vmatprep.mubr.bf16.mxu0 0
        %3630 = vmatmul.mubr.bf16.gmra.mrb[0].mxu0 %v1715
        %v3631 = vpop.f32.mrb[0].mxu0
        %v3632 = vadd.f32 0.0, %v3631
        %v3633 = vpop.f32.mrb[0].mxu0
        %v3634 = vpop.f32.mrb[0].mxu0
        %v3635 = vadd.f32 0.0, %v3634
        %v3636 = vpop.f32.mrb[0].mxu0
        %3637 = vmatprep.mubr.bf16.mxu0 0
        %3638 = vmatmul.mubr.bf16.gmra.mrb[0].mxu0 %v1716
        %v3639 = vpop.f32.mrb[0].mxu0
        %v3640 = vadd.f32 0.0, %v3639
        %v3641 = vpop.f32.mrb[0].mxu0
        %v3642 = vpop.f32.mrb[0].mxu0
        %v3643 = vadd.f32 0.0, %v3642
        %v3644 = vpop.f32.mrb[0].mxu0
        %3645 = vmatprep.mubr.bf16.mxu0 0
        %3646 = vmatmul.mubr.bf16.gmra.mrb[0].mxu0 %v1717
        %v3647 = vpop.f32.mrb[0].mxu0
        %v3648 = vadd.f32 0.0, %v3647
        %v3649 = vpop.f32.mrb[0].mxu0
        %v3650 = vpop.f32.mrb[0].mxu0
        %v3651 = vadd.f32 0.0, %v3650
        %v3652 = vpop.f32.mrb[0].mxu0
        %3653 = vmatprep.mubr.bf16.mxu0 0
        %3654 = vmatmul.mubr.bf16.gmra.mrb[0].mxu0 %v1718
        %v3655 = vpop.f32.mrb[0].mxu0
        %v3656 = vadd.f32 0.0, %v3655
        %v3657 = vpop.f32.mrb[0].mxu0
        %v3658 = vpop.f32.mrb[0].mxu0
        %v3659 = vadd.f32 0.0, %v3658
        %v3660 = vpop.f32.mrb[0].mxu0
        %3661 = vmatprep.mubr.bf16.mxu0 0
        %3662 = vmatmul.mubr.bf16.gmra.mrb[0].mxu0 %v1719
        %v3663 = vpop.f32.mrb[0].mxu0
        %v3664 = vadd.f32 0.0, %v3663
        %v3665 = vpop.f32.mrb[0].mxu0
        %v3666 = vpop.f32.mrb[0].mxu0
        %v3667 = vadd.f32 0.0, %v3666
        %v3668 = vpop.f32.mrb[0].mxu0
        %3669 = vmatprep.mubr.bf16.mxu0 0
        %3670 = vmatmul.mubr.bf16.gmra.mrb[0].mxu0 %v1720
        %v3671 = vpop.f32.mrb[0].mxu0
        %v3672 = vadd.f32 0.0, %v3671
        %v3673 = vpop.f32.mrb[0].mxu0
        %v3674 = vpop.f32.mrb[0].mxu0
        %v3675 = vadd.f32 0.0, %v3674
        %v3676 = vpop.f32.mrb[0].mxu0
        %3677 = vmatprep.mubr.bf16.mxu0 0
        %3678 = vmatmul.mubr.bf16.gmra.mrb[0].mxu0 %v1721
        %v3679 = vpop.f32.mrb[0].mxu0
        %v3680 = vadd.f32 0.0, %v3679
        %v3681 = vpop.f32.mrb[0].mxu0
        %v3682 = vpop.f32.mrb[0].mxu0
        %v3683 = vadd.f32 0.0, %v3682
        %v3684 = vpop.f32.mrb[0].mxu0
        %3685 = vmatprep.mubr.bf16.mxu0 0
        %3686 = vmatmul.mubr.bf16.gmra.mrb[0].mxu0 %v1722
        %v3687 = vpop.f32.mrb[0].mxu0
        %v3688 = vadd.f32 0.0, %v3687
        %v3689 = vpop.f32.mrb[0].mxu0
        %v3690 = vpop.f32.mrb[0].mxu0
        %v3691 = vadd.f32 0.0, %v3690
        %v3692 = vpop.f32.mrb[0].mxu0
        %3693 = vmatprep.mubr.bf16.mxu0 0
        %3694 = vmatmul.mubr.bf16.gmra.mrb[0].mxu0 %v1723
        %v3695 = vpop.f32.mrb[0].mxu0
        %v3696 = vadd.f32 0.0, %v3695
        %v3697 = vpop.f32.mrb[0].mxu0
        %v3698 = vpop.f32.mrb[0].mxu0
        %v3699 = vadd.f32 0.0, %v3698
        %v3700 = vpop.f32.mrb[0].mxu0
        %3701 = vmatprep.mubr.bf16.mxu0 0
        %3702 = vmatmul.mubr.bf16.gmra.mrb[0].mxu0 %v1724
        %v3703 = vpop.f32.mrb[0].mxu0
        %v3704 = vadd.f32 0.0, %v3703
        %v3705 = vpop.f32.mrb[0].mxu0
        %v3706 = vpop.f32.mrb[0].mxu0
        %v3707 = vadd.f32 0.0, %v3706
        %v3708 = vpop.f32.mrb[0].mxu0
        %3709 = vdwg.mxu0
        %v3710 = vadd.f32 %v3452, %v3584
        %v3711 = vadd.f32 %v3453, %v3587
        %v3712 = vadd.f32 %v3454, %v3592
        %v3713 = vadd.f32 %v3455, %v3595
        %v3714 = vadd.f32 %v3456, %v3600
        %v3715 = vadd.f32 %v3457, %v3603
        %v3716 = vadd.f32 %v3458, %v3608
        %v3717 = vadd.f32 %v3459, %v3611
        %v3718 = vadd.f32 %v3460, %v3616
        %v3719 = vadd.f32 %v3461, %v3619
        %v3720 = vadd.f32 %v3462, %v3624
        %v3721 = vadd.f32 %v3463, %v3627
        %v3722 = vadd.f32 %v3464, %v3632
        %v3723 = vadd.f32 %v3465, %v3635
        %v3724 = vadd.f32 %v3466, %v3640
        %v3725 = vadd.f32 %v3467, %v3643
        %v3726 = vadd.f32 %v3468, %v3648
        %v3727 = vadd.f32 %v3469, %v3651
        %v3728 = vadd.f32 %v3470, %v3656
        %v3729 = vadd.f32 %v3471, %v3659
        %v3730 = vadd.f32 %v3472, %v3664
        %v3731 = vadd.f32 %v3473, %v3667
        %v3732 = vadd.f32 %v3474, %v3672
        %v3733 = vadd.f32 %v3475, %v3675
        %v3734 = vadd.f32 %v3476, %v3680
        %v3735 = vadd.f32 %v3477, %v3683
        %v3736 = vadd.f32 %v3478, %v3688
        %v3737 = vadd.f32 %v3479, %v3691
        %v3738 = vadd.f32 %v3480, %v3696
        %v3739 = vadd.f32 %v3481, %v3699
        %v3740 = vadd.f32 %v3482, %v3704
        %v3741 = vadd.f32 %v3483, %v3707
        %s3742 = scalar_lea.vmem [#allocation10], 512
        %v3743 = vld [vmem:[%s3742] sm:$0xf]
        %v3744 = vld [vmem:[%s3742 + $0x4] sm:$0xf]
        %v3745 = vld [vmem:[%s3742 + $0x8] sm:$0xf]
        %v3746 = vld [vmem:[%s3742 + $0xc] sm:$0xf]
        %v3747 = vld [vmem:[%s3742 + $0x10] sm:$0xf]
        %v3748 = vld [vmem:[%s3742 + $0x14] sm:$0xf]
        %v3749 = vld [vmem:[%s3742 + $0x18] sm:$0xf]
        %v3750 = vld [vmem:[%s3742 + $0x1c] sm:$0xf]
        %v3751 = vld [vmem:[%s3742 + $0x20] sm:$0xf]
        %v3752 = vld [vmem:[%s3742 + $0x24] sm:$0xf]
        %v3753 = vld [vmem:[%s3742 + $0x28] sm:$0xf]
        %v3754 = vld [vmem:[%s3742 + $0x2c] sm:$0xf]
        %v3755 = vld [vmem:[%s3742 + $0x30] sm:$0xf]
        %v3756 = vld [vmem:[%s3742 + $0x34] sm:$0xf]
        %v3757 = vld [vmem:[%s3742 + $0x38] sm:$0xf]
        %v3758 = vld [vmem:[%s3742 + $0x3c] sm:$0xf]
        %v3775 = vunpack.c.l.b16 %v3743
        %v3776 = vunpack.c.l.b16 %v3744
        %v3777 = vunpack.c.l.b16 %v3745
        %v3778 = vunpack.c.l.b16 %v3746
        %v3779 = vunpack.c.l.b16 %v3747
        %v3780 = vunpack.c.l.b16 %v3748
        %v3781 = vunpack.c.l.b16 %v3749
        %v3782 = vunpack.c.l.b16 %v3750
        %v3783 = vunpack.c.l.b16 %v3751
        %v3784 = vunpack.c.l.b16 %v3752
        %v3785 = vunpack.c.l.b16 %v3753
        %v3786 = vunpack.c.l.b16 %v3754
        %v3787 = vunpack.c.l.b16 %v3755
        %v3788 = vunpack.c.l.b16 %v3756
        %v3789 = vunpack.c.l.b16 %v3757
        %v3790 = vunpack.c.l.b16 %v3758
        %v3791 = vpack.c.b16 %v3776, %v3775
        %v3792 = vpack.c.b16 %v3778, %v3777
        %v3793 = vpack.c.b16 %v3780, %v3779
        %v3794 = vpack.c.b16 %v3782, %v3781
        %v3795 = vpack.c.b16 %v3784, %v3783
        %v3796 = vpack.c.b16 %v3786, %v3785
        %v3797 = vpack.c.b16 %v3788, %v3787
        %v3798 = vpack.c.b16 %v3790, %v3789
        %3807 = vmatprep.subr.bf16.mxu0 0
        %3808 = vmatpush1.bf16.msra.mxu0 %v3791
        %3809 = vmatprep.subr.bf16.mxu0 0
        %3810 = vmatpush1.bf16.msra.mxu0 %v3792
        %3811 = vmatprep.subr.bf16.mxu0 0
        %3812 = vmatpush1.bf16.msra.mxu0 %v3793
        %3813 = vmatprep.subr.bf16.mxu0 0
        %3814 = vmatpush1.bf16.msra.mxu0 %v3794
        %3815 = vmatprep.subr.bf16.mxu0 0
        %3816 = vmatpush1.bf16.msra.mxu0 %v3795
        %3817 = vmatprep.subr.bf16.mxu0 0
        %3818 = vmatpush1.bf16.msra.mxu0 %v3796
        %3819 = vmatprep.subr.bf16.mxu0 0
        %3820 = vmatpush1.bf16.msra.mxu0 %v3797
        %3821 = vmatprep.subr.bf16.mxu0 0
        %3822 = vmatpush1.bf16.msra.mxu0 %v3798
        %3823 = vmatprep.subr.bf16.mxu0 0
        %3824 = vmatpush1.bf16.msra.mxu0 0
        %3825 = vmatprep.subr.bf16.mxu0 0
        %3826 = vmatpush1.bf16.msra.mxu0 0
        %3827 = vmatprep.subr.bf16.mxu0 0
        %3828 = vmatpush1.bf16.msra.mxu0 0
        %3829 = vmatprep.subr.bf16.mxu0 0
        %3830 = vmatpush1.bf16.msra.mxu0 0
        %3831 = vmatprep.subr.bf16.mxu0 0
        %3832 = vmatpush1.bf16.msra.mxu0 0
        %3833 = vmatprep.subr.bf16.mxu0 0
        %3834 = vmatpush1.bf16.msra.mxu0 0
        %3835 = vmatprep.subr.bf16.mxu0 0
        %3836 = vmatpush1.bf16.msra.mxu0 0
        %3837 = vmatprep.subr.bf16.mxu0 0
        %3838 = vmatpush1.bf16.msra.mxu0 0
        %3839 = vmatprep.mubr.bf16.mxu0 0
        %3840 = vmatmul.mubr.bf16.gmra.mrb[0].mxu0 %v1727
        %v3841 = vpop.f32.mrb[0].mxu0
        %v3842 = vadd.f32 0.0, %v3841
        %v3843 = vpop.f32.mrb[0].mxu0
        %v3844 = vpop.f32.mrb[0].mxu0
        %v3845 = vadd.f32 0.0, %v3844
        %v3846 = vpop.f32.mrb[0].mxu0
        %3847 = vmatprep.mubr.bf16.mxu0 0
        %3848 = vmatmul.mubr.bf16.gmra.mrb[0].mxu0 %v1728
        %v3849 = vpop.f32.mrb[0].mxu0
        %v3850 = vadd.f32 0.0, %v3849
        %v3851 = vpop.f32.mrb[0].mxu0
        %v3852 = vpop.f32.mrb[0].mxu0
        %v3853 = vadd.f32 0.0, %v3852
        %v3854 = vpop.f32.mrb[0].mxu0
        %3855 = vmatprep.mubr.bf16.mxu0 0
        %3856 = vmatmul.mubr.bf16.gmra.mrb[0].mxu0 %v1729
        %v3857 = vpop.f32.mrb[0].mxu0
        %v3858 = vadd.f32 0.0, %v3857
        %v3859 = vpop.f32.mrb[0].mxu0
        %v3860 = vpop.f32.mrb[0].mxu0
        %v3861 = vadd.f32 0.0, %v3860
        %v3862 = vpop.f32.mrb[0].mxu0
        %3863 = vmatprep.mubr.bf16.mxu0 0
        %3864 = vmatmul.mubr.bf16.gmra.mrb[0].mxu0 %v1730
        %v3865 = vpop.f32.mrb[0].mxu0
        %v3866 = vadd.f32 0.0, %v3865
        %v3867 = vpop.f32.mrb[0].mxu0
        %v3868 = vpop.f32.mrb[0].mxu0
        %v3869 = vadd.f32 0.0, %v3868
        %v3870 = vpop.f32.mrb[0].mxu0
        %3871 = vmatprep.mubr.bf16.mxu0 0
        %3872 = vmatmul.mubr.bf16.gmra.mrb[0].mxu0 %v1731
        %v3873 = vpop.f32.mrb[0].mxu0
        %v3874 = vadd.f32 0.0, %v3873
        %v3875 = vpop.f32.mrb[0].mxu0
        %v3876 = vpop.f32.mrb[0].mxu0
        %v3877 = vadd.f32 0.0, %v3876
        %v3878 = vpop.f32.mrb[0].mxu0
        %3879 = vmatprep.mubr.bf16.mxu0 0
        %3880 = vmatmul.mubr.bf16.gmra.mrb[0].mxu0 %v1732
        %v3881 = vpop.f32.mrb[0].mxu0
        %v3882 = vadd.f32 0.0, %v3881
        %v3883 = vpop.f32.mrb[0].mxu0
        %v3884 = vpop.f32.mrb[0].mxu0
        %v3885 = vadd.f32 0.0, %v3884
        %v3886 = vpop.f32.mrb[0].mxu0
        %3887 = vmatprep.mubr.bf16.mxu0 0
        %3888 = vmatmul.mubr.bf16.gmra.mrb[0].mxu0 %v1733
        %v3889 = vpop.f32.mrb[0].mxu0
        %v3890 = vadd.f32 0.0, %v3889
        %v3891 = vpop.f32.mrb[0].mxu0
        %v3892 = vpop.f32.mrb[0].mxu0
        %v3893 = vadd.f32 0.0, %v3892
        %v3894 = vpop.f32.mrb[0].mxu0
        %3895 = vmatprep.mubr.bf16.mxu0 0
        %3896 = vmatmul.mubr.bf16.gmra.mrb[0].mxu0 %v1734
        %v3897 = vpop.f32.mrb[0].mxu0
        %v3898 = vadd.f32 0.0, %v3897
        %v3899 = vpop.f32.mrb[0].mxu0
        %v3900 = vpop.f32.mrb[0].mxu0
        %v3901 = vadd.f32 0.0, %v3900
        %v3902 = vpop.f32.mrb[0].mxu0
        %3903 = vmatprep.mubr.bf16.mxu0 0
        %3904 = vmatmul.mubr.bf16.gmra.mrb[0].mxu0 %v1735
        %v3905 = vpop.f32.mrb[0].mxu0
        %v3906 = vadd.f32 0.0, %v3905
        %v3907 = vpop.f32.mrb[0].mxu0
        %v3908 = vpop.f32.mrb[0].mxu0
        %v3909 = vadd.f32 0.0, %v3908
        %v3910 = vpop.f32.mrb[0].mxu0
        %3911 = vmatprep.mubr.bf16.mxu0 0
        %3912 = vmatmul.mubr.bf16.gmra.mrb[0].mxu0 %v1736
        %v3913 = vpop.f32.mrb[0].mxu0
        %v3914 = vadd.f32 0.0, %v3913
        %v3915 = vpop.f32.mrb[0].mxu0
        %v3916 = vpop.f32.mrb[0].mxu0
        %v3917 = vadd.f32 0.0, %v3916
        %v3918 = vpop.f32.mrb[0].mxu0
        %3919 = vmatprep.mubr.bf16.mxu0 0
        %3920 = vmatmul.mubr.bf16.gmra.mrb[0].mxu0 %v1737
        %v3921 = vpop.f32.mrb[0].mxu0
        %v3922 = vadd.f32 0.0, %v3921
        %v3923 = vpop.f32.mrb[0].mxu0
        %v3924 = vpop.f32.mrb[0].mxu0
        %v3925 = vadd.f32 0.0, %v3924
        %v3926 = vpop.f32.mrb[0].mxu0
        %3927 = vmatprep.mubr.bf16.mxu0 0
        %3928 = vmatmul.mubr.bf16.gmra.mrb[0].mxu0 %v1738
        %v3929 = vpop.f32.mrb[0].mxu0
        %v3930 = vadd.f32 0.0, %v3929
        %v3931 = vpop.f32.mrb[0].mxu0
        %v3932 = vpop.f32.mrb[0].mxu0
        %v3933 = vadd.f32 0.0, %v3932
        %v3934 = vpop.f32.mrb[0].mxu0
        %3935 = vmatprep.mubr.bf16.mxu0 0
        %3936 = vmatmul.mubr.bf16.gmra.mrb[0].mxu0 %v1739
        %v3937 = vpop.f32.mrb[0].mxu0
        %v3938 = vadd.f32 0.0, %v3937
        %v3939 = vpop.f32.mrb[0].mxu0
        %v3940 = vpop.f32.mrb[0].mxu0
        %v3941 = vadd.f32 0.0, %v3940
        %v3942 = vpop.f32.mrb[0].mxu0
        %3943 = vmatprep.mubr.bf16.mxu0 0
        %3944 = vmatmul.mubr.bf16.gmra.mrb[0].mxu0 %v1740
        %v3945 = vpop.f32.mrb[0].mxu0
        %v3946 = vadd.f32 0.0, %v3945
        %v3947 = vpop.f32.mrb[0].mxu0
        %v3948 = vpop.f32.mrb[0].mxu0
        %v3949 = vadd.f32 0.0, %v3948
        %v3950 = vpop.f32.mrb[0].mxu0
        %3951 = vmatprep.mubr.bf16.mxu0 0
        %3952 = vmatmul.mubr.bf16.gmra.mrb[0].mxu0 %v1741
        %v3953 = vpop.f32.mrb[0].mxu0
        %v3954 = vadd.f32 0.0, %v3953
        %v3955 = vpop.f32.mrb[0].mxu0
        %v3956 = vpop.f32.mrb[0].mxu0
        %v3957 = vadd.f32 0.0, %v3956
        %v3958 = vpop.f32.mrb[0].mxu0
        %3959 = vmatprep.mubr.bf16.mxu0 0
        %3960 = vmatmul.mubr.bf16.gmra.mrb[0].mxu0 %v1742
        %v3961 = vpop.f32.mrb[0].mxu0
        %v3962 = vadd.f32 0.0, %v3961
        %v3963 = vpop.f32.mrb[0].mxu0
        %v3964 = vpop.f32.mrb[0].mxu0
        %v3965 = vadd.f32 0.0, %v3964
        %v3966 = vpop.f32.mrb[0].mxu0
        %3967 = vdwg.mxu0
        %v3968 = vadd.f32 %v3710, %v3842
        %v3969 = vadd.f32 %v3711, %v3845
        %v3970 = vadd.f32 %v3712, %v3850
        %v3971 = vadd.f32 %v3713, %v3853
        %v3972 = vadd.f32 %v3714, %v3858
        %v3973 = vadd.f32 %v3715, %v3861
        %v3974 = vadd.f32 %v3716, %v3866
        %v3975 = vadd.f32 %v3717, %v3869
        %v3976 = vadd.f32 %v3718, %v3874
        %v3977 = vadd.f32 %v3719, %v3877
        %v3978 = vadd.f32 %v3720, %v3882
        %v3979 = vadd.f32 %v3721, %v3885
        %v3980 = vadd.f32 %v3722, %v3890
        %v3981 = vadd.f32 %v3723, %v3893
        %v3982 = vadd.f32 %v3724, %v3898
        %v3983 = vadd.f32 %v3725, %v3901
        %v3984 = vadd.f32 %v3726, %v3906
        %v3985 = vadd.f32 %v3727, %v3909
        %v3986 = vadd.f32 %v3728, %v3914
        %v3987 = vadd.f32 %v3729, %v3917
        %v3988 = vadd.f32 %v3730, %v3922
        %v3989 = vadd.f32 %v3731, %v3925
        %v3990 = vadd.f32 %v3732, %v3930
        %v3991 = vadd.f32 %v3733, %v3933
        %v3992 = vadd.f32 %v3734, %v3938
        %v3993 = vadd.f32 %v3735, %v3941
        %v3994 = vadd.f32 %v3736, %v3946
        %v3995 = vadd.f32 %v3737, %v3949
        %v3996 = vadd.f32 %v3738, %v3954
        %v3997 = vadd.f32 %v3739, %v3957
        %v3998 = vadd.f32 %v3740, %v3962
        %v3999 = vadd.f32 %v3741, %v3965
        %v4000 = vld [vmem:[%s7] sm:$0x1]
        %v4002 = vlaneseq
        %v4003 = vshrl.u32 %v4002, 7
        %v4004 = vsub.s32 0, %v4003
        %v4005 = vrot.slane %v4000, %v4004
        %v4007 = vmul.f32 %v3968, %v4005
        %v4008 = vmul.f32 %v3969, %v4005
        %v4009 = vmul.f32 %v3970, %v4005
        %v4010 = vmul.f32 %v3971, %v4005
        %v4011 = vmul.f32 %v3972, %v4005
        %v4012 = vmul.f32 %v3973, %v4005
        %v4013 = vmul.f32 %v3974, %v4005
        %v4014 = vmul.f32 %v3975, %v4005
        %v4015 = vmul.f32 %v3976, %v4005
        %v4016 = vmul.f32 %v3977, %v4005
        %v4017 = vmul.f32 %v3978, %v4005
        %v4018 = vmul.f32 %v3979, %v4005
        %v4019 = vmul.f32 %v3980, %v4005
        %v4020 = vmul.f32 %v3981, %v4005
        %v4021 = vmul.f32 %v3982, %v4005
        %v4022 = vmul.f32 %v3983, %v4005
        %v4023 = vmul.f32 %v3984, %v4005
        %v4024 = vmul.f32 %v3985, %v4005
        %v4025 = vmul.f32 %v3986, %v4005
        %v4026 = vmul.f32 %v3987, %v4005
        %v4027 = vmul.f32 %v3988, %v4005
        %v4028 = vmul.f32 %v3989, %v4005
        %v4029 = vmul.f32 %v3990, %v4005
        %v4030 = vmul.f32 %v3991, %v4005
        %v4031 = vmul.f32 %v3992, %v4005
        %v4032 = vmul.f32 %v3993, %v4005
        %v4033 = vmul.f32 %v3994, %v4005
        %v4034 = vmul.f32 %v3995, %v4005
        %v4035 = vmul.f32 %v3996, %v4005
        %v4036 = vmul.f32 %v3997, %v4005
        %v4037 = vmul.f32 %v3998, %v4005
        %v4038 = vmul.f32 %v3999, %v4005
        %v4039 = vld [vmem:[%s8] sm:$0x1]
        %v4041 = vlaneseq
        %v4042 = vshrl.u32 %v4041, 7
        %v4043 = vsub.s32 0, %v4042
        %v4044 = vrot.slane %v4039, %v4043
        %v4046 = vadd.f32 %v4007, %v4044
        %v4047 = vadd.f32 %v4008, %v4044
        %v4048 = vadd.f32 %v4009, %v4044
        %v4049 = vadd.f32 %v4010, %v4044
        %v4050 = vadd.f32 %v4011, %v4044
        %v4051 = vadd.f32 %v4012, %v4044
        %v4052 = vadd.f32 %v4013, %v4044
        %v4053 = vadd.f32 %v4014, %v4044
        %v4054 = vadd.f32 %v4015, %v4044
        %v4055 = vadd.f32 %v4016, %v4044
        %v4056 = vadd.f32 %v4017, %v4044
        %v4057 = vadd.f32 %v4018, %v4044
        %v4058 = vadd.f32 %v4019, %v4044
        %v4059 = vadd.f32 %v4020, %v4044
        %v4060 = vadd.f32 %v4021, %v4044
        %v4061 = vadd.f32 %v4022, %v4044
        %v4062 = vadd.f32 %v4023, %v4044
        %v4063 = vadd.f32 %v4024, %v4044
        %v4064 = vadd.f32 %v4025, %v4044
        %v4065 = vadd.f32 %v4026, %v4044
        %v4066 = vadd.f32 %v4027, %v4044
        %v4067 = vadd.f32 %v4028, %v4044
        %v4068 = vadd.f32 %v4029, %v4044
        %v4069 = vadd.f32 %v4030, %v4044
        %v4070 = vadd.f32 %v4031, %v4044
        %v4071 = vadd.f32 %v4032, %v4044
        %v4072 = vadd.f32 %v4033, %v4044
        %v4073 = vadd.f32 %v4034, %v4044
        %v4074 = vadd.f32 %v4035, %v4044
        %v4075 = vadd.f32 %v4036, %v4044
        %v4076 = vadd.f32 %v4037, %v4044
        %v4077 = vadd.f32 %v4038, %v4044
        %v4078 = vsub.f32 0.0, %v4046
        %v4079 = vsub.f32 0.0, %v4047
        %v4080 = vsub.f32 0.0, %v4048
        %v4081 = vsub.f32 0.0, %v4049
        %v4082 = vsub.f32 0.0, %v4050
        %v4083 = vsub.f32 0.0, %v4051
        %v4084 = vsub.f32 0.0, %v4052
        %v4085 = vsub.f32 0.0, %v4053
        %v4086 = vsub.f32 0.0, %v4054
        %v4087 = vsub.f32 0.0, %v4055
        %v4088 = vsub.f32 0.0, %v4056
        %v4089 = vsub.f32 0.0, %v4057
        %v4090 = vsub.f32 0.0, %v4058
        %v4091 = vsub.f32 0.0, %v4059
        %v4092 = vsub.f32 0.0, %v4060
        %v4093 = vsub.f32 0.0, %v4061
        %v4094 = vsub.f32 0.0, %v4062
        %v4095 = vsub.f32 0.0, %v4063
        %v4096 = vsub.f32 0.0, %v4064
        %v4097 = vsub.f32 0.0, %v4065
        %v4098 = vsub.f32 0.0, %v4066
        %v4099 = vsub.f32 0.0, %v4067
        %v4100 = vsub.f32 0.0, %v4068
        %v4101 = vsub.f32 0.0, %v4069
        %v4102 = vsub.f32 0.0, %v4070
        %v4103 = vsub.f32 0.0, %v4071
        %v4104 = vsub.f32 0.0, %v4072
        %v4105 = vsub.f32 0.0, %v4073
        %v4106 = vsub.f32 0.0, %v4074
        %v4107 = vsub.f32 0.0, %v4075
        %v4108 = vsub.f32 0.0, %v4076
        %v4109 = vsub.f32 0.0, %v4077
        %v4110 = vmul.f32 %v4078, 1.442695
        %v4111 = vpow.pop %v4110
        %v4112 = vmul.f32 %v4079, 1.442695
        %v4113 = vpow.pop %v4112
        %v4114 = vmul.f32 %v4080, 1.442695
        %v4115 = vpow.pop %v4114
        %v4116 = vmul.f32 %v4081, 1.442695
        %v4117 = vpow.pop %v4116
        %v4118 = vmul.f32 %v4082, 1.442695
        %v4119 = vpow.pop %v4118
        %v4120 = vmul.f32 %v4083, 1.442695
        %v4121 = vpow.pop %v4120
        %v4122 = vmul.f32 %v4084, 1.442695
        %v4123 = vpow.pop %v4122
        %v4124 = vmul.f32 %v4085, 1.442695
        %v4125 = vpow.pop %v4124
        %v4126 = vmul.f32 %v4086, 1.442695
        %v4127 = vpow.pop %v4126
        %v4128 = vmul.f32 %v4087, 1.442695
        %v4129 = vpow.pop %v4128
        %v4130 = vmul.f32 %v4088, 1.442695
        %v4131 = vpow.pop %v4130
        %v4132 = vmul.f32 %v4089, 1.442695
        %v4133 = vpow.pop %v4132
        %v4134 = vmul.f32 %v4090, 1.442695
        %v4135 = vpow.pop %v4134
        %v4136 = vmul.f32 %v4091, 1.442695
        %v4137 = vpow.pop %v4136
        %v4138 = vmul.f32 %v4092, 1.442695
        %v4139 = vpow.pop %v4138
        %v4140 = vmul.f32 %v4093, 1.442695
        %v4141 = vpow.pop %v4140
        %v4142 = vmul.f32 %v4094, 1.442695
        %v4143 = vpow.pop %v4142
        %v4144 = vmul.f32 %v4095, 1.442695
        %v4145 = vpow.pop %v4144
        %v4146 = vmul.f32 %v4096, 1.442695
        %v4147 = vpow.pop %v4146
        %v4148 = vmul.f32 %v4097, 1.442695
        %v4149 = vpow.pop %v4148
        %v4150 = vmul.f32 %v4098, 1.442695
        %v4151 = vpow.pop %v4150
        %v4152 = vmul.f32 %v4099, 1.442695
        %v4153 = vpow.pop %v4152
        %v4154 = vmul.f32 %v4100, 1.442695
        %v4155 = vpow.pop %v4154
        %v4156 = vmul.f32 %v4101, 1.442695
        %v4157 = vpow.pop %v4156
        %v4158 = vmul.f32 %v4102, 1.442695
        %v4159 = vpow.pop %v4158
        %v4160 = vmul.f32 %v4103, 1.442695
        %v4161 = vpow.pop %v4160
        %v4162 = vmul.f32 %v4104, 1.442695
        %v4163 = vpow.pop %v4162
        %v4164 = vmul.f32 %v4105, 1.442695
        %v4165 = vpow.pop %v4164
        %v4166 = vmul.f32 %v4106, 1.442695
        %v4167 = vpow.pop %v4166
        %v4168 = vmul.f32 %v4107, 1.442695
        %v4169 = vpow.pop %v4168
        %v4170 = vmul.f32 %v4108, 1.442695
        %v4171 = vpow.pop %v4170
        %v4172 = vmul.f32 %v4109, 1.442695
        %v4173 = vpow.pop %v4172
        %v4174 = vadd.f32 %v4111, 1.0
        %v4175 = vadd.f32 %v4113, 1.0
        %v4176 = vadd.f32 %v4115, 1.0
        %v4177 = vadd.f32 %v4117, 1.0
        %v4178 = vadd.f32 %v4119, 1.0
        %v4179 = vadd.f32 %v4121, 1.0
        %v4180 = vadd.f32 %v4123, 1.0
        %v4181 = vadd.f32 %v4125, 1.0
        %v4182 = vadd.f32 %v4127, 1.0
        %v4183 = vadd.f32 %v4129, 1.0
        %v4184 = vadd.f32 %v4131, 1.0
        %v4185 = vadd.f32 %v4133, 1.0
        %v4186 = vadd.f32 %v4135, 1.0
        %v4187 = vadd.f32 %v4137, 1.0
        %v4188 = vadd.f32 %v4139, 1.0
        %v4189 = vadd.f32 %v4141, 1.0
        %v4190 = vadd.f32 %v4143, 1.0
        %v4191 = vadd.f32 %v4145, 1.0
        %v4192 = vadd.f32 %v4147, 1.0
        %v4193 = vadd.f32 %v4149, 1.0
        %v4194 = vadd.f32 %v4151, 1.0
        %v4195 = vadd.f32 %v4153, 1.0
        %v4196 = vadd.f32 %v4155, 1.0
        %v4197 = vadd.f32 %v4157, 1.0
        %v4198 = vadd.f32 %v4159, 1.0
        %v4199 = vadd.f32 %v4161, 1.0
        %v4200 = vadd.f32 %v4163, 1.0
        %v4201 = vadd.f32 %v4165, 1.0
        %v4202 = vadd.f32 %v4167, 1.0
        %v4203 = vadd.f32 %v4169, 1.0
        %v4204 = vadd.f32 %v4171, 1.0
        %v4205 = vadd.f32 %v4173, 1.0
        %v4206 = vrcp.pop %v4174
        %v4207 = vrcp.pop %v4175
        %v4208 = vrcp.pop %v4176
        %v4209 = vrcp.pop %v4177
        %v4210 = vrcp.pop %v4178
        %v4211 = vrcp.pop %v4179
        %v4212 = vrcp.pop %v4180
        %v4213 = vrcp.pop %v4181
        %v4214 = vrcp.pop %v4182
        %v4215 = vrcp.pop %v4183
        %v4216 = vrcp.pop %v4184
        %v4217 = vrcp.pop %v4185
        %v4218 = vrcp.pop %v4186
        %v4219 = vrcp.pop %v4187
        %v4220 = vrcp.pop %v4188
        %v4221 = vrcp.pop %v4189
        %v4222 = vrcp.pop %v4190
        %v4223 = vrcp.pop %v4191
        %v4224 = vrcp.pop %v4192
        %v4225 = vrcp.pop %v4193
        %v4226 = vrcp.pop %v4194
        %v4227 = vrcp.pop %v4195
        %v4228 = vrcp.pop %v4196
        %v4229 = vrcp.pop %v4197
        %v4230 = vrcp.pop %v4198
        %v4231 = vrcp.pop %v4199
        %v4232 = vrcp.pop %v4200
        %v4233 = vrcp.pop %v4201
        %v4234 = vrcp.pop %v4202
        %v4235 = vrcp.pop %v4203
        %v4236 = vrcp.pop %v4204
        %v4237 = vrcp.pop %v4205
        %v4238 = vmul.f32 %v4046, %v4206
        %v4239 = vmul.f32 %v4047, %v4207
        %v4240 = vmul.f32 %v4048, %v4208
        %v4241 = vmul.f32 %v4049, %v4209
        %v4242 = vmul.f32 %v4050, %v4210
        %v4243 = vmul.f32 %v4051, %v4211
        %v4244 = vmul.f32 %v4052, %v4212
        %v4245 = vmul.f32 %v4053, %v4213
        %v4246 = vmul.f32 %v4054, %v4214
        %v4247 = vmul.f32 %v4055, %v4215
        %v4248 = vmul.f32 %v4056, %v4216
        %v4249 = vmul.f32 %v4057, %v4217
        %v4250 = vmul.f32 %v4058, %v4218
        %v4251 = vmul.f32 %v4059, %v4219
        %v4252 = vmul.f32 %v4060, %v4220
        %v4253 = vmul.f32 %v4061, %v4221
        %v4254 = vmul.f32 %v4062, %v4222
        %v4255 = vmul.f32 %v4063, %v4223
        %v4256 = vmul.f32 %v4064, %v4224
        %v4257 = vmul.f32 %v4065, %v4225
        %v4258 = vmul.f32 %v4066, %v4226
        %v4259 = vmul.f32 %v4067, %v4227
        %v4260 = vmul.f32 %v4068, %v4228
        %v4261 = vmul.f32 %v4069, %v4229
        %v4262 = vmul.f32 %v4070, %v4230
        %v4263 = vmul.f32 %v4071, %v4231
        %v4264 = vmul.f32 %v4072, %v4232
        %v4265 = vmul.f32 %v4073, %v4233
        %v4266 = vmul.f32 %v4074, %v4234
        %v4267 = vmul.f32 %v4075, %v4235
        %v4268 = vmul.f32 %v4076, %v4236
        %v4269 = vmul.f32 %v4077, %v4237
        %v4270 = vunpack.c.l.bf16 %v519
        %v4271 = vunpack.c.l.bf16 %v520
        %v4272 = vunpack.c.l.bf16 %v521
        %v4273 = vunpack.c.l.bf16 %v522
        %v4274 = vunpack.c.l.bf16 %v523
        %v4275 = vunpack.c.l.bf16 %v524
        %v4276 = vunpack.c.l.bf16 %v525
        %v4277 = vunpack.c.l.bf16 %v526
        %v4278 = vunpack.c.l.bf16 %v527
        %v4279 = vunpack.c.l.bf16 %v528
        %v4280 = vunpack.c.l.bf16 %v529
        %v4281 = vunpack.c.l.bf16 %v530
        %v4282 = vunpack.c.l.bf16 %v531
        %v4283 = vunpack.c.l.bf16 %v532
        %v4284 = vunpack.c.l.bf16 %v533
        %v4285 = vunpack.c.l.bf16 %v534
        %v4286 = vunpack.c.l.bf16 %v535
        %v4287 = vunpack.c.l.bf16 %v536
        %v4288 = vunpack.c.l.bf16 %v537
        %v4289 = vunpack.c.l.bf16 %v538
        %v4290 = vunpack.c.l.bf16 %v539
        %v4291 = vunpack.c.l.bf16 %v540
        %v4292 = vunpack.c.l.bf16 %v541
        %v4293 = vunpack.c.l.bf16 %v542
        %v4294 = vunpack.c.l.bf16 %v543
        %v4295 = vunpack.c.l.bf16 %v544
        %v4296 = vunpack.c.l.bf16 %v545
        %v4297 = vunpack.c.l.bf16 %v546
        %v4298 = vunpack.c.l.bf16 %v547
        %v4299 = vunpack.c.l.bf16 %v548
        %v4300 = vunpack.c.l.bf16 %v549
        %v4301 = vunpack.c.l.bf16 %v550
        %v4302 = vadd.f32 %v4238, %v4270
        %v4303 = vadd.f32 %v4239, %v4271
        %v4304 = vadd.f32 %v4240, %v4272
        %v4305 = vadd.f32 %v4241, %v4273
        %v4306 = vadd.f32 %v4242, %v4274
        %v4307 = vadd.f32 %v4243, %v4275
        %v4308 = vadd.f32 %v4244, %v4276
        %v4309 = vadd.f32 %v4245, %v4277
        %v4310 = vadd.f32 %v4246, %v4278
        %v4311 = vadd.f32 %v4247, %v4279
        %v4312 = vadd.f32 %v4248, %v4280
        %v4313 = vadd.f32 %v4249, %v4281
        %v4314 = vadd.f32 %v4250, %v4282
        %v4315 = vadd.f32 %v4251, %v4283
        %v4316 = vadd.f32 %v4252, %v4284
        %v4317 = vadd.f32 %v4253, %v4285
        %v4318 = vadd.f32 %v4254, %v4286
        %v4319 = vadd.f32 %v4255, %v4287
        %v4320 = vadd.f32 %v4256, %v4288
        %v4321 = vadd.f32 %v4257, %v4289
        %v4322 = vadd.f32 %v4258, %v4290
        %v4323 = vadd.f32 %v4259, %v4291
        %v4324 = vadd.f32 %v4260, %v4292
        %v4325 = vadd.f32 %v4261, %v4293
        %v4326 = vadd.f32 %v4262, %v4294
        %v4327 = vadd.f32 %v4263, %v4295
        %v4328 = vadd.f32 %v4264, %v4296
        %v4329 = vadd.f32 %v4265, %v4297
        %v4330 = vadd.f32 %v4266, %v4298
        %v4331 = vadd.f32 %v4267, %v4299
        %v4332 = vadd.f32 %v4268, %v4300
        %v4333 = vadd.f32 %v4269, %v4301
        %v4334 = vpack.c.bf16 %v4303, %v4302
        %v4335 = vpack.c.bf16 %v4305, %v4304
        %v4336 = vpack.c.bf16 %v4307, %v4306
        %v4337 = vpack.c.bf16 %v4309, %v4308
        %v4338 = vpack.c.bf16 %v4311, %v4310
        %v4339 = vpack.c.bf16 %v4313, %v4312
        %v4340 = vpack.c.bf16 %v4315, %v4314
        %v4341 = vpack.c.bf16 %v4317, %v4316
        %v4342 = vpack.c.bf16 %v4319, %v4318
        %v4343 = vpack.c.bf16 %v4321, %v4320
        %v4344 = vpack.c.bf16 %v4323, %v4322
        %v4345 = vpack.c.bf16 %v4325, %v4324
        %v4346 = vpack.c.bf16 %v4327, %v4326
        %v4347 = vpack.c.bf16 %v4329, %v4328
        %v4348 = vpack.c.bf16 %v4331, %v4330
        %v4349 = vpack.c.bf16 %v4333, %v4332
        %v4366 = vunpack.c.l.b16 %v4334
        %v4367 = vunpack.c.h.b16 %v4334
        %v4368 = vunpack.c.l.b16 %v4335
        %v4369 = vunpack.c.h.b16 %v4335
        %v4370 = vunpack.c.l.b16 %v4336
        %v4371 = vunpack.c.h.b16 %v4336
        %v4372 = vunpack.c.l.b16 %v4337
        %v4373 = vunpack.c.h.b16 %v4337
        %v4374 = vunpack.c.l.b16 %v4338
        %v4375 = vunpack.c.h.b16 %v4338
        %v4376 = vunpack.c.l.b16 %v4339
        %v4377 = vunpack.c.h.b16 %v4339
        %v4378 = vunpack.c.l.b16 %v4340
        %v4379 = vunpack.c.h.b16 %v4340
        %v4380 = vunpack.c.l.b16 %v4341
        %v4381 = vunpack.c.h.b16 %v4341
        %v4382 = vunpack.c.l.b16 %v4342
        %v4383 = vunpack.c.h.b16 %v4342
        %v4384 = vunpack.c.l.b16 %v4343
        %v4385 = vunpack.c.h.b16 %v4343
        %v4386 = vunpack.c.l.b16 %v4344
        %v4387 = vunpack.c.h.b16 %v4344
        %v4388 = vunpack.c.l.b16 %v4345
        %v4389 = vunpack.c.h.b16 %v4345
        %v4390 = vunpack.c.l.b16 %v4346
        %v4391 = vunpack.c.h.b16 %v4346
        %v4392 = vunpack.c.l.b16 %v4347
        %v4393 = vunpack.c.h.b16 %v4347
        %v4394 = vunpack.c.l.b16 %v4348
        %v4395 = vunpack.c.h.b16 %v4348
        %v4396 = vunpack.c.l.b16 %v4349
        %v4397 = vunpack.c.h.b16 %v4349
        %v4398 = vpack.c.b16 %v4366, %v4366
        %v4399 = vpack.c.b16 %v4367, %v4367
        %v4400 = vpack.c.b16 %v4368, %v4368
        %v4401 = vpack.c.b16 %v4369, %v4369
        %v4402 = vpack.c.b16 %v4370, %v4370
        %v4403 = vpack.c.b16 %v4371, %v4371
        %v4404 = vpack.c.b16 %v4372, %v4372
        %v4405 = vpack.c.b16 %v4373, %v4373
        %v4406 = vpack.c.b16 %v4374, %v4374
        %v4407 = vpack.c.b16 %v4375, %v4375
        %v4408 = vpack.c.b16 %v4376, %v4376
        %v4409 = vpack.c.b16 %v4377, %v4377
        %v4410 = vpack.c.b16 %v4378, %v4378
        %v4411 = vpack.c.b16 %v4379, %v4379
        %v4412 = vpack.c.b16 %v4380, %v4380
        %v4413 = vpack.c.b16 %v4381, %v4381
        %v4414 = vpack.c.b16 %v4382, %v4382
        %v4415 = vpack.c.b16 %v4383, %v4383
        %v4416 = vpack.c.b16 %v4384, %v4384
        %v4417 = vpack.c.b16 %v4385, %v4385
        %v4418 = vpack.c.b16 %v4386, %v4386
        %v4419 = vpack.c.b16 %v4387, %v4387
        %v4420 = vpack.c.b16 %v4388, %v4388
        %v4421 = vpack.c.b16 %v4389, %v4389
        %v4422 = vpack.c.b16 %v4390, %v4390
        %v4423 = vpack.c.b16 %v4391, %v4391
        %v4424 = vpack.c.b16 %v4392, %v4392
        %v4425 = vpack.c.b16 %v4393, %v4393
        %v4426 = vpack.c.b16 %v4394, %v4394
        %v4427 = vpack.c.b16 %v4395, %v4395
        %v4428 = vpack.c.b16 %v4396, %v4396
        %v4429 = vpack.c.b16 %v4397, %v4397
        %4462 = vst [vmem:[%s507] sm:$0xf] %v4398
        %4463 = vst [vmem:[%s507 + $0x4] sm:$0xf] %v4399
        %4464 = vst [vmem:[%s507 + $0x8] sm:$0xf] %v4400
        %4465 = vst [vmem:[%s507 + $0xc] sm:$0xf] %v4401
        %4466 = vst [vmem:[%s507 + $0x10] sm:$0xf] %v4402
        %4467 = vst [vmem:[%s507 + $0x14] sm:$0xf] %v4403
        %4468 = vst [vmem:[%s507 + $0x18] sm:$0xf] %v4404
        %4469 = vst [vmem:[%s507 + $0x1c] sm:$0xf] %v4405
        %4470 = vst [vmem:[%s507 + $0x20] sm:$0xf] %v4406
        %4471 = vst [vmem:[%s507 + $0x24] sm:$0xf] %v4407
        %4472 = vst [vmem:[%s507 + $0x28] sm:$0xf] %v4408
        %4473 = vst [vmem:[%s507 + $0x2c] sm:$0xf] %v4409
        %4474 = vst [vmem:[%s507 + $0x30] sm:$0xf] %v4410
        %4475 = vst [vmem:[%s507 + $0x34] sm:$0xf] %v4411
        %4476 = vst [vmem:[%s507 + $0x38] sm:$0xf] %v4412
        %4477 = vst [vmem:[%s507 + $0x3c] sm:$0xf] %v4413
        %4478 = vst [vmem:[%s507 + $0x40] sm:$0xf] %v4414
        %4479 = vst [vmem:[%s507 + $0x44] sm:$0xf] %v4415
        %4480 = vst [vmem:[%s507 + $0x48] sm:$0xf] %v4416
        %4481 = vst [vmem:[%s507 + $0x4c] sm:$0xf] %v4417
        %4482 = vst [vmem:[%s507 + $0x50] sm:$0xf] %v4418
        %4483 = vst [vmem:[%s507 + $0x54] sm:$0xf] %v4419
        %4484 = vst [vmem:[%s507 + $0x58] sm:$0xf] %v4420
        %4485 = vst [vmem:[%s507 + $0x5c] sm:$0xf] %v4421
        %4486 = vst [vmem:[%s507 + $0x60] sm:$0xf] %v4422
        %4487 = vst [vmem:[%s507 + $0x64] sm:$0xf] %v4423
        %4488 = vst [vmem:[%s507 + $0x68] sm:$0xf] %v4424
        %4489 = vst [vmem:[%s507 + $0x6c] sm:$0xf] %v4425
        %4490 = vst [vmem:[%s507 + $0x70] sm:$0xf] %v4426
        %4491 = vst [vmem:[%s507 + $0x74] sm:$0xf] %v4427
        %4492 = vst [vmem:[%s507 + $0x78] sm:$0xf] %v4428
        %4493 = vst [vmem:[%s507 + $0x7c] sm:$0xf] %v4429
        %s4494 = sand.u32 %s278, 1
        %s4495 = scalar_lea.sflag [#allocation4], %s4494
        %s4496 = sand.u32 %s278, 1
        %s4497 = smul.addr %s4496, 128
        %s4498 = scalar_lea.vmem [#allocation11], %s4497
        // Predicated region
        $region77: #{tpu_custom_call.1} parent=55 // pred_check
          %p4499 = pneg %p288
        $region78: #{tpu_custom_call.1} parent=55 // pred_check_branch
          %4501 = sbr.rel (%p4499) target = $region80
        $region79: #{tpu_custom_call.1} parent=55 // pred_region
          %s4502 = smul.u32 16, %s35
          %s4504 = ssub.s32 2048, 2048
          %4505 = vsyncadd %s4495, %s4504
          %s4506 = smul.addr %s4502, 2
          %s4507 = smul.addr %s34, 32
          %s4508 = sadd.s32 %s4506, %s4507
          %s4509 = smul.addr %s4508, 64
          %s4510 = scalar_lea.hbm %s9, %s4509
          %s4511 = sshll.u32 %s4498, 4
          %s4512 = int_to_ptr.vmem [resolvable:$true] %s4511
          %4517 = dma.vmem_to_hbm [thread:$0]  %s4512, 2048, %s4510, %s4495, 64, 64, 4
        $region80: #{tpu_custom_call.1} parent=55 // pred_fallthru
          _
      $region56: #{tpu_custom_call.1} parent=5 // pred_fallthru
        _
      %p4518 = scmp.le.s32.totalorder 2, %s25
      // Predicated region
      $region81: #{tpu_custom_call.1} parent=5 // pred_check
        %p4519 = pneg %p4518
      $region82: #{tpu_custom_call.1} parent=5 // pred_check_branch
        %4521 = sbr.rel (%p4519) target = $region84
      $region83: #{tpu_custom_call.1} parent=5 // pred_region
        %s4522 = ssub.s32 %s25, 2
        // Predicated region
        $region85: #{tpu_custom_call.1} parent=83 // pred_check
          %p4523 = pneg %p294
        $region86: #{tpu_custom_call.1} parent=83 // pred_check_branch
          %4525 = sbr.rel (%p4523) target = $region88
        $region87: #{tpu_custom_call.1} parent=83 // pred_region
          %s4526 = sand.u32 %s279, 1
          %s4527 = scalar_lea.sflag [#allocation4], %s4526
          %s4528 = sand.u32 %s279, 1
          %s4529 = smul.addr %s4528, 128
          %s4530 = scalar_lea.vmem [#allocation11], %s4529
          %4531 = dma.done %s4527, 2048
        $region88: #{tpu_custom_call.1} parent=83 // pred_fallthru
          _
      $region84: #{tpu_custom_call.1} parent=5 // pred_fallthru
        _
    $region6: #{tpu_custom_call.1} parent=1 // loop_footer
      %s29 = sadd.s32 1, %s25
    $region7: #{tpu_custom_call.1} parent=1 // loop_footer_branch
      %24 = sbr.rel target = $region3
    $region8: #{tpu_custom_call.1} parent=1 // loop_exit
      _
    %4532 = vsyncpa [#allocation3], 1
    %s4533 = scalar_lea.sflag [#allocation3], 1
    %4534 = vsyncpa %s4533, 1
    %4535 = vsyncpa [#allocation6], 1
    %s4536 = scalar_lea.sflag [#allocation6], 1
    %4537 = vsyncpa %s4536, 1
    %4538 = vsyncpa [#allocation9], 1
    %4539 = vsyncpa [#allocation4], 1
    %s4540 = scalar_lea.sflag [#allocation4], 1
    %4541 = vsyncpa %s4540, 1

</llo_original>
